<compile_context>
chip_gen: v5e
topology: v5e:2x2
jax: 0.10.0
libtpu: 0.0.40
codegen_flags: <defaults>
</compile_context>

<pallas_src>
import functools
from typing import NamedTuple, Tuple

import jax
import jax.numpy as jnp
from jax.experimental import pallas as pl
from jax.experimental.pallas import tpu as pltpu


def _round_up(x, m):
    return ((x + m - 1) // m) * m


class Meta(NamedTuple):
    d_in: int
    hidden: int
    n_classes: int
    nc_pad: int
    npack: int
    bpack: int
    n_off: Tuple[int, int, int]
    b_off: Tuple[int, int, int]


def mlp_vd_kernel(x_ref, noise_ref, bias_ref, w1_ref, w2_ref, w3_ref, out_ref,
                  *, d_in, hidden, nc_pad, n_off, b_off):
    # x tile: (TM, d_in) bfloat16
    x = x_ref[...]

    # Unpack the lane-aligned packed side inputs with static slices (single DMA each).
    n1 = noise_ref[:, n_off[0]:n_off[0] + d_in]     # (1, 784)  bf16
    n2 = noise_ref[:, n_off[1]:n_off[1] + hidden]   # (1, 400)  bf16
    n3 = noise_ref[:, n_off[2]:n_off[2] + hidden]   # (1, 400)  bf16
    b1 = bias_ref[:, b_off[0]:b_off[0] + hidden]    # (1, 400)  f32
    b2 = bias_ref[:, b_off[1]:b_off[1] + hidden]    # (1, 400)  f32
    b3 = bias_ref[:, b_off[2]:b_off[2] + nc_pad]    # (1, 128)  f32, padded cols = -1e30

    # drop1 (multiplicative VD noise, bf16) -> fc1 (bf16 MXU, f32 acc) -> relu (f32)
    h = jnp.dot(x * n1, w1_ref[...], preferred_element_type=jnp.float32) + b1
    h = jnp.maximum(h, 0.0)

    # drop2 -> fc2 -> relu
    h = (h * n2).astype(jnp.bfloat16)
    h = jnp.dot(h, w2_ref[...], preferred_element_type=jnp.float32) + b2
    h = jnp.maximum(h, 0.0)

    # drop3 -> fc3 (output padded to 128 lanes; padded logits ~ -1e30)
    h = (h * n3).astype(jnp.bfloat16)
    logits = jnp.dot(h, w3_ref[...], preferred_element_type=jnp.float32) + b3

    # log_softmax along dim=1 (padded columns contribute exp(-huge) = 0 to the sum)
    m = jnp.max(logits, axis=1, keepdims=True)
    z = logits - m
    lse = jnp.log(jnp.sum(jnp.exp(z), axis=1, keepdims=True))
    out_ref[...] = (z - lse).astype(out_ref.dtype)


def prepare_inference_state(params, noise):
    """One-time (per model, NOT per call) prep of all kernel-side constants.

    Returns (state, meta):
      state: dict of device arrays — bf16 weights (w3 padded to 128 out lanes),
             packed bf16 noise vector, packed f32 bias vector.
      meta:  static shape/offset info (hashable, used as a static jit arg).
    """
    d_in = 28 * 28
    hidden = params["w1"].shape[1]
    n_classes = params["w3"].shape[1]
    nc_pad = _round_up(n_classes, 128)

    def pad_lanes(a, width, fill=0.0, dtype=jnp.float32):
        a = a.astype(jnp.float32)
        a = jnp.pad(a, ((0, 0), (0, width - a.shape[1])), constant_values=fill)
        return a.astype(dtype)

    # Pack the three noise vectors into one lane-aligned bf16 array (one DMA).
    n_off = (0, _round_up(d_in, 128), _round_up(d_in, 128) + _round_up(hidden, 128))
    npack = n_off[2] + _round_up(hidden, 128)
    noise_packed = jnp.concatenate([
        pad_lanes(noise["drop1.log_alpha"], n_off[1] - n_off[0], dtype=jnp.bfloat16),
        pad_lanes(noise["drop2.log_alpha"], n_off[2] - n_off[1], dtype=jnp.bfloat16),
        pad_lanes(noise["drop3.log_alpha"], npack - n_off[2], dtype=jnp.bfloat16),
    ], axis=1)

    # Pack the three biases (f32); b3 padded with -1e30 so padded logits vanish.
    b_off = (0, _round_up(hidden, 128), 2 * _round_up(hidden, 128))
    bpack = b_off[2] + nc_pad
    bias_packed = jnp.concatenate([
        pad_lanes(params["b1"], b_off[1] - b_off[0]),
        pad_lanes(params["b2"], b_off[2] - b_off[1]),
        pad_lanes(params["b3"], nc_pad, fill=-1e30),
    ], axis=1)

    state = {
        "w1": params["w1"].astype(jnp.bfloat16),
        "w2": params["w2"].astype(jnp.bfloat16),
        "w3": jnp.pad(params["w3"].astype(jnp.float32),
                      ((0, 0), (0, nc_pad - n_classes))).astype(jnp.bfloat16),
        "noise_packed": noise_packed,
        "bias_packed": bias_packed,
    }
    meta = Meta(d_in=d_in, hidden=hidden, n_classes=n_classes, nc_pad=nc_pad,
                npack=npack, bpack=bpack, n_off=n_off, b_off=b_off)
    return state, meta


def _num_batch_tiles():
    """2 batch tiles on dual-TensorCore chips (v7x), 1 otherwise (v5e/v6e)."""
    try:
        kind = jax.devices()[0].device_kind.lower()
        if "v7" in kind:
            return 2
    except Exception:  # pragma: no cover - interpret / CPU fallback
        pass
    return 1


@functools.partial(jax.jit, static_argnames=("meta",))
def mlp_bnn_vd_forward(x, state, meta):
    """x: (B, ncha, size, size); state/meta from prepare_inference_state."""
    d_in, hidden, nc_pad = meta.d_in, meta.hidden, meta.nc_pad
    B = x.shape[0]

    # Per-generation batch tiling: balanced tiles across TCs, minimal row padding.
    n_tiles = _num_batch_tiles()
    TM = _round_up(-(-B // n_tiles), 16)          # multiple of 16 (bf16 sublane pack)
    if TM > 1024:                                  # cap the per-step x tile (~1.6 MB)
        TM = 1024
        n_tiles = -(-B // TM)
    Bp = TM * n_tiles

    # x prep (bf16 convert + row pad) fuses into one pass under this jit.
    x2 = x.reshape(B, d_in).astype(jnp.bfloat16)
    if Bp != B:
        x2 = jnp.pad(x2, ((0, Bp - B), (0, 0)))

    flops = 2 * Bp * (d_in * hidden + hidden * hidden + hidden * nc_pad)
    bytes_accessed = (x2.size * 2 + state["noise_packed"].size * 2
                      + state["bias_packed"].size * 4
                      + state["w1"].size * 2 + state["w2"].size * 2
                      + state["w3"].size * 2 + Bp * nc_pad * 4)
    cost = pl.CostEstimate(flops=flops,
                           transcendentals=Bp * nc_pad,
                           bytes_accessed=bytes_accessed)

    kernel = functools.partial(
        mlp_vd_kernel,
        d_in=d_in, hidden=hidden, nc_pad=nc_pad,
        n_off=meta.n_off, b_off=meta.b_off)

    out = pl.pallas_call(
        kernel,
        out_shape=jax.ShapeDtypeStruct((Bp, nc_pad), jnp.float32),
        grid=(n_tiles,),
        in_specs=[
            pl.BlockSpec((TM, d_in), lambda i: (i, 0)),        # x bf16: tiled over batch
            pl.BlockSpec((1, meta.npack), lambda i: (0, 0)),   # packed noise (resident)
            pl.BlockSpec((1, meta.bpack), lambda i: (0, 0)),   # packed biases (resident)
            pl.BlockSpec((d_in, hidden), lambda i: (0, 0)),    # w1 bf16 (resident)
            pl.BlockSpec((hidden, hidden), lambda i: (0, 0)),  # w2 bf16 (resident)
            pl.BlockSpec((hidden, nc_pad), lambda i: (0, 0)),  # w3 bf16 padded (resident)
        ],
        out_specs=pl.BlockSpec((TM, nc_pad), lambda i: (i, 0)),
        compiler_params=pltpu.CompilerParams(
            dimension_semantics=("parallel",),
        ),
        cost_estimate=cost,
    )(x2, state["noise_packed"], state["bias_packed"],
      state["w1"], state["w2"], state["w3"])

    return out[:B, :meta.n_classes]


def reference_forward(x, noise, params):
    """Pure-JAX reference following the same numerics path (bf16 dot inputs, f32 acc)."""
    B = x.shape[0]
    h = x.reshape(B, 28 * 28).astype(jnp.bfloat16)
    w1 = params["w1"].astype(jnp.bfloat16)
    w2 = params["w2"].astype(jnp.bfloat16)
    w3 = params["w3"].astype(jnp.bfloat16)

    h = h * noise["drop1.log_alpha"].astype(jnp.bfloat16)
    h = jnp.dot(h, w1, preferred_element_type=jnp.float32) + params["b1"]
    h = jnp.maximum(h, 0.0)
    h = (h * noise["drop2.log_alpha"].astype(jnp.bfloat16)).astype(jnp.bfloat16)
    h = jnp.dot(h, w2, preferred_element_type=jnp.float32) + params["b2"]
    h = jnp.maximum(h, 0.0)
    h = (h * noise["drop3.log_alpha"].astype(jnp.bfloat16)).astype(jnp.bfloat16)
    logits = jnp.dot(h, w3, preferred_element_type=jnp.float32) + params["b3"]
    return jax.nn.log_softmax(logits, axis=1)


def init_params(key, unitN=400, n_classes=10):
    """Deterministic init. Weights stored as (in, out); biases as (1, out)."""
    ks = jax.random.split(key, 6)

    def linear(kw, kb, fan_in, fan_out):
        bound = 1.0 / jnp.sqrt(fan_in)
        w = jax.random.uniform(kw, (fan_in, fan_out), jnp.float32, -bound, bound)
        b = jax.random.uniform(kb, (1, fan_out), jnp.float32, -bound, bound)
        return w, b

    w1, b1 = linear(ks[0], ks[1], 28 * 28, unitN)
    w2, b2 = linear(ks[2], ks[3], unitN, unitN)
    w3, b3 = linear(ks[4], ks[5], unitN, n_classes)
    return {"w1": w1, "b1": b1, "w2": w2, "b2": b2, "w3": w3, "b3": b3}


if __name__ == "__main__":
    key = jax.random.PRNGKey(0)
    k_x, k_p, k_n1, k_n2, k_n3 = jax.random.split(key, 5)

    # Small batch; exercises the per-generation tiling path (1 tile on v5e/v6e, 2 on v7x).
    B, unitN, n_classes = 64, 400, 10
    # Input: (B, ncha=1, size=28, size=28), consistent with x.view(-1, 28*28)
    x = jax.random.normal(k_x, (B, 1, 28, 28), jnp.float32)

    params = init_params(k_p, unitN=unitN, n_classes=n_classes)

    # Deterministic multiplicative dropout noise (mean ~1), one per drop layer.
    noise = {
        "drop1.log_alpha": 1.0 + 0.1 * jax.random.normal(k_n1, (1, 28 * 28), jnp.float32),
        "drop2.log_alpha": 1.0 + 0.1 * jax.random.normal(k_n2, (1, unitN), jnp.float32),
        "drop3.log_alpha": 1.0 + 0.1 * jax.random.normal(k_n3, (1, unitN), jnp.float32),
    }

    # One-time prep (bf16 weights, padded w3, packed noise/biases) — NOT per forward call.
    state, meta = prepare_inference_state(params, noise)

    y = mlp_bnn_vd_forward(x, state, meta)
    y = jax.block_until_ready(y)

    y_ref = reference_forward(x, noise, params)
    assert y.shape == (B, n_classes)
    assert bool(jnp.all(jnp.isfinite(y))), "non-finite output"
    assert jnp.allclose(y, y_ref, atol=1e-2, rtol=1e-2), "mismatch vs. reference"

    print("KERNEL_OK")
</pallas_src>

<mosaic_0001>
module attributes {stable_mosaic.version = 11 : i64} {
  func.func @mlp_vd_kernel(%arg0: i32, %arg1: memref<64x784xbf16, #tpu.memory_space<vmem>>, %arg2: memref<1x1920xbf16, #tpu.memory_space<vmem>>, %arg3: memref<1x1152xf32, #tpu.memory_space<vmem>>, %arg4: memref<784x400xbf16, #tpu.memory_space<vmem>>, %arg5: memref<400x400xbf16, #tpu.memory_space<vmem>>, %arg6: memref<400x128xbf16, #tpu.memory_space<vmem>>, %arg7: memref<64x128xf32, #tpu.memory_space<vmem>>) attributes {dimension_semantics = [#tpu.dimension_semantics<parallel>], iteration_bounds = array<i64: 1>, scalar_prefetch = 0 : i64, scratch_operands = 0 : i64, tpu.core_type = #tpu.core_type<tc>, window_params = [{transform_indices = @transform_0, window_bounds = array<i64: 64, 784>}, {pipeline_mode = #tpu.pipeline_mode<synchronous>, transform_indices = @transform_1, window_bounds = array<i64: 1, 1920>}, {pipeline_mode = #tpu.pipeline_mode<synchronous>, transform_indices = @transform_2, window_bounds = array<i64: 1, 1152>}, {pipeline_mode = #tpu.pipeline_mode<synchronous>, transform_indices = @transform_3, window_bounds = array<i64: 784, 400>}, {pipeline_mode = #tpu.pipeline_mode<synchronous>, transform_indices = @transform_4, window_bounds = array<i64: 400, 400>}, {pipeline_mode = #tpu.pipeline_mode<synchronous>, transform_indices = @transform_5, window_bounds = array<i64: 400, 128>}, {transform_indices = @transform_6, window_bounds = array<i64: 64, 128>}]} {
    %c0 = arith.constant 0 : index
    %c0_0 = arith.constant 0 : index
    %0 = vector.load %arg1[%c0, %c0_0] : memref<64x784xbf16, #tpu.memory_space<vmem>>, vector<64x784xbf16>
    %c0_1 = arith.constant 0 : index
    %c0_2 = arith.constant 0 : index
    %1 = vector.load %arg2[%c0_1, %c0_2] : memref<1x1920xbf16, #tpu.memory_space<vmem>>, vector<1x784xbf16>
    %c0_3 = arith.constant 0 : index
    %c896 = arith.constant 896 : index
    %2 = vector.load %arg2[%c0_3, %c896] : memref<1x1920xbf16, #tpu.memory_space<vmem>>, vector<1x400xbf16>
    %c0_4 = arith.constant 0 : index
    %c1408 = arith.constant 1408 : index
    %3 = vector.load %arg2[%c0_4, %c1408] : memref<1x1920xbf16, #tpu.memory_space<vmem>>, vector<1x400xbf16>
    %c0_5 = arith.constant 0 : index
    %c0_6 = arith.constant 0 : index
    %4 = vector.load %arg3[%c0_5, %c0_6] : memref<1x1152xf32, #tpu.memory_space<vmem>>, vector<1x400xf32>
    %c0_7 = arith.constant 0 : index
    %c512 = arith.constant 512 : index
    %5 = vector.load %arg3[%c0_7, %c512] : memref<1x1152xf32, #tpu.memory_space<vmem>>, vector<1x400xf32>
    %c0_8 = arith.constant 0 : index
    %c1024 = arith.constant 1024 : index
    %6 = vector.load %arg3[%c0_8, %c1024] : memref<1x1152xf32, #tpu.memory_space<vmem>>, vector<1x128xf32>
    %7 = vector.broadcast %1 : vector<1x784xbf16> to vector<64x784xbf16>
    %8 = arith.mulf %0, %7 : vector<64x784xbf16>
    %c0_9 = arith.constant 0 : index
    %c0_10 = arith.constant 0 : index
    %9 = vector.load %arg4[%c0_9, %c0_10] : memref<784x400xbf16, #tpu.memory_space<vmem>>, vector<784x400xbf16>
    %cst = arith.constant dense<0.000000e+00> : vector<64x400xf32>
    %10 = tpu.matmul %8, %9, %cst {dimension_numbers = #tpu.dot_dimension_numbers<[1], [0], [0], [1], [0, 0, 1, 1], [], []>} : vector<64x784xbf16>, vector<784x400xbf16>, vector<64x400xf32> -> vector<64x400xf32>
    %11 = vector.broadcast %4 : vector<1x400xf32> to vector<64x400xf32>
    %12 = arith.addf %10, %11 : vector<64x400xf32>
    %cst_11 = arith.constant 0.000000e+00 : f32
    %13 = vector.broadcast %cst_11 : f32 to vector<64x400xf32>
    %14 = arith.maximumf %12, %13 : vector<64x400xf32>
    %15 = arith.extf %2 : vector<1x400xbf16> to vector<1x400xf32>
    %16 = vector.broadcast %15 : vector<1x400xf32> to vector<64x400xf32>
    %17 = arith.mulf %14, %16 : vector<64x400xf32>
    %18 = arith.truncf %17 : vector<64x400xf32> to vector<64x400xbf16>
    %c0_12 = arith.constant 0 : index
    %c0_13 = arith.constant 0 : index
    %19 = vector.load %arg5[%c0_12, %c0_13] : memref<400x400xbf16, #tpu.memory_space<vmem>>, vector<400x400xbf16>
    %cst_14 = arith.constant dense<0.000000e+00> : vector<64x400xf32>
    %20 = tpu.matmul %18, %19, %cst_14 {dimension_numbers = #tpu.dot_dimension_numbers<[1], [0], [0], [1], [0, 0, 1, 1], [], []>} : vector<64x400xbf16>, vector<400x400xbf16>, vector<64x400xf32> -> vector<64x400xf32>
    %21 = vector.broadcast %5 : vector<1x400xf32> to vector<64x400xf32>
    %22 = arith.addf %20, %21 : vector<64x400xf32>
    %cst_15 = arith.constant 0.000000e+00 : f32
    %23 = vector.broadcast %cst_15 : f32 to vector<64x400xf32>
    %24 = arith.maximumf %22, %23 : vector<64x400xf32>
    %25 = arith.extf %3 : vector<1x400xbf16> to vector<1x400xf32>
    %26 = vector.broadcast %25 : vector<1x400xf32> to vector<64x400xf32>
    %27 = arith.mulf %24, %26 : vector<64x400xf32>
    %28 = arith.truncf %27 : vector<64x400xf32> to vector<64x400xbf16>
    %c0_16 = arith.constant 0 : index
    %c0_17 = arith.constant 0 : index
    %29 = vector.load %arg6[%c0_16, %c0_17] : memref<400x128xbf16, #tpu.memory_space<vmem>>, vector<400x128xbf16>
    %cst_18 = arith.constant dense<0.000000e+00> : vector<64x128xf32>
    %30 = tpu.matmul %28, %29, %cst_18 {dimension_numbers = #tpu.dot_dimension_numbers<[1], [0], [0], [1], [0, 0, 1, 1], [], []>} : vector<64x400xbf16>, vector<400x128xbf16>, vector<64x128xf32> -> vector<64x128xf32>
    %31 = vector.broadcast %6 : vector<1x128xf32> to vector<64x128xf32>
    %32 = arith.addf %30, %31 : vector<64x128xf32>
    %cst_19 = arith.constant dense<0xFF800000> : vector<64xf32>
    %33 = vector.multi_reduction <maximumf>, %32, %cst_19 [1] : vector<64x128xf32> to vector<64xf32>
    %34 = vector.shape_cast %33 : vector<64xf32> to vector<64x1xf32>
    %35 = vector.broadcast %34 : vector<64x1xf32> to vector<64x128xf32>
    %36 = arith.subf %32, %35 : vector<64x128xf32>
    %37 = math.exp %36 : vector<64x128xf32>
    %cst_20 = arith.constant dense<0.000000e+00> : vector<64xf32>
    %38 = vector.multi_reduction <add>, %37, %cst_20 [1] : vector<64x128xf32> to vector<64xf32>
    %39 = vector.shape_cast %38 : vector<64xf32> to vector<64x1xf32>
    %40 = math.log %39 : vector<64x1xf32>
    %41 = vector.broadcast %40 : vector<64x1xf32> to vector<64x128xf32>
    %42 = arith.subf %36, %41 : vector<64x128xf32>
    %c0_21 = arith.constant 0 : index
    %c0_22 = arith.constant 0 : index
    %43 = vector.load %arg7[%c0_21, %c0_22] : memref<64x128xf32, #tpu.memory_space<vmem>>, vector<64x128xf32>
    tpu.vector_store %arg7[%c0_21, %c0_22], %42 {strides = array<i32>} : memref<64x128xf32, #tpu.memory_space<vmem>>, vector<64x128xf32>,
    return
  }
  func.func @transform_0(%arg0: i32) -> (i32, i32) {
    %c0_i32 = arith.constant 0 : i32
    %c0_i32_0 = arith.constant 0 : i32
    return %arg0, %c0_i32 : i32, i32
  }
  func.func @transform_1(%arg0: i32) -> (i32, i32) {
    %c0_i32 = arith.constant 0 : i32
    %c0_i32_0 = arith.constant 0 : i32
    %c0_i32_1 = arith.constant 0 : i32
    return %c0_i32, %c0_i32_0 : i32, i32
  }
  func.func @transform_2(%arg0: i32) -> (i32, i32) {
    %c0_i32 = arith.constant 0 : i32
    %c0_i32_0 = arith.constant 0 : i32
    %c0_i32_1 = arith.constant 0 : i32
    return %c0_i32, %c0_i32_0 : i32, i32
  }
  func.func @transform_3(%arg0: i32) -> (i32, i32) {
    %c0_i32 = arith.constant 0 : i32
    %c0_i32_0 = arith.constant 0 : i32
    %c0_i32_1 = arith.constant 0 : i32
    return %c0_i32, %c0_i32_0 : i32, i32
  }
  func.func @transform_4(%arg0: i32) -> (i32, i32) {
    %c0_i32 = arith.constant 0 : i32
    %c0_i32_0 = arith.constant 0 : i32
    %c0_i32_1 = arith.constant 0 : i32
    return %c0_i32, %c0_i32_0 : i32, i32
  }
  func.func @transform_5(%arg0: i32) -> (i32, i32) {
    %c0_i32 = arith.constant 0 : i32
    %c0_i32_0 = arith.constant 0 : i32
    %c0_i32_1 = arith.constant 0 : i32
    return %c0_i32, %c0_i32_0 : i32, i32
  }
  func.func @transform_6(%arg0: i32) -> (i32, i32) {
    %c0_i32 = arith.constant 0 : i32
    %c0_i32_0 = arith.constant 0 : i32
    return %arg0, %c0_i32 : i32, i32
  }
}

</mosaic_0001>

<llo_original>
// kernel: mlp_bnn_vd_forward.1
$region0: #{mlp_bnn_vd_forward.1}
  #allocation0 [shape = 'u32[]', space=smem, size = 0x4, offset = 0x4, fixed_abs, tag = 'smem constant byte address 0x4 - core index']
  #allocation1 [shape = 'u32[72,128]{1,0:T(1,128)}', space=vmem, size = 0x9000, scoped, tag = 'internal scratch']
  %s0 = inlined_call_operand.vmem [shape: bf16[64,784], index: 0, kind: input, shape index: {}]
  %s1 = inlined_call_operand.vmem [shape: bf16[1,1920], index: 1, kind: input, shape index: {}]
  %s2 = inlined_call_operand.vmem [shape: f32[1,1152], index: 2, kind: input, shape index: {}]
  %s3 = inlined_call_operand.vmem [shape: bf16[784,400], index: 3, kind: input, shape index: {}]
  %s4 = inlined_call_operand.vmem [shape: bf16[400,400], index: 4, kind: input, shape index: {}]
  %s5 = inlined_call_operand.vmem [shape: bf16[400,128], index: 5, kind: input, shape index: {}]
  %s6 = inlined_call_operand.vmem [shape: f32[64,128], index: 6, kind: output, shape index: {}]
  %s7 = sld [smem:[#allocation0]]
  $region34: #{mlp_bnn_vd_forward.1} parent=0
    _
  %s9 = ssub.s32 1, %s7
  %s10 = scalar_select 0, %s9, %s7
  // Predicated region
  $region2: #{mlp_bnn_vd_forward.1} parent=0 // pred_check
    _
  $region3: #{mlp_bnn_vd_forward.1} parent=0 // pred_check_branch
    %12 = sbr.rel (0) target = $region5
  $region4: #{mlp_bnn_vd_forward.1} parent=0 // pred_region
    _
  $region5: #{mlp_bnn_vd_forward.1} parent=0 // pred_fallthru
    _
  // Predicated region
  $region6: #{mlp_bnn_vd_forward.1} parent=0 // pred_check
    _
  $region7: #{mlp_bnn_vd_forward.1} parent=0 // pred_check_branch
    %14 = sbr.rel (0) target = $region9
  $region8: #{mlp_bnn_vd_forward.1} parent=0 // pred_region
    _
  $region9: #{mlp_bnn_vd_forward.1} parent=0 // pred_fallthru
    _
  // Predicated region
  $region10: #{mlp_bnn_vd_forward.1} parent=0 // pred_check
    _
  $region11: #{mlp_bnn_vd_forward.1} parent=0 // pred_check_branch
    %16 = sbr.rel (0) target = $region13
  $region12: #{mlp_bnn_vd_forward.1} parent=0 // pred_region
    _
  $region13: #{mlp_bnn_vd_forward.1} parent=0 // pred_fallthru
    _
  // Predicated region
  $region14: #{mlp_bnn_vd_forward.1} parent=0 // pred_check
    _
  $region15: #{mlp_bnn_vd_forward.1} parent=0 // pred_check_branch
    %18 = sbr.rel (0) target = $region17
  $region16: #{mlp_bnn_vd_forward.1} parent=0 // pred_region
    _
  $region17: #{mlp_bnn_vd_forward.1} parent=0 // pred_fallthru
    _
  // Predicated region
  $region18: #{mlp_bnn_vd_forward.1} parent=0 // pred_check
    _
  $region19: #{mlp_bnn_vd_forward.1} parent=0 // pred_check_branch
    %20 = sbr.rel (0) target = $region21
  $region20: #{mlp_bnn_vd_forward.1} parent=0 // pred_region
    _
  $region21: #{mlp_bnn_vd_forward.1} parent=0 // pred_fallthru
    _
  // Predicated region
  $region22: #{mlp_bnn_vd_forward.1} parent=0 // pred_check
    _
  $region23: #{mlp_bnn_vd_forward.1} parent=0 // pred_check_branch
    %22 = sbr.rel (0) target = $region25
  $region24: #{mlp_bnn_vd_forward.1} parent=0 // pred_region
    _
  $region25: #{mlp_bnn_vd_forward.1} parent=0 // pred_fallthru
    _
  %v24 = vld [vmem:[%s0] sm:$0xff]
  %v25 = vld [vmem:[%s0 + $0x8] sm:$0xff]
  %v26 = vld [vmem:[%s0 + $0x10] sm:$0xff]
  %v27 = vld [vmem:[%s0 + $0x18] sm:$0xf]
  %v28 = vld [vmem:[%s0 + $0x1c] sm:$0xff]
  %v29 = vld [vmem:[%s0 + $0x24] sm:$0xff]
  %v30 = vld [vmem:[%s0 + $0x2c] sm:$0xff]
  %v31 = vld [vmem:[%s0 + $0x34] sm:$0xf]
  %v32 = vld [vmem:[%s0 + $0x38] sm:$0xff]
  %v33 = vld [vmem:[%s0 + $0x40] sm:$0xff]
  %v34 = vld [vmem:[%s0 + $0x48] sm:$0xff]
  %v35 = vld [vmem:[%s0 + $0x50] sm:$0xf]
  %v36 = vld [vmem:[%s0 + $0x54] sm:$0xff]
  %v37 = vld [vmem:[%s0 + $0x5c] sm:$0xff]
  %v38 = vld [vmem:[%s0 + $0x64] sm:$0xff]
  %v39 = vld [vmem:[%s0 + $0x6c] sm:$0xf]
  %v40 = vld [vmem:[%s0 + $0x70] sm:$0xff]
  %v41 = vld [vmem:[%s0 + $0x78] sm:$0xff]
  %v42 = vld [vmem:[%s0 + $0x80] sm:$0xff]
  %v43 = vld [vmem:[%s0 + $0x88] sm:$0xf]
  %v44 = vld [vmem:[%s0 + $0x8c] sm:$0xff]
  %v45 = vld [vmem:[%s0 + $0x94] sm:$0xff]
  %v46 = vld [vmem:[%s0 + $0x9c] sm:$0xff]
  %v47 = vld [vmem:[%s0 + $0xa4] sm:$0xf]
  %v48 = vld [vmem:[%s0 + $0xa8] sm:$0xff]
  %v49 = vld [vmem:[%s0 + $0xb0] sm:$0xff]
  %v50 = vld [vmem:[%s0 + $0xb8] sm:$0xff]
  %v51 = vld [vmem:[%s0 + $0xc0] sm:$0xf]
  %v52 = vld [vmem:[%s0 + $0xc4] sm:$0xff]
  %v53 = vld [vmem:[%s0 + $0xcc] sm:$0xff]
  %v54 = vld [vmem:[%s0 + $0xd4] sm:$0xff]
  %v55 = vld [vmem:[%s0 + $0xdc] sm:$0xf]
  %v56 = vld [vmem:[%s1] sm:$0x7f]
  %v57 = vld [vmem:[%s1 + $0x7] sm:$0xf]
  %v58 = vld [vmem:[%s1 + $0xb] sm:$0xf]
  %v59 = vld [vmem:[%s2] sm:$0xf]
  %v60 = vld [vmem:[%s2 + $0x4] sm:$0xf]
  %v61 = vld [vmem:[%s2 + $0x8] sm:$0x1]
  %63 = vst [vmem:[#allocation1] ss:$9 sm:$0xff] %v56
  %v64 = vld [vmem:[#allocation1] sm:$0xff]
  %v65 = vld [vmem:[#allocation1 + $0x9] sm:$0xff]
  %v66 = vld [vmem:[#allocation1 + $0x12] sm:$0xff]
  %v67 = vld [vmem:[#allocation1 + $0x1b] sm:$0xff]
  %v68 = vld [vmem:[#allocation1 + $0x24] sm:$0xff]
  %v69 = vld [vmem:[#allocation1 + $0x2d] sm:$0xff]
  %v70 = vld [vmem:[#allocation1 + $0x36] sm:$0xff]
  %v71 = vpack.i.b16 %v64, %v64
  %v73 = vperm.slane %v71, 0
  %v74 = vpack.i.b16 %v65, %v65
  %v76 = vperm.slane %v74, 0
  %v77 = vpack.i.b16 %v66, %v66
  %v79 = vperm.slane %v77, 0
  %v80 = vpack.i.b16 %v67, %v67
  %v82 = vperm.slane %v80, 0
  %v83 = vpack.i.b16 %v68, %v68
  %v85 = vperm.slane %v83, 0
  %v86 = vpack.i.b16 %v69, %v69
  %v88 = vperm.slane %v86, 0
  %v89 = vpack.i.b16 %v70, %v70
  %v91 = vperm.slane %v89, 0
  %v92 = vunpack.c.l.bf16 %v24
  %v93 = vunpack.c.h.bf16 %v24
  %v94 = vunpack.c.l.bf16 %v25
  %v95 = vunpack.c.h.bf16 %v25
  %v96 = vunpack.c.l.bf16 %v26
  %v97 = vunpack.c.h.bf16 %v26
  %v98 = vunpack.c.l.bf16 %v27
  %v99 = vunpack.c.l.bf16 %v28
  %v100 = vunpack.c.h.bf16 %v28
  %v101 = vunpack.c.l.bf16 %v29
  %v102 = vunpack.c.h.bf16 %v29
  %v103 = vunpack.c.l.bf16 %v30
  %v104 = vunpack.c.h.bf16 %v30
  %v105 = vunpack.c.l.bf16 %v31
  %v106 = vunpack.c.l.bf16 %v32
  %v107 = vunpack.c.h.bf16 %v32
  %v108 = vunpack.c.l.bf16 %v33
  %v109 = vunpack.c.h.bf16 %v33
  %v110 = vunpack.c.l.bf16 %v34
  %v111 = vunpack.c.h.bf16 %v34
  %v112 = vunpack.c.l.bf16 %v35
  %v113 = vunpack.c.l.bf16 %v36
  %v114 = vunpack.c.h.bf16 %v36
  %v115 = vunpack.c.l.bf16 %v37
  %v116 = vunpack.c.h.bf16 %v37
  %v117 = vunpack.c.l.bf16 %v38
  %v118 = vunpack.c.h.bf16 %v38
  %v119 = vunpack.c.l.bf16 %v39
  %v120 = vunpack.c.l.bf16 %v40
  %v121 = vunpack.c.h.bf16 %v40
  %v122 = vunpack.c.l.bf16 %v41
  %v123 = vunpack.c.h.bf16 %v41
  %v124 = vunpack.c.l.bf16 %v42
  %v125 = vunpack.c.h.bf16 %v42
  %v126 = vunpack.c.l.bf16 %v43
  %v127 = vunpack.c.l.bf16 %v44
  %v128 = vunpack.c.h.bf16 %v44
  %v129 = vunpack.c.l.bf16 %v45
  %v130 = vunpack.c.h.bf16 %v45
  %v131 = vunpack.c.l.bf16 %v46
  %v132 = vunpack.c.h.bf16 %v46
  %v133 = vunpack.c.l.bf16 %v47
  %v134 = vunpack.c.l.bf16 %v48
  %v135 = vunpack.c.h.bf16 %v48
  %v136 = vunpack.c.l.bf16 %v49
  %v137 = vunpack.c.h.bf16 %v49
  %v138 = vunpack.c.l.bf16 %v50
  %v139 = vunpack.c.h.bf16 %v50
  %v140 = vunpack.c.l.bf16 %v51
  %v141 = vunpack.c.l.bf16 %v52
  %v142 = vunpack.c.h.bf16 %v52
  %v143 = vunpack.c.l.bf16 %v53
  %v144 = vunpack.c.h.bf16 %v53
  %v145 = vunpack.c.l.bf16 %v54
  %v146 = vunpack.c.h.bf16 %v54
  %v147 = vunpack.c.l.bf16 %v55
  %v148 = vunpack.c.l.bf16 %v73
  %v149 = vunpack.c.l.bf16 %v76
  %v150 = vunpack.c.l.bf16 %v79
  %v151 = vunpack.c.l.bf16 %v82
  %v152 = vunpack.c.l.bf16 %v85
  %v153 = vunpack.c.l.bf16 %v88
  %v154 = vunpack.c.l.bf16 %v91
  %v155 = vmul.f32 %v92, %v148
  %v156 = vmul.f32 %v93, %v149
  %v157 = vmul.f32 %v94, %v150
  %v158 = vmul.f32 %v95, %v151
  %v159 = vmul.f32 %v96, %v152
  %v160 = vmul.f32 %v97, %v153
  %v161 = vmul.f32 %v98, %v154
  %v162 = vmul.f32 %v99, %v148
  %v163 = vmul.f32 %v100, %v149
  %v164 = vmul.f32 %v101, %v150
  %v165 = vmul.f32 %v102, %v151
  %v166 = vmul.f32 %v103, %v152
  %v167 = vmul.f32 %v104, %v153
  %v168 = vmul.f32 %v105, %v154
  %v169 = vmul.f32 %v106, %v148
  %v170 = vmul.f32 %v107, %v149
  %v171 = vmul.f32 %v108, %v150
  %v172 = vmul.f32 %v109, %v151
  %v173 = vmul.f32 %v110, %v152
  %v174 = vmul.f32 %v111, %v153
  %v175 = vmul.f32 %v112, %v154
  %v176 = vmul.f32 %v113, %v148
  %v177 = vmul.f32 %v114, %v149
  %v178 = vmul.f32 %v115, %v150
  %v179 = vmul.f32 %v116, %v151
  %v180 = vmul.f32 %v117, %v152
  %v181 = vmul.f32 %v118, %v153
  %v182 = vmul.f32 %v119, %v154
  %v183 = vmul.f32 %v120, %v148
  %v184 = vmul.f32 %v121, %v149
  %v185 = vmul.f32 %v122, %v150
  %v186 = vmul.f32 %v123, %v151
  %v187 = vmul.f32 %v124, %v152
  %v188 = vmul.f32 %v125, %v153
  %v189 = vmul.f32 %v126, %v154
  %v190 = vmul.f32 %v127, %v148
  %v191 = vmul.f32 %v128, %v149
  %v192 = vmul.f32 %v129, %v150
  %v193 = vmul.f32 %v130, %v151
  %v194 = vmul.f32 %v131, %v152
  %v195 = vmul.f32 %v132, %v153
  %v196 = vmul.f32 %v133, %v154
  %v197 = vmul.f32 %v134, %v148
  %v198 = vmul.f32 %v135, %v149
  %v199 = vmul.f32 %v136, %v150
  %v200 = vmul.f32 %v137, %v151
  %v201 = vmul.f32 %v138, %v152
  %v202 = vmul.f32 %v139, %v153
  %v203 = vmul.f32 %v140, %v154
  %v204 = vmul.f32 %v141, %v148
  %v205 = vmul.f32 %v142, %v149
  %v206 = vmul.f32 %v143, %v150
  %v207 = vmul.f32 %v144, %v151
  %v208 = vmul.f32 %v145, %v152
  %v209 = vmul.f32 %v146, %v153
  %v210 = vmul.f32 %v147, %v154
  %v211 = vpack.c.bf16 %v162, %v155
  %v212 = vpack.c.bf16 %v163, %v156
  %v213 = vpack.c.bf16 %v164, %v157
  %v214 = vpack.c.bf16 %v165, %v158
  %v215 = vpack.c.bf16 %v166, %v159
  %v216 = vpack.c.bf16 %v167, %v160
  %v217 = vpack.c.bf16 %v168, %v161
  %v218 = vpack.c.bf16 %v176, %v169
  %v219 = vpack.c.bf16 %v177, %v170
  %v220 = vpack.c.bf16 %v178, %v171
  %v221 = vpack.c.bf16 %v179, %v172
  %v222 = vpack.c.bf16 %v180, %v173
  %v223 = vpack.c.bf16 %v181, %v174
  %v224 = vpack.c.bf16 %v182, %v175
  %v225 = vpack.c.bf16 %v190, %v183
  %v226 = vpack.c.bf16 %v191, %v184
  %v227 = vpack.c.bf16 %v192, %v185
  %v228 = vpack.c.bf16 %v193, %v186
  %v229 = vpack.c.bf16 %v194, %v187
  %v230 = vpack.c.bf16 %v195, %v188
  %v231 = vpack.c.bf16 %v196, %v189
  %v232 = vpack.c.bf16 %v204, %v197
  %v233 = vpack.c.bf16 %v205, %v198
  %v234 = vpack.c.bf16 %v206, %v199
  %v235 = vpack.c.bf16 %v207, %v200
  %v236 = vpack.c.bf16 %v208, %v201
  %v237 = vpack.c.bf16 %v209, %v202
  %v238 = vpack.c.bf16 %v210, %v203
  %v239 = vld [vmem:[%s3] sm:$0xff]
  %v240 = vld [vmem:[%s3 + $0x8] sm:$0xff]
  %v241 = vld [vmem:[%s3 + $0x10] sm:$0xff]
  %v242 = vld [vmem:[%s3 + $0x18] sm:$0xff]
  %v243 = vld [vmem:[%s3 + $0x20] sm:$0xff]
  %v244 = vld [vmem:[%s3 + $0x28] sm:$0xff]
  %v245 = vld [vmem:[%s3 + $0x30] sm:$0xff]
  %v246 = vld [vmem:[%s3 + $0x38] sm:$0xff]
  %v247 = vld [vmem:[%s3 + $0x40] sm:$0xff]
  %v248 = vld [vmem:[%s3 + $0x48] sm:$0xff]
  %v249 = vld [vmem:[%s3 + $0x50] sm:$0xff]
  %v250 = vld [vmem:[%s3 + $0x58] sm:$0xff]
  %v251 = vld [vmem:[%s3 + $0x60] sm:$0xff]
  %v252 = vld [vmem:[%s3 + $0x68] sm:$0xff]
  %v253 = vld [vmem:[%s3 + $0x70] sm:$0xff]
  %v254 = vld [vmem:[%s3 + $0x78] sm:$0xff]
  %v255 = vld [vmem:[%s3 + $0x80] sm:$0xff]
  %v256 = vld [vmem:[%s3 + $0x88] sm:$0xff]
  %v257 = vld [vmem:[%s3 + $0x90] sm:$0xff]
  %v258 = vld [vmem:[%s3 + $0x98] sm:$0xff]
  %v259 = vld [vmem:[%s3 + $0xa0] sm:$0xff]
  %v260 = vld [vmem:[%s3 + $0xa8] sm:$0xff]
  %v261 = vld [vmem:[%s3 + $0xb0] sm:$0xff]
  %v262 = vld [vmem:[%s3 + $0xb8] sm:$0xff]
  %v263 = vld [vmem:[%s3 + $0xc0] sm:$0xff]
  %v264 = vld [vmem:[%s3 + $0xc8] sm:$0xff]
  %v265 = vld [vmem:[%s3 + $0xd0] sm:$0xff]
  %v266 = vld [vmem:[%s3 + $0xd8] sm:$0xff]
  %v267 = vld [vmem:[%s3 + $0xe0] sm:$0xff]
  %v268 = vld [vmem:[%s3 + $0xe8] sm:$0xff]
  %v269 = vld [vmem:[%s3 + $0xf0] sm:$0xff]
  %v270 = vld [vmem:[%s3 + $0xf8] sm:$0xff]
  %v271 = vld [vmem:[%s3 + $0x100] sm:$0xff]
  %v272 = vld [vmem:[%s3 + $0x108] sm:$0xff]
  %v273 = vld [vmem:[%s3 + $0x110] sm:$0xff]
  %v274 = vld [vmem:[%s3 + $0x118] sm:$0xff]
  %v275 = vld [vmem:[%s3 + $0x120] sm:$0xff]
  %v276 = vld [vmem:[%s3 + $0x128] sm:$0xff]
  %v277 = vld [vmem:[%s3 + $0x130] sm:$0xff]
  %v278 = vld [vmem:[%s3 + $0x138] sm:$0xff]
  %v279 = vld [vmem:[%s3 + $0x140] sm:$0xff]
  %v280 = vld [vmem:[%s3 + $0x148] sm:$0xff]
  %v281 = vld [vmem:[%s3 + $0x150] sm:$0xff]
  %v282 = vld [vmem:[%s3 + $0x158] sm:$0xff]
  %v283 = vld [vmem:[%s3 + $0x160] sm:$0xff]
  %v284 = vld [vmem:[%s3 + $0x168] sm:$0xff]
  %v285 = vld [vmem:[%s3 + $0x170] sm:$0xff]
  %v286 = vld [vmem:[%s3 + $0x178] sm:$0xff]
  %v287 = vld [vmem:[%s3 + $0x180] sm:$0xff]
  %v288 = vld [vmem:[%s3 + $0x188] sm:$0xff]
  %v289 = vld [vmem:[%s3 + $0x190] sm:$0xff]
  %v290 = vld [vmem:[%s3 + $0x198] sm:$0xff]
  %v291 = vld [vmem:[%s3 + $0x1a0] sm:$0xff]
  %v292 = vld [vmem:[%s3 + $0x1a8] sm:$0xff]
  %v293 = vld [vmem:[%s3 + $0x1b0] sm:$0xff]
  %v294 = vld [vmem:[%s3 + $0x1b8] sm:$0xff]
  %v295 = vld [vmem:[%s3 + $0x1c0] sm:$0xff]
  %v296 = vld [vmem:[%s3 + $0x1c8] sm:$0xff]
  %v297 = vld [vmem:[%s3 + $0x1d0] sm:$0xff]
  %v298 = vld [vmem:[%s3 + $0x1d8] sm:$0xff]
  %v299 = vld [vmem:[%s3 + $0x1e0] sm:$0xff]
  %v300 = vld [vmem:[%s3 + $0x1e8] sm:$0xff]
  %v301 = vld [vmem:[%s3 + $0x1f0] sm:$0xff]
  %v302 = vld [vmem:[%s3 + $0x1f8] sm:$0xff]
  %v303 = vld [vmem:[%s3 + $0x200] sm:$0xff]
  %v304 = vld [vmem:[%s3 + $0x208] sm:$0xff]
  %v305 = vld [vmem:[%s3 + $0x210] sm:$0xff]
  %v306 = vld [vmem:[%s3 + $0x218] sm:$0xff]
  %v307 = vld [vmem:[%s3 + $0x220] sm:$0xff]
  %v308 = vld [vmem:[%s3 + $0x228] sm:$0xff]
  %v309 = vld [vmem:[%s3 + $0x230] sm:$0xff]
  %v310 = vld [vmem:[%s3 + $0x238] sm:$0xff]
  %v311 = vld [vmem:[%s3 + $0x240] sm:$0xff]
  %v312 = vld [vmem:[%s3 + $0x248] sm:$0xff]
  %v313 = vld [vmem:[%s3 + $0x250] sm:$0xff]
  %v314 = vld [vmem:[%s3 + $0x258] sm:$0xff]
  %v315 = vld [vmem:[%s3 + $0x260] sm:$0xff]
  %v316 = vld [vmem:[%s3 + $0x268] sm:$0xff]
  %v317 = vld [vmem:[%s3 + $0x270] sm:$0xff]
  %v318 = vld [vmem:[%s3 + $0x278] sm:$0xff]
  %v319 = vld [vmem:[%s3 + $0x280] sm:$0xff]
  %v320 = vld [vmem:[%s3 + $0x288] sm:$0xff]
  %v321 = vld [vmem:[%s3 + $0x290] sm:$0xff]
  %v322 = vld [vmem:[%s3 + $0x298] sm:$0xff]
  %v323 = vld [vmem:[%s3 + $0x2a0] sm:$0xff]
  %v324 = vld [vmem:[%s3 + $0x2a8] sm:$0xff]
  %v325 = vld [vmem:[%s3 + $0x2b0] sm:$0xff]
  %v326 = vld [vmem:[%s3 + $0x2b8] sm:$0xff]
  %v327 = vld [vmem:[%s3 + $0x2c0] sm:$0xff]
  %v328 = vld [vmem:[%s3 + $0x2c8] sm:$0xff]
  %v329 = vld [vmem:[%s3 + $0x2d0] sm:$0xff]
  %v330 = vld [vmem:[%s3 + $0x2d8] sm:$0xff]
  %v331 = vld [vmem:[%s3 + $0x2e0] sm:$0xff]
  %v332 = vld [vmem:[%s3 + $0x2e8] sm:$0xff]
  %v333 = vld [vmem:[%s3 + $0x2f0] sm:$0xff]
  %v334 = vld [vmem:[%s3 + $0x2f8] sm:$0xff]
  %v335 = vld [vmem:[%s3 + $0x300] sm:$0xff]
  %v336 = vld [vmem:[%s3 + $0x308] sm:$0xff]
  %v337 = vld [vmem:[%s3 + $0x310] sm:$0xff]
  %v338 = vld [vmem:[%s3 + $0x318] sm:$0xff]
  %v339 = vld [vmem:[%s3 + $0x320] sm:$0xff]
  %v340 = vld [vmem:[%s3 + $0x328] sm:$0xff]
  %v341 = vld [vmem:[%s3 + $0x330] sm:$0xff]
  %v342 = vld [vmem:[%s3 + $0x338] sm:$0xff]
  %v343 = vld [vmem:[%s3 + $0x340] sm:$0xff]
  %v344 = vld [vmem:[%s3 + $0x348] sm:$0xff]
  %v345 = vld [vmem:[%s3 + $0x350] sm:$0xff]
  %v346 = vld [vmem:[%s3 + $0x358] sm:$0xff]
  %v347 = vld [vmem:[%s3 + $0x360] sm:$0xff]
  %v348 = vld [vmem:[%s3 + $0x368] sm:$0xff]
  %v349 = vld [vmem:[%s3 + $0x370] sm:$0xff]
  %v350 = vld [vmem:[%s3 + $0x378] sm:$0xff]
  %v351 = vld [vmem:[%s3 + $0x380] sm:$0xff]
  %v352 = vld [vmem:[%s3 + $0x388] sm:$0xff]
  %v353 = vld [vmem:[%s3 + $0x390] sm:$0xff]
  %v354 = vld [vmem:[%s3 + $0x398] sm:$0xff]
  %v355 = vld [vmem:[%s3 + $0x3a0] sm:$0xff]
  %v356 = vld [vmem:[%s3 + $0x3a8] sm:$0xff]
  %v357 = vld [vmem:[%s3 + $0x3b0] sm:$0xff]
  %v358 = vld [vmem:[%s3 + $0x3b8] sm:$0xff]
  %v359 = vld [vmem:[%s3 + $0x3c0] sm:$0xff]
  %v360 = vld [vmem:[%s3 + $0x3c8] sm:$0xff]
  %v361 = vld [vmem:[%s3 + $0x3d0] sm:$0xff]
  %v362 = vld [vmem:[%s3 + $0x3d8] sm:$0xff]
  %v363 = vld [vmem:[%s3 + $0x3e0] sm:$0xff]
  %v364 = vld [vmem:[%s3 + $0x3e8] sm:$0xff]
  %v365 = vld [vmem:[%s3 + $0x3f0] sm:$0xff]
  %v366 = vld [vmem:[%s3 + $0x3f8] sm:$0xff]
  %v367 = vld [vmem:[%s3 + $0x400] sm:$0xff]
  %v368 = vld [vmem:[%s3 + $0x408] sm:$0xff]
  %v369 = vld [vmem:[%s3 + $0x410] sm:$0xff]
  %v370 = vld [vmem:[%s3 + $0x418] sm:$0xff]
  %v371 = vld [vmem:[%s3 + $0x420] sm:$0xff]
  %v372 = vld [vmem:[%s3 + $0x428] sm:$0xff]
  %v373 = vld [vmem:[%s3 + $0x430] sm:$0xff]
  %v374 = vld [vmem:[%s3 + $0x438] sm:$0xff]
  %v375 = vld [vmem:[%s3 + $0x440] sm:$0xff]
  %v376 = vld [vmem:[%s3 + $0x448] sm:$0xff]
  %v377 = vld [vmem:[%s3 + $0x450] sm:$0xff]
  %v378 = vld [vmem:[%s3 + $0x458] sm:$0xff]
  %v379 = vld [vmem:[%s3 + $0x460] sm:$0xff]
  %v380 = vld [vmem:[%s3 + $0x468] sm:$0xff]
  %v381 = vld [vmem:[%s3 + $0x470] sm:$0xff]
  %v382 = vld [vmem:[%s3 + $0x478] sm:$0xff]
  %v383 = vld [vmem:[%s3 + $0x480] sm:$0xff]
  %v384 = vld [vmem:[%s3 + $0x488] sm:$0xff]
  %v385 = vld [vmem:[%s3 + $0x490] sm:$0xff]
  %v386 = vld [vmem:[%s3 + $0x498] sm:$0xff]
  %v387 = vld [vmem:[%s3 + $0x4a0] sm:$0xff]
  %v388 = vld [vmem:[%s3 + $0x4a8] sm:$0xff]
  %v389 = vld [vmem:[%s3 + $0x4b0] sm:$0xff]
  %v390 = vld [vmem:[%s3 + $0x4b8] sm:$0xff]
  %v391 = vld [vmem:[%s3 + $0x4c0] sm:$0xff]
  %v392 = vld [vmem:[%s3 + $0x4c8] sm:$0xff]
  %v393 = vld [vmem:[%s3 + $0x4d0] sm:$0xff]
  %v394 = vld [vmem:[%s3 + $0x4d8] sm:$0xff]
  %v395 = vld [vmem:[%s3 + $0x4e0] sm:$0xff]
  %v396 = vld [vmem:[%s3 + $0x4e8] sm:$0xff]
  %v397 = vld [vmem:[%s3 + $0x4f0] sm:$0xff]
  %v398 = vld [vmem:[%s3 + $0x4f8] sm:$0xff]
  %v399 = vld [vmem:[%s3 + $0x500] sm:$0xff]
  %v400 = vld [vmem:[%s3 + $0x508] sm:$0xff]
  %v401 = vld [vmem:[%s3 + $0x510] sm:$0xff]
  %v402 = vld [vmem:[%s3 + $0x518] sm:$0xff]
  %v403 = vld [vmem:[%s3 + $0x520] sm:$0xff]
  %v404 = vld [vmem:[%s3 + $0x528] sm:$0xff]
  %v405 = vld [vmem:[%s3 + $0x530] sm:$0xff]
  %v406 = vld [vmem:[%s3 + $0x538] sm:$0xff]
  %v407 = vld [vmem:[%s3 + $0x540] sm:$0xff]
  %v408 = vld [vmem:[%s3 + $0x548] sm:$0xff]
  %v409 = vld [vmem:[%s3 + $0x550] sm:$0xff]
  %v410 = vld [vmem:[%s3 + $0x558] sm:$0xff]
  %v411 = vld [vmem:[%s3 + $0x560] sm:$0xff]
  %v412 = vld [vmem:[%s3 + $0x568] sm:$0xff]
  %v413 = vld [vmem:[%s3 + $0x570] sm:$0xff]
  %v414 = vld [vmem:[%s3 + $0x578] sm:$0xff]
  %v415 = vld [vmem:[%s3 + $0x580] sm:$0xff]
  %v416 = vld [vmem:[%s3 + $0x588] sm:$0xff]
  %v417 = vld [vmem:[%s3 + $0x590] sm:$0xff]
  %v418 = vld [vmem:[%s3 + $0x598] sm:$0xff]
  %v419 = vld [vmem:[%s3 + $0x5a0] sm:$0xff]
  %v420 = vld [vmem:[%s3 + $0x5a8] sm:$0xff]
  %v421 = vld [vmem:[%s3 + $0x5b0] sm:$0xff]
  %v422 = vld [vmem:[%s3 + $0x5b8] sm:$0xff]
  %v423 = vld [vmem:[%s3 + $0x5c0] sm:$0xff]
  %v424 = vld [vmem:[%s3 + $0x5c8] sm:$0xff]
  %v425 = vld [vmem:[%s3 + $0x5d0] sm:$0xff]
  %v426 = vld [vmem:[%s3 + $0x5d8] sm:$0xff]
  %v427 = vld [vmem:[%s3 + $0x5e0] sm:$0xff]
  %v428 = vld [vmem:[%s3 + $0x5e8] sm:$0xff]
  %v429 = vld [vmem:[%s3 + $0x5f0] sm:$0xff]
  %v430 = vld [vmem:[%s3 + $0x5f8] sm:$0xff]
  %v431 = vld [vmem:[%s3 + $0x600] sm:$0xff]
  %v432 = vld [vmem:[%s3 + $0x608] sm:$0xff]
  %v433 = vld [vmem:[%s3 + $0x610] sm:$0xff]
  %v434 = vld [vmem:[%s3 + $0x618] sm:$0xff]
  %v436 = vperm.slane %v59, 0
  %v437 = vperm.slane %v59, 1
  %v438 = vperm.slane %v59, 2
  %v439 = vperm.slane %v59, 3
  %v640 = vunpack.c.l.b16 %v239
  %v641 = vunpack.c.h.b16 %v239
  %v642 = vunpack.c.l.b16 %v240
  %v643 = vunpack.c.h.b16 %v240
  %v644 = vunpack.c.l.b16 %v241
  %v645 = vunpack.c.h.b16 %v241
  %v646 = vunpack.c.l.b16 %v242
  %v647 = vunpack.c.h.b16 %v242
  %v648 = vunpack.c.l.b16 %v243
  %v649 = vunpack.c.h.b16 %v243
  %v650 = vunpack.c.l.b16 %v244
  %v651 = vunpack.c.h.b16 %v244
  %v652 = vunpack.c.l.b16 %v245
  %v653 = vunpack.c.h.b16 %v245
  %v654 = vunpack.c.l.b16 %v246
  %v655 = vunpack.c.h.b16 %v246
  %v656 = vunpack.c.l.b16 %v247
  %v657 = vunpack.c.h.b16 %v247
  %v658 = vunpack.c.l.b16 %v248
  %v659 = vunpack.c.h.b16 %v248
  %v660 = vunpack.c.l.b16 %v249
  %v661 = vunpack.c.h.b16 %v249
  %v662 = vunpack.c.l.b16 %v250
  %v663 = vunpack.c.h.b16 %v250
  %v664 = vunpack.c.l.b16 %v251
  %v665 = vunpack.c.h.b16 %v251
  %v666 = vunpack.c.l.b16 %v252
  %v667 = vunpack.c.h.b16 %v252
  %v668 = vunpack.c.l.b16 %v253
  %v669 = vunpack.c.h.b16 %v253
  %v670 = vunpack.c.l.b16 %v254
  %v671 = vunpack.c.h.b16 %v254
  %v672 = vunpack.c.l.b16 %v255
  %v673 = vunpack.c.h.b16 %v255
  %v674 = vunpack.c.l.b16 %v256
  %v675 = vunpack.c.h.b16 %v256
  %v676 = vunpack.c.l.b16 %v257
  %v677 = vunpack.c.h.b16 %v257
  %v678 = vunpack.c.l.b16 %v258
  %v679 = vunpack.c.h.b16 %v258
  %v680 = vunpack.c.l.b16 %v259
  %v681 = vunpack.c.h.b16 %v259
  %v682 = vunpack.c.l.b16 %v260
  %v683 = vunpack.c.h.b16 %v260
  %v684 = vunpack.c.l.b16 %v261
  %v685 = vunpack.c.h.b16 %v261
  %v686 = vunpack.c.l.b16 %v262
  %v687 = vunpack.c.h.b16 %v262
  %v688 = vunpack.c.l.b16 %v263
  %v689 = vunpack.c.h.b16 %v263
  %v690 = vunpack.c.l.b16 %v264
  %v691 = vunpack.c.h.b16 %v264
  %v692 = vunpack.c.l.b16 %v265
  %v693 = vunpack.c.h.b16 %v265
  %v694 = vunpack.c.l.b16 %v266
  %v695 = vunpack.c.h.b16 %v266
  %v696 = vunpack.c.l.b16 %v267
  %v697 = vunpack.c.h.b16 %v267
  %v698 = vunpack.c.l.b16 %v268
  %v699 = vunpack.c.h.b16 %v268
  %v700 = vunpack.c.l.b16 %v269
  %v701 = vunpack.c.h.b16 %v269
  %v702 = vunpack.c.l.b16 %v270
  %v703 = vunpack.c.h.b16 %v270
  %v704 = vunpack.c.l.b16 %v271
  %v705 = vunpack.c.h.b16 %v271
  %v706 = vunpack.c.l.b16 %v272
  %v707 = vunpack.c.h.b16 %v272
  %v708 = vunpack.c.l.b16 %v273
  %v709 = vunpack.c.h.b16 %v273
  %v710 = vunpack.c.l.b16 %v274
  %v711 = vunpack.c.h.b16 %v274
  %v712 = vunpack.c.l.b16 %v275
  %v713 = vunpack.c.h.b16 %v275
  %v714 = vunpack.c.l.b16 %v276
  %v715 = vunpack.c.h.b16 %v276
  %v716 = vunpack.c.l.b16 %v277
  %v717 = vunpack.c.h.b16 %v277
  %v718 = vunpack.c.l.b16 %v278
  %v719 = vunpack.c.h.b16 %v278
  %v720 = vunpack.c.l.b16 %v279
  %v721 = vunpack.c.h.b16 %v279
  %v722 = vunpack.c.l.b16 %v280
  %v723 = vunpack.c.h.b16 %v280
  %v724 = vunpack.c.l.b16 %v281
  %v725 = vunpack.c.h.b16 %v281
  %v726 = vunpack.c.l.b16 %v282
  %v727 = vunpack.c.h.b16 %v282
  %v728 = vunpack.c.l.b16 %v283
  %v729 = vunpack.c.h.b16 %v283
  %v730 = vunpack.c.l.b16 %v284
  %v731 = vunpack.c.h.b16 %v284
  %v732 = vunpack.c.l.b16 %v285
  %v733 = vunpack.c.h.b16 %v285
  %v734 = vunpack.c.l.b16 %v286
  %v735 = vunpack.c.h.b16 %v286
  %v736 = vunpack.c.l.b16 %v287
  %v737 = vunpack.c.h.b16 %v287
  %v738 = vunpack.c.l.b16 %v288
  %v739 = vunpack.c.h.b16 %v288
  %v740 = vunpack.c.l.b16 %v289
  %v741 = vunpack.c.h.b16 %v289
  %v742 = vunpack.c.l.b16 %v290
  %v743 = vunpack.c.h.b16 %v290
  %v744 = vunpack.c.l.b16 %v291
  %v745 = vunpack.c.h.b16 %v291
  %v746 = vunpack.c.l.b16 %v292
  %v747 = vunpack.c.h.b16 %v292
  %v748 = vunpack.c.l.b16 %v293
  %v749 = vunpack.c.h.b16 %v293
  %v750 = vunpack.c.l.b16 %v294
  %v751 = vunpack.c.h.b16 %v294
  %v752 = vunpack.c.l.b16 %v295
  %v753 = vunpack.c.h.b16 %v295
  %v754 = vunpack.c.l.b16 %v296
  %v755 = vunpack.c.h.b16 %v296
  %v756 = vunpack.c.l.b16 %v297
  %v757 = vunpack.c.h.b16 %v297
  %v758 = vunpack.c.l.b16 %v298
  %v759 = vunpack.c.h.b16 %v298
  %v760 = vunpack.c.l.b16 %v299
  %v761 = vunpack.c.h.b16 %v299
  %v762 = vunpack.c.l.b16 %v300
  %v763 = vunpack.c.h.b16 %v300
  %v764 = vunpack.c.l.b16 %v301
  %v765 = vunpack.c.h.b16 %v301
  %v766 = vunpack.c.l.b16 %v302
  %v767 = vunpack.c.h.b16 %v302
  %v768 = vunpack.c.l.b16 %v303
  %v769 = vunpack.c.h.b16 %v303
  %v770 = vunpack.c.l.b16 %v304
  %v771 = vunpack.c.h.b16 %v304
  %v772 = vunpack.c.l.b16 %v305
  %v773 = vunpack.c.h.b16 %v305
  %v774 = vunpack.c.l.b16 %v306
  %v775 = vunpack.c.h.b16 %v306
  %v776 = vunpack.c.l.b16 %v307
  %v777 = vunpack.c.h.b16 %v307
  %v778 = vunpack.c.l.b16 %v308
  %v779 = vunpack.c.h.b16 %v308
  %v780 = vunpack.c.l.b16 %v309
  %v781 = vunpack.c.h.b16 %v309
  %v782 = vunpack.c.l.b16 %v310
  %v783 = vunpack.c.h.b16 %v310
  %v784 = vunpack.c.l.b16 %v311
  %v785 = vunpack.c.h.b16 %v311
  %v786 = vunpack.c.l.b16 %v312
  %v787 = vunpack.c.h.b16 %v312
  %v788 = vunpack.c.l.b16 %v313
  %v789 = vunpack.c.h.b16 %v313
  %v790 = vunpack.c.l.b16 %v314
  %v791 = vunpack.c.h.b16 %v314
  %v792 = vunpack.c.l.b16 %v315
  %v793 = vunpack.c.h.b16 %v315
  %v794 = vunpack.c.l.b16 %v316
  %v795 = vunpack.c.h.b16 %v316
  %v796 = vunpack.c.l.b16 %v317
  %v797 = vunpack.c.h.b16 %v317
  %v798 = vunpack.c.l.b16 %v318
  %v799 = vunpack.c.h.b16 %v318
  %v800 = vunpack.c.l.b16 %v319
  %v801 = vunpack.c.h.b16 %v319
  %v802 = vunpack.c.l.b16 %v320
  %v803 = vunpack.c.h.b16 %v320
  %v804 = vunpack.c.l.b16 %v321
  %v805 = vunpack.c.h.b16 %v321
  %v806 = vunpack.c.l.b16 %v322
  %v807 = vunpack.c.h.b16 %v322
  %v808 = vunpack.c.l.b16 %v323
  %v809 = vunpack.c.h.b16 %v323
  %v810 = vunpack.c.l.b16 %v324
  %v811 = vunpack.c.h.b16 %v324
  %v812 = vunpack.c.l.b16 %v325
  %v813 = vunpack.c.h.b16 %v325
  %v814 = vunpack.c.l.b16 %v326
  %v815 = vunpack.c.h.b16 %v326
  %v816 = vunpack.c.l.b16 %v327
  %v817 = vunpack.c.h.b16 %v327
  %v818 = vunpack.c.l.b16 %v328
  %v819 = vunpack.c.h.b16 %v328
  %v820 = vunpack.c.l.b16 %v329
  %v821 = vunpack.c.h.b16 %v329
  %v822 = vunpack.c.l.b16 %v330
  %v823 = vunpack.c.h.b16 %v330
  %v824 = vunpack.c.l.b16 %v331
  %v825 = vunpack.c.h.b16 %v331
  %v826 = vunpack.c.l.b16 %v332
  %v827 = vunpack.c.h.b16 %v332
  %v828 = vunpack.c.l.b16 %v333
  %v829 = vunpack.c.h.b16 %v333
  %v830 = vunpack.c.l.b16 %v334
  %v831 = vunpack.c.h.b16 %v334
  %v832 = vunpack.c.l.b16 %v335
  %v833 = vunpack.c.h.b16 %v335
  %v834 = vunpack.c.l.b16 %v336
  %v835 = vunpack.c.h.b16 %v336
  %v836 = vunpack.c.l.b16 %v337
  %v837 = vunpack.c.h.b16 %v337
  %v838 = vunpack.c.l.b16 %v338
  %v839 = vunpack.c.h.b16 %v338
  %v840 = vunpack.c.l.b16 %v339
  %v841 = vunpack.c.h.b16 %v339
  %v842 = vunpack.c.l.b16 %v340
  %v843 = vunpack.c.h.b16 %v340
  %v844 = vunpack.c.l.b16 %v341
  %v845 = vunpack.c.h.b16 %v341
  %v846 = vunpack.c.l.b16 %v342
  %v847 = vunpack.c.h.b16 %v342
  %v848 = vunpack.c.l.b16 %v343
  %v849 = vunpack.c.h.b16 %v343
  %v850 = vunpack.c.l.b16 %v344
  %v851 = vunpack.c.h.b16 %v344
  %v852 = vunpack.c.l.b16 %v345
  %v853 = vunpack.c.h.b16 %v345
  %v854 = vunpack.c.l.b16 %v346
  %v855 = vunpack.c.h.b16 %v346
  %v856 = vunpack.c.l.b16 %v347
  %v857 = vunpack.c.h.b16 %v347
  %v858 = vunpack.c.l.b16 %v348
  %v859 = vunpack.c.h.b16 %v348
  %v860 = vunpack.c.l.b16 %v349
  %v861 = vunpack.c.h.b16 %v349
  %v862 = vunpack.c.l.b16 %v350
  %v863 = vunpack.c.h.b16 %v350
  %v864 = vunpack.c.l.b16 %v351
  %v865 = vunpack.c.h.b16 %v351
  %v866 = vunpack.c.l.b16 %v352
  %v867 = vunpack.c.h.b16 %v352
  %v868 = vunpack.c.l.b16 %v353
  %v869 = vunpack.c.h.b16 %v353
  %v870 = vunpack.c.l.b16 %v354
  %v871 = vunpack.c.h.b16 %v354
  %v872 = vunpack.c.l.b16 %v355
  %v873 = vunpack.c.h.b16 %v355
  %v874 = vunpack.c.l.b16 %v356
  %v875 = vunpack.c.h.b16 %v356
  %v876 = vunpack.c.l.b16 %v357
  %v877 = vunpack.c.h.b16 %v357
  %v878 = vunpack.c.l.b16 %v358
  %v879 = vunpack.c.h.b16 %v358
  %v880 = vunpack.c.l.b16 %v359
  %v881 = vunpack.c.h.b16 %v359
  %v882 = vunpack.c.l.b16 %v360
  %v883 = vunpack.c.h.b16 %v360
  %v884 = vunpack.c.l.b16 %v361
  %v885 = vunpack.c.h.b16 %v361
  %v886 = vunpack.c.l.b16 %v362
  %v887 = vunpack.c.h.b16 %v362
  %v888 = vunpack.c.l.b16 %v363
  %v889 = vunpack.c.h.b16 %v363
  %v890 = vunpack.c.l.b16 %v364
  %v891 = vunpack.c.h.b16 %v364
  %v892 = vunpack.c.l.b16 %v365
  %v893 = vunpack.c.h.b16 %v365
  %v894 = vunpack.c.l.b16 %v366
  %v895 = vunpack.c.h.b16 %v366
  %v896 = vunpack.c.l.b16 %v367
  %v897 = vunpack.c.h.b16 %v367
  %v898 = vunpack.c.l.b16 %v368
  %v899 = vunpack.c.h.b16 %v368
  %v900 = vunpack.c.l.b16 %v369
  %v901 = vunpack.c.h.b16 %v369
  %v902 = vunpack.c.l.b16 %v370
  %v903 = vunpack.c.h.b16 %v370
  %v904 = vunpack.c.l.b16 %v371
  %v905 = vunpack.c.h.b16 %v371
  %v906 = vunpack.c.l.b16 %v372
  %v907 = vunpack.c.h.b16 %v372
  %v908 = vunpack.c.l.b16 %v373
  %v909 = vunpack.c.h.b16 %v373
  %v910 = vunpack.c.l.b16 %v374
  %v911 = vunpack.c.h.b16 %v374
  %v912 = vunpack.c.l.b16 %v375
  %v913 = vunpack.c.h.b16 %v375
  %v914 = vunpack.c.l.b16 %v376
  %v915 = vunpack.c.h.b16 %v376
  %v916 = vunpack.c.l.b16 %v377
  %v917 = vunpack.c.h.b16 %v377
  %v918 = vunpack.c.l.b16 %v378
  %v919 = vunpack.c.h.b16 %v378
  %v920 = vunpack.c.l.b16 %v379
  %v921 = vunpack.c.h.b16 %v379
  %v922 = vunpack.c.l.b16 %v380
  %v923 = vunpack.c.h.b16 %v380
  %v924 = vunpack.c.l.b16 %v381
  %v925 = vunpack.c.h.b16 %v381
  %v926 = vunpack.c.l.b16 %v382
  %v927 = vunpack.c.h.b16 %v382
  %v928 = vunpack.c.l.b16 %v383
  %v929 = vunpack.c.h.b16 %v383
  %v930 = vunpack.c.l.b16 %v384
  %v931 = vunpack.c.h.b16 %v384
  %v932 = vunpack.c.l.b16 %v385
  %v933 = vunpack.c.h.b16 %v385
  %v934 = vunpack.c.l.b16 %v386
  %v935 = vunpack.c.h.b16 %v386
  %v936 = vunpack.c.l.b16 %v387
  %v937 = vunpack.c.h.b16 %v387
  %v938 = vunpack.c.l.b16 %v388
  %v939 = vunpack.c.h.b16 %v388
  %v940 = vunpack.c.l.b16 %v389
  %v941 = vunpack.c.h.b16 %v389
  %v942 = vunpack.c.l.b16 %v390
  %v943 = vunpack.c.h.b16 %v390
  %v944 = vunpack.c.l.b16 %v391
  %v945 = vunpack.c.h.b16 %v391
  %v946 = vunpack.c.l.b16 %v392
  %v947 = vunpack.c.h.b16 %v392
  %v948 = vunpack.c.l.b16 %v393
  %v949 = vunpack.c.h.b16 %v393
  %v950 = vunpack.c.l.b16 %v394
  %v951 = vunpack.c.h.b16 %v394
  %v952 = vunpack.c.l.b16 %v395
  %v953 = vunpack.c.h.b16 %v395
  %v954 = vunpack.c.l.b16 %v396
  %v955 = vunpack.c.h.b16 %v396
  %v956 = vunpack.c.l.b16 %v397
  %v957 = vunpack.c.h.b16 %v397
  %v958 = vunpack.c.l.b16 %v398
  %v959 = vunpack.c.h.b16 %v398
  %v960 = vunpack.c.l.b16 %v399
  %v961 = vunpack.c.h.b16 %v399
  %v962 = vunpack.c.l.b16 %v400
  %v963 = vunpack.c.h.b16 %v400
  %v964 = vunpack.c.l.b16 %v401
  %v965 = vunpack.c.h.b16 %v401
  %v966 = vunpack.c.l.b16 %v402
  %v967 = vunpack.c.h.b16 %v402
  %v968 = vunpack.c.l.b16 %v403
  %v969 = vunpack.c.h.b16 %v403
  %v970 = vunpack.c.l.b16 %v404
  %v971 = vunpack.c.h.b16 %v404
  %v972 = vunpack.c.l.b16 %v405
  %v973 = vunpack.c.h.b16 %v405
  %v974 = vunpack.c.l.b16 %v406
  %v975 = vunpack.c.h.b16 %v406
  %v976 = vunpack.c.l.b16 %v407
  %v977 = vunpack.c.h.b16 %v407
  %v978 = vunpack.c.l.b16 %v408
  %v979 = vunpack.c.h.b16 %v408
  %v980 = vunpack.c.l.b16 %v409
  %v981 = vunpack.c.h.b16 %v409
  %v982 = vunpack.c.l.b16 %v410
  %v983 = vunpack.c.h.b16 %v410
  %v984 = vunpack.c.l.b16 %v411
  %v985 = vunpack.c.h.b16 %v411
  %v986 = vunpack.c.l.b16 %v412
  %v987 = vunpack.c.h.b16 %v412
  %v988 = vunpack.c.l.b16 %v413
  %v989 = vunpack.c.h.b16 %v413
  %v990 = vunpack.c.l.b16 %v414
  %v991 = vunpack.c.h.b16 %v414
  %v992 = vunpack.c.l.b16 %v415
  %v993 = vunpack.c.h.b16 %v415
  %v994 = vunpack.c.l.b16 %v416
  %v995 = vunpack.c.h.b16 %v416
  %v996 = vunpack.c.l.b16 %v417
  %v997 = vunpack.c.h.b16 %v417
  %v998 = vunpack.c.l.b16 %v418
  %v999 = vunpack.c.h.b16 %v418
  %v1000 = vunpack.c.l.b16 %v419
  %v1001 = vunpack.c.h.b16 %v419
  %v1002 = vunpack.c.l.b16 %v420
  %v1003 = vunpack.c.h.b16 %v420
  %v1004 = vunpack.c.l.b16 %v421
  %v1005 = vunpack.c.h.b16 %v421
  %v1006 = vunpack.c.l.b16 %v422
  %v1007 = vunpack.c.h.b16 %v422
  %v1008 = vunpack.c.l.b16 %v423
  %v1009 = vunpack.c.h.b16 %v423
  %v1010 = vunpack.c.l.b16 %v424
  %v1011 = vunpack.c.h.b16 %v424
  %v1012 = vunpack.c.l.b16 %v425
  %v1013 = vunpack.c.h.b16 %v425
  %v1014 = vunpack.c.l.b16 %v426
  %v1015 = vunpack.c.h.b16 %v426
  %v1016 = vunpack.c.l.b16 %v427
  %v1017 = vunpack.c.h.b16 %v427
  %v1018 = vunpack.c.l.b16 %v428
  %v1019 = vunpack.c.h.b16 %v428
  %v1020 = vunpack.c.l.b16 %v429
  %v1021 = vunpack.c.h.b16 %v429
  %v1022 = vunpack.c.l.b16 %v430
  %v1023 = vunpack.c.h.b16 %v430
  %v1024 = vunpack.c.l.b16 %v431
  %v1025 = vunpack.c.h.b16 %v431
  %v1026 = vunpack.c.l.b16 %v432
  %v1027 = vunpack.c.h.b16 %v432
  %v1028 = vunpack.c.l.b16 %v433
  %v1029 = vunpack.c.h.b16 %v433
  %v1030 = vunpack.c.l.b16 %v434
  %v1031 = vunpack.c.h.b16 %v434
  %v1032 = vpack.c.b16 %v644, %v640
  %v1033 = vpack.c.b16 %v645, %v641
  %v1034 = vpack.c.b16 %v646, %v642
  %v1035 = vpack.c.b16 %v647, %v643
  %v1036 = vpack.c.b16 %v652, %v648
  %v1037 = vpack.c.b16 %v653, %v649
  %v1038 = vpack.c.b16 %v654, %v650
  %v1039 = vpack.c.b16 %v655, %v651
  %v1040 = vpack.c.b16 %v660, %v656
  %v1041 = vpack.c.b16 %v661, %v657
  %v1042 = vpack.c.b16 %v662, %v658
  %v1043 = vpack.c.b16 %v663, %v659
  %v1044 = vpack.c.b16 %v668, %v664
  %v1045 = vpack.c.b16 %v669, %v665
  %v1046 = vpack.c.b16 %v670, %v666
  %v1047 = vpack.c.b16 %v671, %v667
  %v1048 = vpack.c.b16 %v676, %v672
  %v1049 = vpack.c.b16 %v677, %v673
  %v1050 = vpack.c.b16 %v678, %v674
  %v1051 = vpack.c.b16 %v679, %v675
  %v1052 = vpack.c.b16 %v684, %v680
  %v1053 = vpack.c.b16 %v685, %v681
  %v1054 = vpack.c.b16 %v686, %v682
  %v1055 = vpack.c.b16 %v687, %v683
  %v1056 = vpack.c.b16 %v692, %v688
  %v1057 = vpack.c.b16 %v693, %v689
  %v1058 = vpack.c.b16 %v694, %v690
  %v1059 = vpack.c.b16 %v695, %v691
  %v1060 = vpack.c.b16 %v700, %v696
  %v1061 = vpack.c.b16 %v701, %v697
  %v1062 = vpack.c.b16 %v702, %v698
  %v1063 = vpack.c.b16 %v703, %v699
  %v1064 = vpack.c.b16 %v708, %v704
  %v1065 = vpack.c.b16 %v709, %v705
  %v1066 = vpack.c.b16 %v710, %v706
  %v1067 = vpack.c.b16 %v711, %v707
  %v1068 = vpack.c.b16 %v716, %v712
  %v1069 = vpack.c.b16 %v717, %v713
  %v1070 = vpack.c.b16 %v718, %v714
  %v1071 = vpack.c.b16 %v719, %v715
  %v1072 = vpack.c.b16 %v724, %v720
  %v1073 = vpack.c.b16 %v725, %v721
  %v1074 = vpack.c.b16 %v726, %v722
  %v1075 = vpack.c.b16 %v727, %v723
  %v1076 = vpack.c.b16 %v732, %v728
  %v1077 = vpack.c.b16 %v733, %v729
  %v1078 = vpack.c.b16 %v734, %v730
  %v1079 = vpack.c.b16 %v735, %v731
  %v1080 = vpack.c.b16 %v740, %v736
  %v1081 = vpack.c.b16 %v741, %v737
  %v1082 = vpack.c.b16 %v742, %v738
  %v1083 = vpack.c.b16 %v743, %v739
  %v1084 = vpack.c.b16 %v748, %v744
  %v1085 = vpack.c.b16 %v749, %v745
  %v1086 = vpack.c.b16 %v750, %v746
  %v1087 = vpack.c.b16 %v751, %v747
  %v1088 = vpack.c.b16 %v756, %v752
  %v1089 = vpack.c.b16 %v757, %v753
  %v1090 = vpack.c.b16 %v758, %v754
  %v1091 = vpack.c.b16 %v759, %v755
  %v1092 = vpack.c.b16 %v764, %v760
  %v1093 = vpack.c.b16 %v765, %v761
  %v1094 = vpack.c.b16 %v766, %v762
  %v1095 = vpack.c.b16 %v767, %v763
  %v1096 = vpack.c.b16 %v772, %v768
  %v1097 = vpack.c.b16 %v773, %v769
  %v1098 = vpack.c.b16 %v774, %v770
  %v1099 = vpack.c.b16 %v775, %v771
  %v1100 = vpack.c.b16 %v780, %v776
  %v1101 = vpack.c.b16 %v781, %v777
  %v1102 = vpack.c.b16 %v782, %v778
  %v1103 = vpack.c.b16 %v783, %v779
  %v1104 = vpack.c.b16 %v788, %v784
  %v1105 = vpack.c.b16 %v789, %v785
  %v1106 = vpack.c.b16 %v790, %v786
  %v1107 = vpack.c.b16 %v791, %v787
  %v1108 = vpack.c.b16 %v796, %v792
  %v1109 = vpack.c.b16 %v797, %v793
  %v1110 = vpack.c.b16 %v798, %v794
  %v1111 = vpack.c.b16 %v799, %v795
  %v1112 = vpack.c.b16 %v804, %v800
  %v1113 = vpack.c.b16 %v805, %v801
  %v1114 = vpack.c.b16 %v806, %v802
  %v1115 = vpack.c.b16 %v807, %v803
  %v1116 = vpack.c.b16 %v812, %v808
  %v1117 = vpack.c.b16 %v813, %v809
  %v1118 = vpack.c.b16 %v814, %v810
  %v1119 = vpack.c.b16 %v815, %v811
  %v1120 = vpack.c.b16 %v820, %v816
  %v1121 = vpack.c.b16 %v821, %v817
  %v1122 = vpack.c.b16 %v822, %v818
  %v1123 = vpack.c.b16 %v823, %v819
  %v1124 = vpack.c.b16 %v828, %v824
  %v1125 = vpack.c.b16 %v829, %v825
  %v1126 = vpack.c.b16 %v830, %v826
  %v1127 = vpack.c.b16 %v831, %v827
  %v1128 = vpack.c.b16 %v836, %v832
  %v1129 = vpack.c.b16 %v837, %v833
  %v1130 = vpack.c.b16 %v838, %v834
  %v1131 = vpack.c.b16 %v839, %v835
  %v1132 = vpack.c.b16 %v844, %v840
  %v1133 = vpack.c.b16 %v845, %v841
  %v1134 = vpack.c.b16 %v846, %v842
  %v1135 = vpack.c.b16 %v847, %v843
  %v1136 = vpack.c.b16 %v852, %v848
  %v1137 = vpack.c.b16 %v853, %v849
  %v1138 = vpack.c.b16 %v854, %v850
  %v1139 = vpack.c.b16 %v855, %v851
  %v1140 = vpack.c.b16 %v860, %v856
  %v1141 = vpack.c.b16 %v861, %v857
  %v1142 = vpack.c.b16 %v862, %v858
  %v1143 = vpack.c.b16 %v863, %v859
  %v1144 = vpack.c.b16 %v868, %v864
  %v1145 = vpack.c.b16 %v869, %v865
  %v1146 = vpack.c.b16 %v870, %v866
  %v1147 = vpack.c.b16 %v871, %v867
  %v1148 = vpack.c.b16 %v876, %v872
  %v1149 = vpack.c.b16 %v877, %v873
  %v1150 = vpack.c.b16 %v878, %v874
  %v1151 = vpack.c.b16 %v879, %v875
  %v1152 = vpack.c.b16 %v884, %v880
  %v1153 = vpack.c.b16 %v885, %v881
  %v1154 = vpack.c.b16 %v886, %v882
  %v1155 = vpack.c.b16 %v887, %v883
  %v1156 = vpack.c.b16 %v892, %v888
  %v1157 = vpack.c.b16 %v893, %v889
  %v1158 = vpack.c.b16 %v894, %v890
  %v1159 = vpack.c.b16 %v895, %v891
  %v1160 = vpack.c.b16 %v900, %v896
  %v1161 = vpack.c.b16 %v901, %v897
  %v1162 = vpack.c.b16 %v902, %v898
  %v1163 = vpack.c.b16 %v903, %v899
  %v1164 = vpack.c.b16 %v908, %v904
  %v1165 = vpack.c.b16 %v909, %v905
  %v1166 = vpack.c.b16 %v910, %v906
  %v1167 = vpack.c.b16 %v911, %v907
  %v1168 = vpack.c.b16 %v916, %v912
  %v1169 = vpack.c.b16 %v917, %v913
  %v1170 = vpack.c.b16 %v918, %v914
  %v1171 = vpack.c.b16 %v919, %v915
  %v1172 = vpack.c.b16 %v924, %v920
  %v1173 = vpack.c.b16 %v925, %v921
  %v1174 = vpack.c.b16 %v926, %v922
  %v1175 = vpack.c.b16 %v927, %v923
  %v1176 = vpack.c.b16 %v932, %v928
  %v1177 = vpack.c.b16 %v933, %v929
  %v1178 = vpack.c.b16 %v934, %v930
  %v1179 = vpack.c.b16 %v935, %v931
  %v1180 = vpack.c.b16 %v940, %v936
  %v1181 = vpack.c.b16 %v941, %v937
  %v1182 = vpack.c.b16 %v942, %v938
  %v1183 = vpack.c.b16 %v943, %v939
  %v1184 = vpack.c.b16 %v948, %v944
  %v1185 = vpack.c.b16 %v949, %v945
  %v1186 = vpack.c.b16 %v950, %v946
  %v1187 = vpack.c.b16 %v951, %v947
  %v1188 = vpack.c.b16 %v956, %v952
  %v1189 = vpack.c.b16 %v957, %v953
  %v1190 = vpack.c.b16 %v958, %v954
  %v1191 = vpack.c.b16 %v959, %v955
  %v1192 = vpack.c.b16 %v964, %v960
  %v1193 = vpack.c.b16 %v965, %v961
  %v1194 = vpack.c.b16 %v966, %v962
  %v1195 = vpack.c.b16 %v967, %v963
  %v1196 = vpack.c.b16 %v972, %v968
  %v1197 = vpack.c.b16 %v973, %v969
  %v1198 = vpack.c.b16 %v974, %v970
  %v1199 = vpack.c.b16 %v975, %v971
  %v1200 = vpack.c.b16 %v980, %v976
  %v1201 = vpack.c.b16 %v981, %v977
  %v1202 = vpack.c.b16 %v982, %v978
  %v1203 = vpack.c.b16 %v983, %v979
  %v1204 = vpack.c.b16 %v988, %v984
  %v1205 = vpack.c.b16 %v989, %v985
  %v1206 = vpack.c.b16 %v990, %v986
  %v1207 = vpack.c.b16 %v991, %v987
  %v1208 = vpack.c.b16 %v996, %v992
  %v1209 = vpack.c.b16 %v997, %v993
  %v1210 = vpack.c.b16 %v998, %v994
  %v1211 = vpack.c.b16 %v999, %v995
  %v1212 = vpack.c.b16 %v1004, %v1000
  %v1213 = vpack.c.b16 %v1005, %v1001
  %v1214 = vpack.c.b16 %v1006, %v1002
  %v1215 = vpack.c.b16 %v1007, %v1003
  %v1216 = vpack.c.b16 %v1012, %v1008
  %v1217 = vpack.c.b16 %v1013, %v1009
  %v1218 = vpack.c.b16 %v1014, %v1010
  %v1219 = vpack.c.b16 %v1015, %v1011
  %v1220 = vpack.c.b16 %v1020, %v1016
  %v1221 = vpack.c.b16 %v1021, %v1017
  %v1222 = vpack.c.b16 %v1022, %v1018
  %v1223 = vpack.c.b16 %v1023, %v1019
  %v1224 = vpack.c.b16 %v1028, %v1024
  %v1225 = vpack.c.b16 %v1029, %v1025
  %v1226 = vpack.c.b16 %v1030, %v1026
  %v1227 = vpack.c.b16 %v1031, %v1027
  %vm1424 = vcmask 130048
  %v1426 = vsel %vm1424, %v217, 0
  %v1429 = vsel %vm1424, %v224, 0
  %v1432 = vsel %vm1424, %v231, 0
  %v1435 = vsel %vm1424, %v238, 0
  %1437 = vmatpush.bf16.msra.mxu0 %v1060
  %1438 = vmatpush.bf16.msra.mxu0 %v1056
  %1439 = vmatpush.bf16.msra.mxu0 %v1052
  %1440 = vmatpush.bf16.msra.mxu0 %v1048
  %1441 = vmatpush.bf16.msra.mxu0 %v1044
  %1442 = vmatpush.bf16.msra.mxu0 %v1040
  %1443 = vmatpush.bf16.msra.mxu0 %v1036
  %1444 = vmatpush.bf16.msra.mxu0 %v1032
  %1445 = vmatmul.bf16.gmra.mxu0 %v211
  %v1446 = vpop.f32.mrf.mxu0
  %v1447 = vadd.f32 %v436, %v1446
  %v1448 = vpop.f32.mrf.mxu0
  %v1449 = vadd.f32 %v436, %v1448
  %1450 = vmatmul.bf16.gmra.mxu0 %v218
  %v1451 = vpop.f32.mrf.mxu0
  %v1452 = vadd.f32 %v436, %v1451
  %v1453 = vpop.f32.mrf.mxu0
  %v1454 = vadd.f32 %v436, %v1453
  %1455 = vmatmul.bf16.gmra.mxu0 %v225
  %v1456 = vpop.f32.mrf.mxu0
  %v1457 = vadd.f32 %v436, %v1456
  %v1458 = vpop.f32.mrf.mxu0
  %v1459 = vadd.f32 %v436, %v1458
  %1460 = vmatmul.bf16.gmra.mxu0 %v232
  %v1461 = vpop.f32.mrf.mxu0
  %v1462 = vadd.f32 %v436, %v1461
  %v1463 = vpop.f32.mrf.mxu0
  %v1464 = vadd.f32 %v436, %v1463
  %1465 = vdwg.mxu0
  %1466 = vmatpush.bf16.msra.mxu0 %v1092
  %1467 = vmatpush.bf16.msra.mxu0 %v1088
  %1468 = vmatpush.bf16.msra.mxu0 %v1084
  %1469 = vmatpush.bf16.msra.mxu0 %v1080
  %1470 = vmatpush.bf16.msra.mxu0 %v1076
  %1471 = vmatpush.bf16.msra.mxu0 %v1072
  %1472 = vmatpush.bf16.msra.mxu0 %v1068
  %1473 = vmatpush.bf16.msra.mxu0 %v1064
  %1474 = vmatmul.bf16.gmra.mxu0 %v212
  %v1475 = vpop.f32.mrf.mxu0
  %v1476 = vadd.f32 %v1447, %v1475
  %v1477 = vpop.f32.mrf.mxu0
  %v1478 = vadd.f32 %v1449, %v1477
  %1479 = vmatmul.bf16.gmra.mxu0 %v219
  %v1480 = vpop.f32.mrf.mxu0
  %v1481 = vadd.f32 %v1452, %v1480
  %v1482 = vpop.f32.mrf.mxu0
  %v1483 = vadd.f32 %v1454, %v1482
  %1484 = vmatmul.bf16.gmra.mxu0 %v226
  %v1485 = vpop.f32.mrf.mxu0
  %v1486 = vadd.f32 %v1457, %v1485
  %v1487 = vpop.f32.mrf.mxu0
  %v1488 = vadd.f32 %v1459, %v1487
  %1489 = vmatmul.bf16.gmra.mxu0 %v233
  %v1490 = vpop.f32.mrf.mxu0
  %v1491 = vadd.f32 %v1462, %v1490
  %v1492 = vpop.f32.mrf.mxu0
  %v1493 = vadd.f32 %v1464, %v1492
  %1494 = vdwg.mxu0
  %1495 = vmatpush.bf16.msra.mxu0 %v1124
  %1496 = vmatpush.bf16.msra.mxu0 %v1120
  %1497 = vmatpush.bf16.msra.mxu0 %v1116
  %1498 = vmatpush.bf16.msra.mxu0 %v1112
  %1499 = vmatpush.bf16.msra.mxu0 %v1108
  %1500 = vmatpush.bf16.msra.mxu0 %v1104
  %1501 = vmatpush.bf16.msra.mxu0 %v1100
  %1502 = vmatpush.bf16.msra.mxu0 %v1096
  %1503 = vmatmul.bf16.gmra.mxu0 %v213
  %v1504 = vpop.f32.mrf.mxu0
  %v1505 = vadd.f32 %v1476, %v1504
  %v1506 = vpop.f32.mrf.mxu0
  %v1507 = vadd.f32 %v1478, %v1506
  %1508 = vmatmul.bf16.gmra.mxu0 %v220
  %v1509 = vpop.f32.mrf.mxu0
  %v1510 = vadd.f32 %v1481, %v1509
  %v1511 = vpop.f32.mrf.mxu0
  %v1512 = vadd.f32 %v1483, %v1511
  %1513 = vmatmul.bf16.gmra.mxu0 %v227
  %v1514 = vpop.f32.mrf.mxu0
  %v1515 = vadd.f32 %v1486, %v1514
  %v1516 = vpop.f32.mrf.mxu0
  %v1517 = vadd.f32 %v1488, %v1516
  %1518 = vmatmul.bf16.gmra.mxu0 %v234
  %v1519 = vpop.f32.mrf.mxu0
  %v1520 = vadd.f32 %v1491, %v1519
  %v1521 = vpop.f32.mrf.mxu0
  %v1522 = vadd.f32 %v1493, %v1521
  %1523 = vdwg.mxu0
  %1524 = vmatpush.bf16.msra.mxu0 %v1156
  %1525 = vmatpush.bf16.msra.mxu0 %v1152
  %1526 = vmatpush.bf16.msra.mxu0 %v1148
  %1527 = vmatpush.bf16.msra.mxu0 %v1144
  %1528 = vmatpush.bf16.msra.mxu0 %v1140
  %1529 = vmatpush.bf16.msra.mxu0 %v1136
  %1530 = vmatpush.bf16.msra.mxu0 %v1132
  %1531 = vmatpush.bf16.msra.mxu0 %v1128
  %1532 = vmatmul.bf16.gmra.mxu0 %v214
  %v1533 = vpop.f32.mrf.mxu0
  %v1534 = vadd.f32 %v1505, %v1533
  %v1535 = vpop.f32.mrf.mxu0
  %v1536 = vadd.f32 %v1507, %v1535
  %1537 = vmatmul.bf16.gmra.mxu0 %v221
  %v1538 = vpop.f32.mrf.mxu0
  %v1539 = vadd.f32 %v1510, %v1538
  %v1540 = vpop.f32.mrf.mxu0
  %v1541 = vadd.f32 %v1512, %v1540
  %1542 = vmatmul.bf16.gmra.mxu0 %v228
  %v1543 = vpop.f32.mrf.mxu0
  %v1544 = vadd.f32 %v1515, %v1543
  %v1545 = vpop.f32.mrf.mxu0
  %v1546 = vadd.f32 %v1517, %v1545
  %1547 = vmatmul.bf16.gmra.mxu0 %v235
  %v1548 = vpop.f32.mrf.mxu0
  %v1549 = vadd.f32 %v1520, %v1548
  %v1550 = vpop.f32.mrf.mxu0
  %v1551 = vadd.f32 %v1522, %v1550
  %1552 = vdwg.mxu0
  %1553 = vmatpush.bf16.msra.mxu0 %v1188
  %1554 = vmatpush.bf16.msra.mxu0 %v1184
  %1555 = vmatpush.bf16.msra.mxu0 %v1180
  %1556 = vmatpush.bf16.msra.mxu0 %v1176
  %1557 = vmatpush.bf16.msra.mxu0 %v1172
  %1558 = vmatpush.bf16.msra.mxu0 %v1168
  %1559 = vmatpush.bf16.msra.mxu0 %v1164
  %1560 = vmatpush.bf16.msra.mxu0 %v1160
  %1561 = vmatmul.bf16.gmra.mxu0 %v215
  %v1562 = vpop.f32.mrf.mxu0
  %v1563 = vadd.f32 %v1534, %v1562
  %v1564 = vpop.f32.mrf.mxu0
  %v1565 = vadd.f32 %v1536, %v1564
  %1566 = vmatmul.bf16.gmra.mxu0 %v222
  %v1567 = vpop.f32.mrf.mxu0
  %v1568 = vadd.f32 %v1539, %v1567
  %v1569 = vpop.f32.mrf.mxu0
  %v1570 = vadd.f32 %v1541, %v1569
  %1571 = vmatmul.bf16.gmra.mxu0 %v229
  %v1572 = vpop.f32.mrf.mxu0
  %v1573 = vadd.f32 %v1544, %v1572
  %v1574 = vpop.f32.mrf.mxu0
  %v1575 = vadd.f32 %v1546, %v1574
  %1576 = vmatmul.bf16.gmra.mxu0 %v236
  %v1577 = vpop.f32.mrf.mxu0
  %v1578 = vadd.f32 %v1549, %v1577
  %v1579 = vpop.f32.mrf.mxu0
  %v1580 = vadd.f32 %v1551, %v1579
  %1581 = vdwg.mxu0
  %1582 = vmatpush.bf16.msra.mxu0 %v1220
  %1583 = vmatpush.bf16.msra.mxu0 %v1216
  %1584 = vmatpush.bf16.msra.mxu0 %v1212
  %1585 = vmatpush.bf16.msra.mxu0 %v1208
  %1586 = vmatpush.bf16.msra.mxu0 %v1204
  %1587 = vmatpush.bf16.msra.mxu0 %v1200
  %1588 = vmatpush.bf16.msra.mxu0 %v1196
  %1589 = vmatpush.bf16.msra.mxu0 %v1192
  %1590 = vmatmul.bf16.gmra.mxu0 %v216
  %v1591 = vpop.f32.mrf.mxu0
  %v1592 = vadd.f32 %v1563, %v1591
  %v1593 = vpop.f32.mrf.mxu0
  %v1594 = vadd.f32 %v1565, %v1593
  %1595 = vmatmul.bf16.gmra.mxu0 %v223
  %v1596 = vpop.f32.mrf.mxu0
  %v1597 = vadd.f32 %v1568, %v1596
  %v1598 = vpop.f32.mrf.mxu0
  %v1599 = vadd.f32 %v1570, %v1598
  %1600 = vmatmul.bf16.gmra.mxu0 %v230
  %v1601 = vpop.f32.mrf.mxu0
  %v1602 = vadd.f32 %v1573, %v1601
  %v1603 = vpop.f32.mrf.mxu0
  %v1604 = vadd.f32 %v1575, %v1603
  %1605 = vmatmul.bf16.gmra.mxu0 %v237
  %v1606 = vpop.f32.mrf.mxu0
  %v1607 = vadd.f32 %v1578, %v1606
  %v1608 = vpop.f32.mrf.mxu0
  %v1609 = vadd.f32 %v1580, %v1608
  %1610 = vdwg.mxu0
  %1611 = vmatpush.bf16.msra.mxu0 0
  %1612 = vmatpush.bf16.msra.mxu0 0
  %1613 = vmatpush.bf16.msra.mxu0 0
  %1614 = vmatpush.bf16.msra.mxu0 0
  %1615 = vmatpush.bf16.msra.mxu0 0
  %1616 = vmatpush.bf16.msra.mxu0 0
  %1617 = vmatpush.bf16.msra.mxu0 0
  %1618 = vmatpush.bf16.msra.mxu0 %v1224
  %1619 = vmatmul.bf16.gmra.mxu0 %v1426
  %v1620 = vpop.f32.mrf.mxu0
  %v1621 = vadd.f32 %v1592, %v1620
  %v1622 = vpop.f32.mrf.mxu0
  %v1623 = vadd.f32 %v1594, %v1622
  %1624 = vmatmul.bf16.gmra.mxu0 %v1429
  %v1625 = vpop.f32.mrf.mxu0
  %v1626 = vadd.f32 %v1597, %v1625
  %v1627 = vpop.f32.mrf.mxu0
  %v1628 = vadd.f32 %v1599, %v1627
  %1629 = vmatmul.bf16.gmra.mxu0 %v1432
  %v1630 = vpop.f32.mrf.mxu0
  %v1631 = vadd.f32 %v1602, %v1630
  %v1632 = vpop.f32.mrf.mxu0
  %v1633 = vadd.f32 %v1604, %v1632
  %1634 = vmatmul.bf16.gmra.mxu0 %v1435
  %v1635 = vpop.f32.mrf.mxu0
  %v1636 = vadd.f32 %v1607, %v1635
  %v1637 = vpop.f32.mrf.mxu0
  %v1638 = vadd.f32 %v1609, %v1637
  %1639 = vdwg.mxu0
  %1640 = vmatpush.bf16.msra.mxu0 %v1061
  %1641 = vmatpush.bf16.msra.mxu0 %v1057
  %1642 = vmatpush.bf16.msra.mxu0 %v1053
  %1643 = vmatpush.bf16.msra.mxu0 %v1049
  %1644 = vmatpush.bf16.msra.mxu0 %v1045
  %1645 = vmatpush.bf16.msra.mxu0 %v1041
  %1646 = vmatpush.bf16.msra.mxu0 %v1037
  %1647 = vmatpush.bf16.msra.mxu0 %v1033
  %1648 = vmatmul.bf16.gmra.mxu0 %v211
  %v1649 = vpop.f32.mrf.mxu0
  %v1650 = vadd.f32 %v437, %v1649
  %v1651 = vpop.f32.mrf.mxu0
  %v1652 = vadd.f32 %v437, %v1651
  %1653 = vmatmul.bf16.gmra.mxu0 %v218
  %v1654 = vpop.f32.mrf.mxu0
  %v1655 = vadd.f32 %v437, %v1654
  %v1656 = vpop.f32.mrf.mxu0
  %v1657 = vadd.f32 %v437, %v1656
  %1658 = vmatmul.bf16.gmra.mxu0 %v225
  %v1659 = vpop.f32.mrf.mxu0
  %v1660 = vadd.f32 %v437, %v1659
  %v1661 = vpop.f32.mrf.mxu0
  %v1662 = vadd.f32 %v437, %v1661
  %1663 = vmatmul.bf16.gmra.mxu0 %v232
  %v1664 = vpop.f32.mrf.mxu0
  %v1665 = vadd.f32 %v437, %v1664
  %v1666 = vpop.f32.mrf.mxu0
  %v1667 = vadd.f32 %v437, %v1666
  %1668 = vdwg.mxu0
  %1669 = vmatpush.bf16.msra.mxu0 %v1093
  %1670 = vmatpush.bf16.msra.mxu0 %v1089
  %1671 = vmatpush.bf16.msra.mxu0 %v1085
  %1672 = vmatpush.bf16.msra.mxu0 %v1081
  %1673 = vmatpush.bf16.msra.mxu0 %v1077
  %1674 = vmatpush.bf16.msra.mxu0 %v1073
  %1675 = vmatpush.bf16.msra.mxu0 %v1069
  %1676 = vmatpush.bf16.msra.mxu0 %v1065
  %1677 = vmatmul.bf16.gmra.mxu0 %v212
  %v1678 = vpop.f32.mrf.mxu0
  %v1679 = vadd.f32 %v1650, %v1678
  %v1680 = vpop.f32.mrf.mxu0
  %v1681 = vadd.f32 %v1652, %v1680
  %1682 = vmatmul.bf16.gmra.mxu0 %v219
  %v1683 = vpop.f32.mrf.mxu0
  %v1684 = vadd.f32 %v1655, %v1683
  %v1685 = vpop.f32.mrf.mxu0
  %v1686 = vadd.f32 %v1657, %v1685
  %1687 = vmatmul.bf16.gmra.mxu0 %v226
  %v1688 = vpop.f32.mrf.mxu0
  %v1689 = vadd.f32 %v1660, %v1688
  %v1690 = vpop.f32.mrf.mxu0
  %v1691 = vadd.f32 %v1662, %v1690
  %1692 = vmatmul.bf16.gmra.mxu0 %v233
  %v1693 = vpop.f32.mrf.mxu0
  %v1694 = vadd.f32 %v1665, %v1693
  %v1695 = vpop.f32.mrf.mxu0
  %v1696 = vadd.f32 %v1667, %v1695
  %1697 = vdwg.mxu0
  %1698 = vmatpush.bf16.msra.mxu0 %v1125
  %1699 = vmatpush.bf16.msra.mxu0 %v1121
  %1700 = vmatpush.bf16.msra.mxu0 %v1117
  %1701 = vmatpush.bf16.msra.mxu0 %v1113
  %1702 = vmatpush.bf16.msra.mxu0 %v1109
  %1703 = vmatpush.bf16.msra.mxu0 %v1105
  %1704 = vmatpush.bf16.msra.mxu0 %v1101
  %1705 = vmatpush.bf16.msra.mxu0 %v1097
  %1706 = vmatmul.bf16.gmra.mxu0 %v213
  %v1707 = vpop.f32.mrf.mxu0
  %v1708 = vadd.f32 %v1679, %v1707
  %v1709 = vpop.f32.mrf.mxu0
  %v1710 = vadd.f32 %v1681, %v1709
  %1711 = vmatmul.bf16.gmra.mxu0 %v220
  %v1712 = vpop.f32.mrf.mxu0
  %v1713 = vadd.f32 %v1684, %v1712
  %v1714 = vpop.f32.mrf.mxu0
  %v1715 = vadd.f32 %v1686, %v1714
  %1716 = vmatmul.bf16.gmra.mxu0 %v227
  %v1717 = vpop.f32.mrf.mxu0
  %v1718 = vadd.f32 %v1689, %v1717
  %v1719 = vpop.f32.mrf.mxu0
  %v1720 = vadd.f32 %v1691, %v1719
  %1721 = vmatmul.bf16.gmra.mxu0 %v234
  %v1722 = vpop.f32.mrf.mxu0
  %v1723 = vadd.f32 %v1694, %v1722
  %v1724 = vpop.f32.mrf.mxu0
  %v1725 = vadd.f32 %v1696, %v1724
  %1726 = vdwg.mxu0
  %1727 = vmatpush.bf16.msra.mxu0 %v1157
  %1728 = vmatpush.bf16.msra.mxu0 %v1153
  %1729 = vmatpush.bf16.msra.mxu0 %v1149
  %1730 = vmatpush.bf16.msra.mxu0 %v1145
  %1731 = vmatpush.bf16.msra.mxu0 %v1141
  %1732 = vmatpush.bf16.msra.mxu0 %v1137
  %1733 = vmatpush.bf16.msra.mxu0 %v1133
  %1734 = vmatpush.bf16.msra.mxu0 %v1129
  %1735 = vmatmul.bf16.gmra.mxu0 %v214
  %v1736 = vpop.f32.mrf.mxu0
  %v1737 = vadd.f32 %v1708, %v1736
  %v1738 = vpop.f32.mrf.mxu0
  %v1739 = vadd.f32 %v1710, %v1738
  %1740 = vmatmul.bf16.gmra.mxu0 %v221
  %v1741 = vpop.f32.mrf.mxu0
  %v1742 = vadd.f32 %v1713, %v1741
  %v1743 = vpop.f32.mrf.mxu0
  %v1744 = vadd.f32 %v1715, %v1743
  %1745 = vmatmul.bf16.gmra.mxu0 %v228
  %v1746 = vpop.f32.mrf.mxu0
  %v1747 = vadd.f32 %v1718, %v1746
  %v1748 = vpop.f32.mrf.mxu0
  %v1749 = vadd.f32 %v1720, %v1748
  %1750 = vmatmul.bf16.gmra.mxu0 %v235
  %v1751 = vpop.f32.mrf.mxu0
  %v1752 = vadd.f32 %v1723, %v1751
  %v1753 = vpop.f32.mrf.mxu0
  %v1754 = vadd.f32 %v1725, %v1753
  %1755 = vdwg.mxu0
  %1756 = vmatpush.bf16.msra.mxu0 %v1189
  %1757 = vmatpush.bf16.msra.mxu0 %v1185
  %1758 = vmatpush.bf16.msra.mxu0 %v1181
  %1759 = vmatpush.bf16.msra.mxu0 %v1177
  %1760 = vmatpush.bf16.msra.mxu0 %v1173
  %1761 = vmatpush.bf16.msra.mxu0 %v1169
  %1762 = vmatpush.bf16.msra.mxu0 %v1165
  %1763 = vmatpush.bf16.msra.mxu0 %v1161
  %1764 = vmatmul.bf16.gmra.mxu0 %v215
  %v1765 = vpop.f32.mrf.mxu0
  %v1766 = vadd.f32 %v1737, %v1765
  %v1767 = vpop.f32.mrf.mxu0
  %v1768 = vadd.f32 %v1739, %v1767
  %1769 = vmatmul.bf16.gmra.mxu0 %v222
  %v1770 = vpop.f32.mrf.mxu0
  %v1771 = vadd.f32 %v1742, %v1770
  %v1772 = vpop.f32.mrf.mxu0
  %v1773 = vadd.f32 %v1744, %v1772
  %1774 = vmatmul.bf16.gmra.mxu0 %v229
  %v1775 = vpop.f32.mrf.mxu0
  %v1776 = vadd.f32 %v1747, %v1775
  %v1777 = vpop.f32.mrf.mxu0
  %v1778 = vadd.f32 %v1749, %v1777
  %1779 = vmatmul.bf16.gmra.mxu0 %v236
  %v1780 = vpop.f32.mrf.mxu0
  %v1781 = vadd.f32 %v1752, %v1780
  %v1782 = vpop.f32.mrf.mxu0
  %v1783 = vadd.f32 %v1754, %v1782
  %1784 = vdwg.mxu0
  %1785 = vmatpush.bf16.msra.mxu0 %v1221
  %1786 = vmatpush.bf16.msra.mxu0 %v1217
  %1787 = vmatpush.bf16.msra.mxu0 %v1213
  %1788 = vmatpush.bf16.msra.mxu0 %v1209
  %1789 = vmatpush.bf16.msra.mxu0 %v1205
  %1790 = vmatpush.bf16.msra.mxu0 %v1201
  %1791 = vmatpush.bf16.msra.mxu0 %v1197
  %1792 = vmatpush.bf16.msra.mxu0 %v1193
  %1793 = vmatmul.bf16.gmra.mxu0 %v216
  %v1794 = vpop.f32.mrf.mxu0
  %v1795 = vadd.f32 %v1766, %v1794
  %v1796 = vpop.f32.mrf.mxu0
  %v1797 = vadd.f32 %v1768, %v1796
  %1798 = vmatmul.bf16.gmra.mxu0 %v223
  %v1799 = vpop.f32.mrf.mxu0
  %v1800 = vadd.f32 %v1771, %v1799
  %v1801 = vpop.f32.mrf.mxu0
  %v1802 = vadd.f32 %v1773, %v1801
  %1803 = vmatmul.bf16.gmra.mxu0 %v230
  %v1804 = vpop.f32.mrf.mxu0
  %v1805 = vadd.f32 %v1776, %v1804
  %v1806 = vpop.f32.mrf.mxu0
  %v1807 = vadd.f32 %v1778, %v1806
  %1808 = vmatmul.bf16.gmra.mxu0 %v237
  %v1809 = vpop.f32.mrf.mxu0
  %v1810 = vadd.f32 %v1781, %v1809
  %v1811 = vpop.f32.mrf.mxu0
  %v1812 = vadd.f32 %v1783, %v1811
  %1813 = vdwg.mxu0
  %1814 = vmatpush.bf16.msra.mxu0 0
  %1815 = vmatpush.bf16.msra.mxu0 0
  %1816 = vmatpush.bf16.msra.mxu0 0
  %1817 = vmatpush.bf16.msra.mxu0 0
  %1818 = vmatpush.bf16.msra.mxu0 0
  %1819 = vmatpush.bf16.msra.mxu0 0
  %1820 = vmatpush.bf16.msra.mxu0 0
  %1821 = vmatpush.bf16.msra.mxu0 %v1225
  %1822 = vmatmul.bf16.gmra.mxu0 %v1426
  %v1823 = vpop.f32.mrf.mxu0
  %v1824 = vadd.f32 %v1795, %v1823
  %v1825 = vpop.f32.mrf.mxu0
  %v1826 = vadd.f32 %v1797, %v1825
  %1827 = vmatmul.bf16.gmra.mxu0 %v1429
  %v1828 = vpop.f32.mrf.mxu0
  %v1829 = vadd.f32 %v1800, %v1828
  %v1830 = vpop.f32.mrf.mxu0
  %v1831 = vadd.f32 %v1802, %v1830
  %1832 = vmatmul.bf16.gmra.mxu0 %v1432
  %v1833 = vpop.f32.mrf.mxu0
  %v1834 = vadd.f32 %v1805, %v1833
  %v1835 = vpop.f32.mrf.mxu0
  %v1836 = vadd.f32 %v1807, %v1835
  %1837 = vmatmul.bf16.gmra.mxu0 %v1435
  %v1838 = vpop.f32.mrf.mxu0
  %v1839 = vadd.f32 %v1810, %v1838
  %v1840 = vpop.f32.mrf.mxu0
  %v1841 = vadd.f32 %v1812, %v1840
  %1842 = vdwg.mxu0
  %1843 = vmatpush.bf16.msra.mxu0 %v1062
  %1844 = vmatpush.bf16.msra.mxu0 %v1058
  %1845 = vmatpush.bf16.msra.mxu0 %v1054
  %1846 = vmatpush.bf16.msra.mxu0 %v1050
  %1847 = vmatpush.bf16.msra.mxu0 %v1046
  %1848 = vmatpush.bf16.msra.mxu0 %v1042
  %1849 = vmatpush.bf16.msra.mxu0 %v1038
  %1850 = vmatpush.bf16.msra.mxu0 %v1034
  %1851 = vmatmul.bf16.gmra.mxu0 %v211
  %v1852 = vpop.f32.mrf.mxu0
  %v1853 = vadd.f32 %v438, %v1852
  %v1854 = vpop.f32.mrf.mxu0
  %v1855 = vadd.f32 %v438, %v1854
  %1856 = vmatmul.bf16.gmra.mxu0 %v218
  %v1857 = vpop.f32.mrf.mxu0
  %v1858 = vadd.f32 %v438, %v1857
  %v1859 = vpop.f32.mrf.mxu0
  %v1860 = vadd.f32 %v438, %v1859
  %1861 = vmatmul.bf16.gmra.mxu0 %v225
  %v1862 = vpop.f32.mrf.mxu0
  %v1863 = vadd.f32 %v438, %v1862
  %v1864 = vpop.f32.mrf.mxu0
  %v1865 = vadd.f32 %v438, %v1864
  %1866 = vmatmul.bf16.gmra.mxu0 %v232
  %v1867 = vpop.f32.mrf.mxu0
  %v1868 = vadd.f32 %v438, %v1867
  %v1869 = vpop.f32.mrf.mxu0
  %v1870 = vadd.f32 %v438, %v1869
  %1871 = vdwg.mxu0
  %1872 = vmatpush.bf16.msra.mxu0 %v1094
  %1873 = vmatpush.bf16.msra.mxu0 %v1090
  %1874 = vmatpush.bf16.msra.mxu0 %v1086
  %1875 = vmatpush.bf16.msra.mxu0 %v1082
  %1876 = vmatpush.bf16.msra.mxu0 %v1078
  %1877 = vmatpush.bf16.msra.mxu0 %v1074
  %1878 = vmatpush.bf16.msra.mxu0 %v1070
  %1879 = vmatpush.bf16.msra.mxu0 %v1066
  %1880 = vmatmul.bf16.gmra.mxu0 %v212
  %v1881 = vpop.f32.mrf.mxu0
  %v1882 = vadd.f32 %v1853, %v1881
  %v1883 = vpop.f32.mrf.mxu0
  %v1884 = vadd.f32 %v1855, %v1883
  %1885 = vmatmul.bf16.gmra.mxu0 %v219
  %v1886 = vpop.f32.mrf.mxu0
  %v1887 = vadd.f32 %v1858, %v1886
  %v1888 = vpop.f32.mrf.mxu0
  %v1889 = vadd.f32 %v1860, %v1888
  %1890 = vmatmul.bf16.gmra.mxu0 %v226
  %v1891 = vpop.f32.mrf.mxu0
  %v1892 = vadd.f32 %v1863, %v1891
  %v1893 = vpop.f32.mrf.mxu0
  %v1894 = vadd.f32 %v1865, %v1893
  %1895 = vmatmul.bf16.gmra.mxu0 %v233
  %v1896 = vpop.f32.mrf.mxu0
  %v1897 = vadd.f32 %v1868, %v1896
  %v1898 = vpop.f32.mrf.mxu0
  %v1899 = vadd.f32 %v1870, %v1898
  %1900 = vdwg.mxu0
  %1901 = vmatpush.bf16.msra.mxu0 %v1126
  %1902 = vmatpush.bf16.msra.mxu0 %v1122
  %1903 = vmatpush.bf16.msra.mxu0 %v1118
  %1904 = vmatpush.bf16.msra.mxu0 %v1114
  %1905 = vmatpush.bf16.msra.mxu0 %v1110
  %1906 = vmatpush.bf16.msra.mxu0 %v1106
  %1907 = vmatpush.bf16.msra.mxu0 %v1102
  %1908 = vmatpush.bf16.msra.mxu0 %v1098
  %1909 = vmatmul.bf16.gmra.mxu0 %v213
  %v1910 = vpop.f32.mrf.mxu0
  %v1911 = vadd.f32 %v1882, %v1910
  %v1912 = vpop.f32.mrf.mxu0
  %v1913 = vadd.f32 %v1884, %v1912
  %1914 = vmatmul.bf16.gmra.mxu0 %v220
  %v1915 = vpop.f32.mrf.mxu0
  %v1916 = vadd.f32 %v1887, %v1915
  %v1917 = vpop.f32.mrf.mxu0
  %v1918 = vadd.f32 %v1889, %v1917
  %1919 = vmatmul.bf16.gmra.mxu0 %v227
  %v1920 = vpop.f32.mrf.mxu0
  %v1921 = vadd.f32 %v1892, %v1920
  %v1922 = vpop.f32.mrf.mxu0
  %v1923 = vadd.f32 %v1894, %v1922
  %1924 = vmatmul.bf16.gmra.mxu0 %v234
  %v1925 = vpop.f32.mrf.mxu0
  %v1926 = vadd.f32 %v1897, %v1925
  %v1927 = vpop.f32.mrf.mxu0
  %v1928 = vadd.f32 %v1899, %v1927
  %1929 = vdwg.mxu0
  %1930 = vmatpush.bf16.msra.mxu0 %v1158
  %1931 = vmatpush.bf16.msra.mxu0 %v1154
  %1932 = vmatpush.bf16.msra.mxu0 %v1150
  %1933 = vmatpush.bf16.msra.mxu0 %v1146
  %1934 = vmatpush.bf16.msra.mxu0 %v1142
  %1935 = vmatpush.bf16.msra.mxu0 %v1138
  %1936 = vmatpush.bf16.msra.mxu0 %v1134
  %1937 = vmatpush.bf16.msra.mxu0 %v1130
  %1938 = vmatmul.bf16.gmra.mxu0 %v214
  %v1939 = vpop.f32.mrf.mxu0
  %v1940 = vadd.f32 %v1911, %v1939
  %v1941 = vpop.f32.mrf.mxu0
  %v1942 = vadd.f32 %v1913, %v1941
  %1943 = vmatmul.bf16.gmra.mxu0 %v221
  %v1944 = vpop.f32.mrf.mxu0
  %v1945 = vadd.f32 %v1916, %v1944
  %v1946 = vpop.f32.mrf.mxu0
  %v1947 = vadd.f32 %v1918, %v1946
  %1948 = vmatmul.bf16.gmra.mxu0 %v228
  %v1949 = vpop.f32.mrf.mxu0
  %v1950 = vadd.f32 %v1921, %v1949
  %v1951 = vpop.f32.mrf.mxu0
  %v1952 = vadd.f32 %v1923, %v1951
  %1953 = vmatmul.bf16.gmra.mxu0 %v235
  %v1954 = vpop.f32.mrf.mxu0
  %v1955 = vadd.f32 %v1926, %v1954
  %v1956 = vpop.f32.mrf.mxu0
  %v1957 = vadd.f32 %v1928, %v1956
  %1958 = vdwg.mxu0
  %1959 = vmatpush.bf16.msra.mxu0 %v1190
  %1960 = vmatpush.bf16.msra.mxu0 %v1186
  %1961 = vmatpush.bf16.msra.mxu0 %v1182
  %1962 = vmatpush.bf16.msra.mxu0 %v1178
  %1963 = vmatpush.bf16.msra.mxu0 %v1174
  %1964 = vmatpush.bf16.msra.mxu0 %v1170
  %1965 = vmatpush.bf16.msra.mxu0 %v1166
  %1966 = vmatpush.bf16.msra.mxu0 %v1162
  %1967 = vmatmul.bf16.gmra.mxu0 %v215
  %v1968 = vpop.f32.mrf.mxu0
  %v1969 = vadd.f32 %v1940, %v1968
  %v1970 = vpop.f32.mrf.mxu0
  %v1971 = vadd.f32 %v1942, %v1970
  %1972 = vmatmul.bf16.gmra.mxu0 %v222
  %v1973 = vpop.f32.mrf.mxu0
  %v1974 = vadd.f32 %v1945, %v1973
  %v1975 = vpop.f32.mrf.mxu0
  %v1976 = vadd.f32 %v1947, %v1975
  %1977 = vmatmul.bf16.gmra.mxu0 %v229
  %v1978 = vpop.f32.mrf.mxu0
  %v1979 = vadd.f32 %v1950, %v1978
  %v1980 = vpop.f32.mrf.mxu0
  %v1981 = vadd.f32 %v1952, %v1980
  %1982 = vmatmul.bf16.gmra.mxu0 %v236
  %v1983 = vpop.f32.mrf.mxu0
  %v1984 = vadd.f32 %v1955, %v1983
  %v1985 = vpop.f32.mrf.mxu0
  %v1986 = vadd.f32 %v1957, %v1985
  %1987 = vdwg.mxu0
  %1988 = vmatpush.bf16.msra.mxu0 %v1222
  %1989 = vmatpush.bf16.msra.mxu0 %v1218
  %1990 = vmatpush.bf16.msra.mxu0 %v1214
  %1991 = vmatpush.bf16.msra.mxu0 %v1210
  %1992 = vmatpush.bf16.msra.mxu0 %v1206
  %1993 = vmatpush.bf16.msra.mxu0 %v1202
  %1994 = vmatpush.bf16.msra.mxu0 %v1198
  %1995 = vmatpush.bf16.msra.mxu0 %v1194
  %1996 = vmatmul.bf16.gmra.mxu0 %v216
  %v1997 = vpop.f32.mrf.mxu0
  %v1998 = vadd.f32 %v1969, %v1997
  %v1999 = vpop.f32.mrf.mxu0
  %v2000 = vadd.f32 %v1971, %v1999
  %2001 = vmatmul.bf16.gmra.mxu0 %v223
  %v2002 = vpop.f32.mrf.mxu0
  %v2003 = vadd.f32 %v1974, %v2002
  %v2004 = vpop.f32.mrf.mxu0
  %v2005 = vadd.f32 %v1976, %v2004
  %2006 = vmatmul.bf16.gmra.mxu0 %v230
  %v2007 = vpop.f32.mrf.mxu0
  %v2008 = vadd.f32 %v1979, %v2007
  %v2009 = vpop.f32.mrf.mxu0
  %v2010 = vadd.f32 %v1981, %v2009
  %2011 = vmatmul.bf16.gmra.mxu0 %v237
  %v2012 = vpop.f32.mrf.mxu0
  %v2013 = vadd.f32 %v1984, %v2012
  %v2014 = vpop.f32.mrf.mxu0
  %v2015 = vadd.f32 %v1986, %v2014
  %2016 = vdwg.mxu0
  %2017 = vmatpush.bf16.msra.mxu0 0
  %2018 = vmatpush.bf16.msra.mxu0 0
  %2019 = vmatpush.bf16.msra.mxu0 0
  %2020 = vmatpush.bf16.msra.mxu0 0
  %2021 = vmatpush.bf16.msra.mxu0 0
  %2022 = vmatpush.bf16.msra.mxu0 0
  %2023 = vmatpush.bf16.msra.mxu0 0
  %2024 = vmatpush.bf16.msra.mxu0 %v1226
  %2025 = vmatmul.bf16.gmra.mxu0 %v1426
  %v2026 = vpop.f32.mrf.mxu0
  %v2027 = vadd.f32 %v1998, %v2026
  %v2028 = vpop.f32.mrf.mxu0
  %v2029 = vadd.f32 %v2000, %v2028
  %2030 = vmatmul.bf16.gmra.mxu0 %v1429
  %v2031 = vpop.f32.mrf.mxu0
  %v2032 = vadd.f32 %v2003, %v2031
  %v2033 = vpop.f32.mrf.mxu0
  %v2034 = vadd.f32 %v2005, %v2033
  %2035 = vmatmul.bf16.gmra.mxu0 %v1432
  %v2036 = vpop.f32.mrf.mxu0
  %v2037 = vadd.f32 %v2008, %v2036
  %v2038 = vpop.f32.mrf.mxu0
  %v2039 = vadd.f32 %v2010, %v2038
  %2040 = vmatmul.bf16.gmra.mxu0 %v1435
  %v2041 = vpop.f32.mrf.mxu0
  %v2042 = vadd.f32 %v2013, %v2041
  %v2043 = vpop.f32.mrf.mxu0
  %v2044 = vadd.f32 %v2015, %v2043
  %2045 = vdwg.mxu0
  %2046 = vmatpush.bf16.msra.mxu0 %v1063
  %2047 = vmatpush.bf16.msra.mxu0 %v1059
  %2048 = vmatpush.bf16.msra.mxu0 %v1055
  %2049 = vmatpush.bf16.msra.mxu0 %v1051
  %2050 = vmatpush.bf16.msra.mxu0 %v1047
  %2051 = vmatpush.bf16.msra.mxu0 %v1043
  %2052 = vmatpush.bf16.msra.mxu0 %v1039
  %2053 = vmatpush.bf16.msra.mxu0 %v1035
  %2054 = vmatmul.bf16.gmra.mxu0 %v211
  %v2055 = vpop.f32.mrf.mxu0
  %v2056 = vadd.f32 %v439, %v2055
  %v2057 = vpop.f32.mrf.mxu0
  %v2058 = vadd.f32 %v439, %v2057
  %2059 = vmatmul.bf16.gmra.mxu0 %v218
  %v2060 = vpop.f32.mrf.mxu0
  %v2061 = vadd.f32 %v439, %v2060
  %v2062 = vpop.f32.mrf.mxu0
  %v2063 = vadd.f32 %v439, %v2062
  %2064 = vmatmul.bf16.gmra.mxu0 %v225
  %v2065 = vpop.f32.mrf.mxu0
  %v2066 = vadd.f32 %v439, %v2065
  %v2067 = vpop.f32.mrf.mxu0
  %v2068 = vadd.f32 %v439, %v2067
  %2069 = vmatmul.bf16.gmra.mxu0 %v232
  %v2070 = vpop.f32.mrf.mxu0
  %v2071 = vadd.f32 %v439, %v2070
  %v2072 = vpop.f32.mrf.mxu0
  %v2073 = vadd.f32 %v439, %v2072
  %2074 = vdwg.mxu0
  %2075 = vmatpush.bf16.msra.mxu0 %v1095
  %2076 = vmatpush.bf16.msra.mxu0 %v1091
  %2077 = vmatpush.bf16.msra.mxu0 %v1087
  %2078 = vmatpush.bf16.msra.mxu0 %v1083
  %2079 = vmatpush.bf16.msra.mxu0 %v1079
  %2080 = vmatpush.bf16.msra.mxu0 %v1075
  %2081 = vmatpush.bf16.msra.mxu0 %v1071
  %2082 = vmatpush.bf16.msra.mxu0 %v1067
  %2083 = vmatmul.bf16.gmra.mxu0 %v212
  %v2084 = vpop.f32.mrf.mxu0
  %v2085 = vadd.f32 %v2056, %v2084
  %v2086 = vpop.f32.mrf.mxu0
  %v2087 = vadd.f32 %v2058, %v2086
  %2088 = vmatmul.bf16.gmra.mxu0 %v219
  %v2089 = vpop.f32.mrf.mxu0
  %v2090 = vadd.f32 %v2061, %v2089
  %v2091 = vpop.f32.mrf.mxu0
  %v2092 = vadd.f32 %v2063, %v2091
  %2093 = vmatmul.bf16.gmra.mxu0 %v226
  %v2094 = vpop.f32.mrf.mxu0
  %v2095 = vadd.f32 %v2066, %v2094
  %v2096 = vpop.f32.mrf.mxu0
  %v2097 = vadd.f32 %v2068, %v2096
  %2098 = vmatmul.bf16.gmra.mxu0 %v233
  %v2099 = vpop.f32.mrf.mxu0
  %v2100 = vadd.f32 %v2071, %v2099
  %v2101 = vpop.f32.mrf.mxu0
  %v2102 = vadd.f32 %v2073, %v2101
  %2103 = vdwg.mxu0
  %2104 = vmatpush.bf16.msra.mxu0 %v1127
  %2105 = vmatpush.bf16.msra.mxu0 %v1123
  %2106 = vmatpush.bf16.msra.mxu0 %v1119
  %2107 = vmatpush.bf16.msra.mxu0 %v1115
  %2108 = vmatpush.bf16.msra.mxu0 %v1111
  %2109 = vmatpush.bf16.msra.mxu0 %v1107
  %2110 = vmatpush.bf16.msra.mxu0 %v1103
  %2111 = vmatpush.bf16.msra.mxu0 %v1099
  %2112 = vmatmul.bf16.gmra.mxu0 %v213
  %v2113 = vpop.f32.mrf.mxu0
  %v2114 = vadd.f32 %v2085, %v2113
  %v2115 = vpop.f32.mrf.mxu0
  %v2116 = vadd.f32 %v2087, %v2115
  %2117 = vmatmul.bf16.gmra.mxu0 %v220
  %v2118 = vpop.f32.mrf.mxu0
  %v2119 = vadd.f32 %v2090, %v2118
  %v2120 = vpop.f32.mrf.mxu0
  %v2121 = vadd.f32 %v2092, %v2120
  %2122 = vmatmul.bf16.gmra.mxu0 %v227
  %v2123 = vpop.f32.mrf.mxu0
  %v2124 = vadd.f32 %v2095, %v2123
  %v2125 = vpop.f32.mrf.mxu0
  %v2126 = vadd.f32 %v2097, %v2125
  %2127 = vmatmul.bf16.gmra.mxu0 %v234
  %v2128 = vpop.f32.mrf.mxu0
  %v2129 = vadd.f32 %v2100, %v2128
  %v2130 = vpop.f32.mrf.mxu0
  %v2131 = vadd.f32 %v2102, %v2130
  %2132 = vdwg.mxu0
  %2133 = vmatpush.bf16.msra.mxu0 %v1159
  %2134 = vmatpush.bf16.msra.mxu0 %v1155
  %2135 = vmatpush.bf16.msra.mxu0 %v1151
  %2136 = vmatpush.bf16.msra.mxu0 %v1147
  %2137 = vmatpush.bf16.msra.mxu0 %v1143
  %2138 = vmatpush.bf16.msra.mxu0 %v1139
  %2139 = vmatpush.bf16.msra.mxu0 %v1135
  %2140 = vmatpush.bf16.msra.mxu0 %v1131
  %2141 = vmatmul.bf16.gmra.mxu0 %v214
  %v2142 = vpop.f32.mrf.mxu0
  %v2143 = vadd.f32 %v2114, %v2142
  %v2144 = vpop.f32.mrf.mxu0
  %v2145 = vadd.f32 %v2116, %v2144
  %2146 = vmatmul.bf16.gmra.mxu0 %v221
  %v2147 = vpop.f32.mrf.mxu0
  %v2148 = vadd.f32 %v2119, %v2147
  %v2149 = vpop.f32.mrf.mxu0
  %v2150 = vadd.f32 %v2121, %v2149
  %2151 = vmatmul.bf16.gmra.mxu0 %v228
  %v2152 = vpop.f32.mrf.mxu0
  %v2153 = vadd.f32 %v2124, %v2152
  %v2154 = vpop.f32.mrf.mxu0
  %v2155 = vadd.f32 %v2126, %v2154
  %2156 = vmatmul.bf16.gmra.mxu0 %v235
  %v2157 = vpop.f32.mrf.mxu0
  %v2158 = vadd.f32 %v2129, %v2157
  %v2159 = vpop.f32.mrf.mxu0
  %v2160 = vadd.f32 %v2131, %v2159
  %2161 = vdwg.mxu0
  %2162 = vmatpush.bf16.msra.mxu0 %v1191
  %2163 = vmatpush.bf16.msra.mxu0 %v1187
  %2164 = vmatpush.bf16.msra.mxu0 %v1183
  %2165 = vmatpush.bf16.msra.mxu0 %v1179
  %2166 = vmatpush.bf16.msra.mxu0 %v1175
  %2167 = vmatpush.bf16.msra.mxu0 %v1171
  %2168 = vmatpush.bf16.msra.mxu0 %v1167
  %2169 = vmatpush.bf16.msra.mxu0 %v1163
  %2170 = vmatmul.bf16.gmra.mxu0 %v215
  %v2171 = vpop.f32.mrf.mxu0
  %v2172 = vadd.f32 %v2143, %v2171
  %v2173 = vpop.f32.mrf.mxu0
  %v2174 = vadd.f32 %v2145, %v2173
  %2175 = vmatmul.bf16.gmra.mxu0 %v222
  %v2176 = vpop.f32.mrf.mxu0
  %v2177 = vadd.f32 %v2148, %v2176
  %v2178 = vpop.f32.mrf.mxu0
  %v2179 = vadd.f32 %v2150, %v2178
  %2180 = vmatmul.bf16.gmra.mxu0 %v229
  %v2181 = vpop.f32.mrf.mxu0
  %v2182 = vadd.f32 %v2153, %v2181
  %v2183 = vpop.f32.mrf.mxu0
  %v2184 = vadd.f32 %v2155, %v2183
  %2185 = vmatmul.bf16.gmra.mxu0 %v236
  %v2186 = vpop.f32.mrf.mxu0
  %v2187 = vadd.f32 %v2158, %v2186
  %v2188 = vpop.f32.mrf.mxu0
  %v2189 = vadd.f32 %v2160, %v2188
  %2190 = vdwg.mxu0
  %2191 = vmatpush.bf16.msra.mxu0 %v1223
  %2192 = vmatpush.bf16.msra.mxu0 %v1219
  %2193 = vmatpush.bf16.msra.mxu0 %v1215
  %2194 = vmatpush.bf16.msra.mxu0 %v1211
  %2195 = vmatpush.bf16.msra.mxu0 %v1207
  %2196 = vmatpush.bf16.msra.mxu0 %v1203
  %2197 = vmatpush.bf16.msra.mxu0 %v1199
  %2198 = vmatpush.bf16.msra.mxu0 %v1195
  %2199 = vmatmul.bf16.gmra.mxu0 %v216
  %v2200 = vpop.f32.mrf.mxu0
  %v2201 = vadd.f32 %v2172, %v2200
  %v2202 = vpop.f32.mrf.mxu0
  %v2203 = vadd.f32 %v2174, %v2202
  %2204 = vmatmul.bf16.gmra.mxu0 %v223
  %v2205 = vpop.f32.mrf.mxu0
  %v2206 = vadd.f32 %v2177, %v2205
  %v2207 = vpop.f32.mrf.mxu0
  %v2208 = vadd.f32 %v2179, %v2207
  %2209 = vmatmul.bf16.gmra.mxu0 %v230
  %v2210 = vpop.f32.mrf.mxu0
  %v2211 = vadd.f32 %v2182, %v2210
  %v2212 = vpop.f32.mrf.mxu0
  %v2213 = vadd.f32 %v2184, %v2212
  %2214 = vmatmul.bf16.gmra.mxu0 %v237
  %v2215 = vpop.f32.mrf.mxu0
  %v2216 = vadd.f32 %v2187, %v2215
  %v2217 = vpop.f32.mrf.mxu0
  %v2218 = vadd.f32 %v2189, %v2217
  %2219 = vdwg.mxu0
  %2220 = vmatpush.bf16.msra.mxu0 0
  %2221 = vmatpush.bf16.msra.mxu0 0
  %2222 = vmatpush.bf16.msra.mxu0 0
  %2223 = vmatpush.bf16.msra.mxu0 0
  %2224 = vmatpush.bf16.msra.mxu0 0
  %2225 = vmatpush.bf16.msra.mxu0 0
  %2226 = vmatpush.bf16.msra.mxu0 0
  %2227 = vmatpush.bf16.msra.mxu0 %v1227
  %2228 = vmatmul.bf16.gmra.mxu0 %v1426
  %v2229 = vpop.f32.mrf.mxu0
  %v2230 = vadd.f32 %v2201, %v2229
  %v2231 = vpop.f32.mrf.mxu0
  %v2232 = vadd.f32 %v2203, %v2231
  %2233 = vmatmul.bf16.gmra.mxu0 %v1429
  %v2234 = vpop.f32.mrf.mxu0
  %v2235 = vadd.f32 %v2206, %v2234
  %v2236 = vpop.f32.mrf.mxu0
  %v2237 = vadd.f32 %v2208, %v2236
  %2238 = vmatmul.bf16.gmra.mxu0 %v1432
  %v2239 = vpop.f32.mrf.mxu0
  %v2240 = vadd.f32 %v2211, %v2239
  %v2241 = vpop.f32.mrf.mxu0
  %v2242 = vadd.f32 %v2213, %v2241
  %2243 = vmatmul.bf16.gmra.mxu0 %v1435
  %v2244 = vpop.f32.mrf.mxu0
  %v2245 = vadd.f32 %v2216, %v2244
  %v2246 = vpop.f32.mrf.mxu0
  %v2247 = vadd.f32 %v2218, %v2246
  %2248 = vdwg.mxu0
  %v2249 = vmax.f32 %v1621, 0.0
  %v2250 = vmax.f32 %v1824, 0.0
  %v2251 = vmax.f32 %v2027, 0.0
  %v2252 = vmax.f32 %v2230, 0.0
  %v2253 = vmax.f32 %v1623, 0.0
  %v2254 = vmax.f32 %v1826, 0.0
  %v2255 = vmax.f32 %v2029, 0.0
  %v2256 = vmax.f32 %v2232, 0.0
  %v2257 = vmax.f32 %v1626, 0.0
  %v2258 = vmax.f32 %v1829, 0.0
  %v2259 = vmax.f32 %v2032, 0.0
  %v2260 = vmax.f32 %v2235, 0.0
  %v2261 = vmax.f32 %v1628, 0.0
  %v2262 = vmax.f32 %v1831, 0.0
  %v2263 = vmax.f32 %v2034, 0.0
  %v2264 = vmax.f32 %v2237, 0.0
  %v2265 = vmax.f32 %v1631, 0.0
  %v2266 = vmax.f32 %v1834, 0.0
  %v2267 = vmax.f32 %v2037, 0.0
  %v2268 = vmax.f32 %v2240, 0.0
  %v2269 = vmax.f32 %v1633, 0.0
  %v2270 = vmax.f32 %v1836, 0.0
  %v2271 = vmax.f32 %v2039, 0.0
  %v2272 = vmax.f32 %v2242, 0.0
  %v2273 = vmax.f32 %v1636, 0.0
  %v2274 = vmax.f32 %v1839, 0.0
  %v2275 = vmax.f32 %v2042, 0.0
  %v2276 = vmax.f32 %v2245, 0.0
  %v2277 = vmax.f32 %v1638, 0.0
  %v2278 = vmax.f32 %v1841, 0.0
  %v2279 = vmax.f32 %v2044, 0.0
  %v2280 = vmax.f32 %v2247, 0.0
  %v2281 = vunpack.c.l.bf16 %v57
  %v2283 = vperm.slane %v2281, 0
  %v2284 = vperm.slane %v2281, 2
  %v2285 = vperm.slane %v2281, 4
  %v2286 = vperm.slane %v2281, 6
  %v2291 = vperm.slane %v2283, 0
  %v2292 = vperm.slane %v2284, 0
  %v2293 = vperm.slane %v2285, 0
  %v2294 = vperm.slane %v2286, 0
  %v2295 = vmul.f32 %v2249, %v2291
  %v2296 = vmul.f32 %v2250, %v2292
  %v2297 = vmul.f32 %v2251, %v2293
  %v2298 = vmul.f32 %v2252, %v2294
  %v2299 = vmul.f32 %v2253, %v2291
  %v2300 = vmul.f32 %v2254, %v2292
  %v2301 = vmul.f32 %v2255, %v2293
  %v2302 = vmul.f32 %v2256, %v2294
  %v2303 = vmul.f32 %v2257, %v2291
  %v2304 = vmul.f32 %v2258, %v2292
  %v2305 = vmul.f32 %v2259, %v2293
  %v2306 = vmul.f32 %v2260, %v2294
  %v2307 = vmul.f32 %v2261, %v2291
  %v2308 = vmul.f32 %v2262, %v2292
  %v2309 = vmul.f32 %v2263, %v2293
  %v2310 = vmul.f32 %v2264, %v2294
  %v2311 = vmul.f32 %v2265, %v2291
  %v2312 = vmul.f32 %v2266, %v2292
  %v2313 = vmul.f32 %v2267, %v2293
  %v2314 = vmul.f32 %v2268, %v2294
  %v2315 = vmul.f32 %v2269, %v2291
  %v2316 = vmul.f32 %v2270, %v2292
  %v2317 = vmul.f32 %v2271, %v2293
  %v2318 = vmul.f32 %v2272, %v2294
  %v2319 = vmul.f32 %v2273, %v2291
  %v2320 = vmul.f32 %v2274, %v2292
  %v2321 = vmul.f32 %v2275, %v2293
  %v2322 = vmul.f32 %v2276, %v2294
  %v2323 = vmul.f32 %v2277, %v2291
  %v2324 = vmul.f32 %v2278, %v2292
  %v2325 = vmul.f32 %v2279, %v2293
  %v2326 = vmul.f32 %v2280, %v2294
  %v2327 = vpack.c.bf16 %v2299, %v2295
  %v2328 = vpack.c.bf16 %v2300, %v2296
  %v2329 = vpack.c.bf16 %v2301, %v2297
  %v2330 = vpack.c.bf16 %v2302, %v2298
  %v2331 = vpack.c.bf16 %v2307, %v2303
  %v2332 = vpack.c.bf16 %v2308, %v2304
  %v2333 = vpack.c.bf16 %v2309, %v2305
  %v2334 = vpack.c.bf16 %v2310, %v2306
  %v2335 = vpack.c.bf16 %v2315, %v2311
  %v2336 = vpack.c.bf16 %v2316, %v2312
  %v2337 = vpack.c.bf16 %v2317, %v2313
  %v2338 = vpack.c.bf16 %v2318, %v2314
  %v2339 = vpack.c.bf16 %v2323, %v2319
  %v2340 = vpack.c.bf16 %v2324, %v2320
  %v2341 = vpack.c.bf16 %v2325, %v2321
  %v2342 = vpack.c.bf16 %v2326, %v2322
  %v2343 = vld [vmem:[%s4] sm:$0xff]
  %v2344 = vld [vmem:[%s4 + $0x8] sm:$0xff]
  %v2345 = vld [vmem:[%s4 + $0x10] sm:$0xff]
  %v2346 = vld [vmem:[%s4 + $0x18] sm:$0xff]
  %v2347 = vld [vmem:[%s4 + $0x20] sm:$0xff]
  %v2348 = vld [vmem:[%s4 + $0x28] sm:$0xff]
  %v2349 = vld [vmem:[%s4 + $0x30] sm:$0xff]
  %v2350 = vld [vmem:[%s4 + $0x38] sm:$0xff]
  %v2351 = vld [vmem:[%s4 + $0x40] sm:$0xff]
  %v2352 = vld [vmem:[%s4 + $0x48] sm:$0xff]
  %v2353 = vld [vmem:[%s4 + $0x50] sm:$0xff]
  %v2354 = vld [vmem:[%s4 + $0x58] sm:$0xff]
  %v2355 = vld [vmem:[%s4 + $0x60] sm:$0xff]
  %v2356 = vld [vmem:[%s4 + $0x68] sm:$0xff]
  %v2357 = vld [vmem:[%s4 + $0x70] sm:$0xff]
  %v2358 = vld [vmem:[%s4 + $0x78] sm:$0xff]
  %v2359 = vld [vmem:[%s4 + $0x80] sm:$0xff]
  %v2360 = vld [vmem:[%s4 + $0x88] sm:$0xff]
  %v2361 = vld [vmem:[%s4 + $0x90] sm:$0xff]
  %v2362 = vld [vmem:[%s4 + $0x98] sm:$0xff]
  %v2363 = vld [vmem:[%s4 + $0xa0] sm:$0xff]
  %v2364 = vld [vmem:[%s4 + $0xa8] sm:$0xff]
  %v2365 = vld [vmem:[%s4 + $0xb0] sm:$0xff]
  %v2366 = vld [vmem:[%s4 + $0xb8] sm:$0xff]
  %v2367 = vld [vmem:[%s4 + $0xc0] sm:$0xff]
  %v2368 = vld [vmem:[%s4 + $0xc8] sm:$0xff]
  %v2369 = vld [vmem:[%s4 + $0xd0] sm:$0xff]
  %v2370 = vld [vmem:[%s4 + $0xd8] sm:$0xff]
  %v2371 = vld [vmem:[%s4 + $0xe0] sm:$0xff]
  %v2372 = vld [vmem:[%s4 + $0xe8] sm:$0xff]
  %v2373 = vld [vmem:[%s4 + $0xf0] sm:$0xff]
  %v2374 = vld [vmem:[%s4 + $0xf8] sm:$0xff]
  %v2375 = vld [vmem:[%s4 + $0x100] sm:$0xff]
  %v2376 = vld [vmem:[%s4 + $0x108] sm:$0xff]
  %v2377 = vld [vmem:[%s4 + $0x110] sm:$0xff]
  %v2378 = vld [vmem:[%s4 + $0x118] sm:$0xff]
  %v2379 = vld [vmem:[%s4 + $0x120] sm:$0xff]
  %v2380 = vld [vmem:[%s4 + $0x128] sm:$0xff]
  %v2381 = vld [vmem:[%s4 + $0x130] sm:$0xff]
  %v2382 = vld [vmem:[%s4 + $0x138] sm:$0xff]
  %v2383 = vld [vmem:[%s4 + $0x140] sm:$0xff]
  %v2384 = vld [vmem:[%s4 + $0x148] sm:$0xff]
  %v2385 = vld [vmem:[%s4 + $0x150] sm:$0xff]
  %v2386 = vld [vmem:[%s4 + $0x158] sm:$0xff]
  %v2387 = vld [vmem:[%s4 + $0x160] sm:$0xff]
  %v2388 = vld [vmem:[%s4 + $0x168] sm:$0xff]
  %v2389 = vld [vmem:[%s4 + $0x170] sm:$0xff]
  %v2390 = vld [vmem:[%s4 + $0x178] sm:$0xff]
  %v2391 = vld [vmem:[%s4 + $0x180] sm:$0xff]
  %v2392 = vld [vmem:[%s4 + $0x188] sm:$0xff]
  %v2393 = vld [vmem:[%s4 + $0x190] sm:$0xff]
  %v2394 = vld [vmem:[%s4 + $0x198] sm:$0xff]
  %v2395 = vld [vmem:[%s4 + $0x1a0] sm:$0xff]
  %v2396 = vld [vmem:[%s4 + $0x1a8] sm:$0xff]
  %v2397 = vld [vmem:[%s4 + $0x1b0] sm:$0xff]
  %v2398 = vld [vmem:[%s4 + $0x1b8] sm:$0xff]
  %v2399 = vld [vmem:[%s4 + $0x1c0] sm:$0xff]
  %v2400 = vld [vmem:[%s4 + $0x1c8] sm:$0xff]
  %v2401 = vld [vmem:[%s4 + $0x1d0] sm:$0xff]
  %v2402 = vld [vmem:[%s4 + $0x1d8] sm:$0xff]
  %v2403 = vld [vmem:[%s4 + $0x1e0] sm:$0xff]
  %v2404 = vld [vmem:[%s4 + $0x1e8] sm:$0xff]
  %v2405 = vld [vmem:[%s4 + $0x1f0] sm:$0xff]
  %v2406 = vld [vmem:[%s4 + $0x1f8] sm:$0xff]
  %v2407 = vld [vmem:[%s4 + $0x200] sm:$0xff]
  %v2408 = vld [vmem:[%s4 + $0x208] sm:$0xff]
  %v2409 = vld [vmem:[%s4 + $0x210] sm:$0xff]
  %v2410 = vld [vmem:[%s4 + $0x218] sm:$0xff]
  %v2411 = vld [vmem:[%s4 + $0x220] sm:$0xff]
  %v2412 = vld [vmem:[%s4 + $0x228] sm:$0xff]
  %v2413 = vld [vmem:[%s4 + $0x230] sm:$0xff]
  %v2414 = vld [vmem:[%s4 + $0x238] sm:$0xff]
  %v2415 = vld [vmem:[%s4 + $0x240] sm:$0xff]
  %v2416 = vld [vmem:[%s4 + $0x248] sm:$0xff]
  %v2417 = vld [vmem:[%s4 + $0x250] sm:$0xff]
  %v2418 = vld [vmem:[%s4 + $0x258] sm:$0xff]
  %v2419 = vld [vmem:[%s4 + $0x260] sm:$0xff]
  %v2420 = vld [vmem:[%s4 + $0x268] sm:$0xff]
  %v2421 = vld [vmem:[%s4 + $0x270] sm:$0xff]
  %v2422 = vld [vmem:[%s4 + $0x278] sm:$0xff]
  %v2423 = vld [vmem:[%s4 + $0x280] sm:$0xff]
  %v2424 = vld [vmem:[%s4 + $0x288] sm:$0xff]
  %v2425 = vld [vmem:[%s4 + $0x290] sm:$0xff]
  %v2426 = vld [vmem:[%s4 + $0x298] sm:$0xff]
  %v2427 = vld [vmem:[%s4 + $0x2a0] sm:$0xff]
  %v2428 = vld [vmem:[%s4 + $0x2a8] sm:$0xff]
  %v2429 = vld [vmem:[%s4 + $0x2b0] sm:$0xff]
  %v2430 = vld [vmem:[%s4 + $0x2b8] sm:$0xff]
  %v2431 = vld [vmem:[%s4 + $0x2c0] sm:$0xff]
  %v2432 = vld [vmem:[%s4 + $0x2c8] sm:$0xff]
  %v2433 = vld [vmem:[%s4 + $0x2d0] sm:$0xff]
  %v2434 = vld [vmem:[%s4 + $0x2d8] sm:$0xff]
  %v2435 = vld [vmem:[%s4 + $0x2e0] sm:$0xff]
  %v2436 = vld [vmem:[%s4 + $0x2e8] sm:$0xff]
  %v2437 = vld [vmem:[%s4 + $0x2f0] sm:$0xff]
  %v2438 = vld [vmem:[%s4 + $0x2f8] sm:$0xff]
  %v2439 = vld [vmem:[%s4 + $0x300] sm:$0xff]
  %v2440 = vld [vmem:[%s4 + $0x308] sm:$0xff]
  %v2441 = vld [vmem:[%s4 + $0x310] sm:$0xff]
  %v2442 = vld [vmem:[%s4 + $0x318] sm:$0xff]
  %v2444 = vperm.slane %v60, 0
  %v2445 = vperm.slane %v60, 1
  %v2446 = vperm.slane %v60, 2
  %v2447 = vperm.slane %v60, 3
  %v2552 = vunpack.c.l.b16 %v2343
  %v2553 = vunpack.c.h.b16 %v2343
  %v2554 = vunpack.c.l.b16 %v2344
  %v2555 = vunpack.c.h.b16 %v2344
  %v2556 = vunpack.c.l.b16 %v2345
  %v2557 = vunpack.c.h.b16 %v2345
  %v2558 = vunpack.c.l.b16 %v2346
  %v2559 = vunpack.c.h.b16 %v2346
  %v2560 = vunpack.c.l.b16 %v2347
  %v2561 = vunpack.c.h.b16 %v2347
  %v2562 = vunpack.c.l.b16 %v2348
  %v2563 = vunpack.c.h.b16 %v2348
  %v2564 = vunpack.c.l.b16 %v2349
  %v2565 = vunpack.c.h.b16 %v2349
  %v2566 = vunpack.c.l.b16 %v2350
  %v2567 = vunpack.c.h.b16 %v2350
  %v2568 = vunpack.c.l.b16 %v2351
  %v2569 = vunpack.c.h.b16 %v2351
  %v2570 = vunpack.c.l.b16 %v2352
  %v2571 = vunpack.c.h.b16 %v2352
  %v2572 = vunpack.c.l.b16 %v2353
  %v2573 = vunpack.c.h.b16 %v2353
  %v2574 = vunpack.c.l.b16 %v2354
  %v2575 = vunpack.c.h.b16 %v2354
  %v2576 = vunpack.c.l.b16 %v2355
  %v2577 = vunpack.c.h.b16 %v2355
  %v2578 = vunpack.c.l.b16 %v2356
  %v2579 = vunpack.c.h.b16 %v2356
  %v2580 = vunpack.c.l.b16 %v2357
  %v2581 = vunpack.c.h.b16 %v2357
  %v2582 = vunpack.c.l.b16 %v2358
  %v2583 = vunpack.c.h.b16 %v2358
  %v2584 = vunpack.c.l.b16 %v2359
  %v2585 = vunpack.c.h.b16 %v2359
  %v2586 = vunpack.c.l.b16 %v2360
  %v2587 = vunpack.c.h.b16 %v2360
  %v2588 = vunpack.c.l.b16 %v2361
  %v2589 = vunpack.c.h.b16 %v2361
  %v2590 = vunpack.c.l.b16 %v2362
  %v2591 = vunpack.c.h.b16 %v2362
  %v2592 = vunpack.c.l.b16 %v2363
  %v2593 = vunpack.c.h.b16 %v2363
  %v2594 = vunpack.c.l.b16 %v2364
  %v2595 = vunpack.c.h.b16 %v2364
  %v2596 = vunpack.c.l.b16 %v2365
  %v2597 = vunpack.c.h.b16 %v2365
  %v2598 = vunpack.c.l.b16 %v2366
  %v2599 = vunpack.c.h.b16 %v2366
  %v2600 = vunpack.c.l.b16 %v2367
  %v2601 = vunpack.c.h.b16 %v2367
  %v2602 = vunpack.c.l.b16 %v2368
  %v2603 = vunpack.c.h.b16 %v2368
  %v2604 = vunpack.c.l.b16 %v2369
  %v2605 = vunpack.c.h.b16 %v2369
  %v2606 = vunpack.c.l.b16 %v2370
  %v2607 = vunpack.c.h.b16 %v2370
  %v2608 = vunpack.c.l.b16 %v2371
  %v2609 = vunpack.c.h.b16 %v2371
  %v2610 = vunpack.c.l.b16 %v2372
  %v2611 = vunpack.c.h.b16 %v2372
  %v2612 = vunpack.c.l.b16 %v2373
  %v2613 = vunpack.c.h.b16 %v2373
  %v2614 = vunpack.c.l.b16 %v2374
  %v2615 = vunpack.c.h.b16 %v2374
  %v2616 = vunpack.c.l.b16 %v2375
  %v2617 = vunpack.c.h.b16 %v2375
  %v2618 = vunpack.c.l.b16 %v2376
  %v2619 = vunpack.c.h.b16 %v2376
  %v2620 = vunpack.c.l.b16 %v2377
  %v2621 = vunpack.c.h.b16 %v2377
  %v2622 = vunpack.c.l.b16 %v2378
  %v2623 = vunpack.c.h.b16 %v2378
  %v2624 = vunpack.c.l.b16 %v2379
  %v2625 = vunpack.c.h.b16 %v2379
  %v2626 = vunpack.c.l.b16 %v2380
  %v2627 = vunpack.c.h.b16 %v2380
  %v2628 = vunpack.c.l.b16 %v2381
  %v2629 = vunpack.c.h.b16 %v2381
  %v2630 = vunpack.c.l.b16 %v2382
  %v2631 = vunpack.c.h.b16 %v2382
  %v2632 = vunpack.c.l.b16 %v2383
  %v2633 = vunpack.c.h.b16 %v2383
  %v2634 = vunpack.c.l.b16 %v2384
  %v2635 = vunpack.c.h.b16 %v2384
  %v2636 = vunpack.c.l.b16 %v2385
  %v2637 = vunpack.c.h.b16 %v2385
  %v2638 = vunpack.c.l.b16 %v2386
  %v2639 = vunpack.c.h.b16 %v2386
  %v2640 = vunpack.c.l.b16 %v2387
  %v2641 = vunpack.c.h.b16 %v2387
  %v2642 = vunpack.c.l.b16 %v2388
  %v2643 = vunpack.c.h.b16 %v2388
  %v2644 = vunpack.c.l.b16 %v2389
  %v2645 = vunpack.c.h.b16 %v2389
  %v2646 = vunpack.c.l.b16 %v2390
  %v2647 = vunpack.c.h.b16 %v2390
  %v2648 = vunpack.c.l.b16 %v2391
  %v2649 = vunpack.c.h.b16 %v2391
  %v2650 = vunpack.c.l.b16 %v2392
  %v2651 = vunpack.c.h.b16 %v2392
  %v2652 = vunpack.c.l.b16 %v2393
  %v2653 = vunpack.c.h.b16 %v2393
  %v2654 = vunpack.c.l.b16 %v2394
  %v2655 = vunpack.c.h.b16 %v2394
  %v2656 = vunpack.c.l.b16 %v2395
  %v2657 = vunpack.c.h.b16 %v2395
  %v2658 = vunpack.c.l.b16 %v2396
  %v2659 = vunpack.c.h.b16 %v2396
  %v2660 = vunpack.c.l.b16 %v2397
  %v2661 = vunpack.c.h.b16 %v2397
  %v2662 = vunpack.c.l.b16 %v2398
  %v2663 = vunpack.c.h.b16 %v2398
  %v2664 = vunpack.c.l.b16 %v2399
  %v2665 = vunpack.c.h.b16 %v2399
  %v2666 = vunpack.c.l.b16 %v2400
  %v2667 = vunpack.c.h.b16 %v2400
  %v2668 = vunpack.c.l.b16 %v2401
  %v2669 = vunpack.c.h.b16 %v2401
  %v2670 = vunpack.c.l.b16 %v2402
  %v2671 = vunpack.c.h.b16 %v2402
  %v2672 = vunpack.c.l.b16 %v2403
  %v2673 = vunpack.c.h.b16 %v2403
  %v2674 = vunpack.c.l.b16 %v2404
  %v2675 = vunpack.c.h.b16 %v2404
  %v2676 = vunpack.c.l.b16 %v2405
  %v2677 = vunpack.c.h.b16 %v2405
  %v2678 = vunpack.c.l.b16 %v2406
  %v2679 = vunpack.c.h.b16 %v2406
  %v2680 = vunpack.c.l.b16 %v2407
  %v2681 = vunpack.c.h.b16 %v2407
  %v2682 = vunpack.c.l.b16 %v2408
  %v2683 = vunpack.c.h.b16 %v2408
  %v2684 = vunpack.c.l.b16 %v2409
  %v2685 = vunpack.c.h.b16 %v2409
  %v2686 = vunpack.c.l.b16 %v2410
  %v2687 = vunpack.c.h.b16 %v2410
  %v2688 = vunpack.c.l.b16 %v2411
  %v2689 = vunpack.c.h.b16 %v2411
  %v2690 = vunpack.c.l.b16 %v2412
  %v2691 = vunpack.c.h.b16 %v2412
  %v2692 = vunpack.c.l.b16 %v2413
  %v2693 = vunpack.c.h.b16 %v2413
  %v2694 = vunpack.c.l.b16 %v2414
  %v2695 = vunpack.c.h.b16 %v2414
  %v2696 = vunpack.c.l.b16 %v2415
  %v2697 = vunpack.c.h.b16 %v2415
  %v2698 = vunpack.c.l.b16 %v2416
  %v2699 = vunpack.c.h.b16 %v2416
  %v2700 = vunpack.c.l.b16 %v2417
  %v2701 = vunpack.c.h.b16 %v2417
  %v2702 = vunpack.c.l.b16 %v2418
  %v2703 = vunpack.c.h.b16 %v2418
  %v2704 = vunpack.c.l.b16 %v2419
  %v2705 = vunpack.c.h.b16 %v2419
  %v2706 = vunpack.c.l.b16 %v2420
  %v2707 = vunpack.c.h.b16 %v2420
  %v2708 = vunpack.c.l.b16 %v2421
  %v2709 = vunpack.c.h.b16 %v2421
  %v2710 = vunpack.c.l.b16 %v2422
  %v2711 = vunpack.c.h.b16 %v2422
  %v2712 = vunpack.c.l.b16 %v2423
  %v2713 = vunpack.c.h.b16 %v2423
  %v2714 = vunpack.c.l.b16 %v2424
  %v2715 = vunpack.c.h.b16 %v2424
  %v2716 = vunpack.c.l.b16 %v2425
  %v2717 = vunpack.c.h.b16 %v2425
  %v2718 = vunpack.c.l.b16 %v2426
  %v2719 = vunpack.c.h.b16 %v2426
  %v2720 = vunpack.c.l.b16 %v2427
  %v2721 = vunpack.c.h.b16 %v2427
  %v2722 = vunpack.c.l.b16 %v2428
  %v2723 = vunpack.c.h.b16 %v2428
  %v2724 = vunpack.c.l.b16 %v2429
  %v2725 = vunpack.c.h.b16 %v2429
  %v2726 = vunpack.c.l.b16 %v2430
  %v2727 = vunpack.c.h.b16 %v2430
  %v2728 = vunpack.c.l.b16 %v2431
  %v2729 = vunpack.c.h.b16 %v2431
  %v2730 = vunpack.c.l.b16 %v2432
  %v2731 = vunpack.c.h.b16 %v2432
  %v2732 = vunpack.c.l.b16 %v2433
  %v2733 = vunpack.c.h.b16 %v2433
  %v2734 = vunpack.c.l.b16 %v2434
  %v2735 = vunpack.c.h.b16 %v2434
  %v2736 = vunpack.c.l.b16 %v2435
  %v2737 = vunpack.c.h.b16 %v2435
  %v2738 = vunpack.c.l.b16 %v2436
  %v2739 = vunpack.c.h.b16 %v2436
  %v2740 = vunpack.c.l.b16 %v2437
  %v2741 = vunpack.c.h.b16 %v2437
  %v2742 = vunpack.c.l.b16 %v2438
  %v2743 = vunpack.c.h.b16 %v2438
  %v2744 = vunpack.c.l.b16 %v2439
  %v2745 = vunpack.c.h.b16 %v2439
  %v2746 = vunpack.c.l.b16 %v2440
  %v2747 = vunpack.c.h.b16 %v2440
  %v2748 = vunpack.c.l.b16 %v2441
  %v2749 = vunpack.c.h.b16 %v2441
  %v2750 = vunpack.c.l.b16 %v2442
  %v2751 = vunpack.c.h.b16 %v2442
  %v2752 = vpack.c.b16 %v2556, %v2552
  %v2753 = vpack.c.b16 %v2557, %v2553
  %v2754 = vpack.c.b16 %v2558, %v2554
  %v2755 = vpack.c.b16 %v2559, %v2555
  %v2756 = vpack.c.b16 %v2564, %v2560
  %v2757 = vpack.c.b16 %v2565, %v2561
  %v2758 = vpack.c.b16 %v2566, %v2562
  %v2759 = vpack.c.b16 %v2567, %v2563
  %v2760 = vpack.c.b16 %v2572, %v2568
  %v2761 = vpack.c.b16 %v2573, %v2569
  %v2762 = vpack.c.b16 %v2574, %v2570
  %v2763 = vpack.c.b16 %v2575, %v2571
  %v2764 = vpack.c.b16 %v2580, %v2576
  %v2765 = vpack.c.b16 %v2581, %v2577
  %v2766 = vpack.c.b16 %v2582, %v2578
  %v2767 = vpack.c.b16 %v2583, %v2579
  %v2768 = vpack.c.b16 %v2588, %v2584
  %v2769 = vpack.c.b16 %v2589, %v2585
  %v2770 = vpack.c.b16 %v2590, %v2586
  %v2771 = vpack.c.b16 %v2591, %v2587
  %v2772 = vpack.c.b16 %v2596, %v2592
  %v2773 = vpack.c.b16 %v2597, %v2593
  %v2774 = vpack.c.b16 %v2598, %v2594
  %v2775 = vpack.c.b16 %v2599, %v2595
  %v2776 = vpack.c.b16 %v2604, %v2600
  %v2777 = vpack.c.b16 %v2605, %v2601
  %v2778 = vpack.c.b16 %v2606, %v2602
  %v2779 = vpack.c.b16 %v2607, %v2603
  %v2780 = vpack.c.b16 %v2612, %v2608
  %v2781 = vpack.c.b16 %v2613, %v2609
  %v2782 = vpack.c.b16 %v2614, %v2610
  %v2783 = vpack.c.b16 %v2615, %v2611
  %v2784 = vpack.c.b16 %v2620, %v2616
  %v2785 = vpack.c.b16 %v2621, %v2617
  %v2786 = vpack.c.b16 %v2622, %v2618
  %v2787 = vpack.c.b16 %v2623, %v2619
  %v2788 = vpack.c.b16 %v2628, %v2624
  %v2789 = vpack.c.b16 %v2629, %v2625
  %v2790 = vpack.c.b16 %v2630, %v2626
  %v2791 = vpack.c.b16 %v2631, %v2627
  %v2792 = vpack.c.b16 %v2636, %v2632
  %v2793 = vpack.c.b16 %v2637, %v2633
  %v2794 = vpack.c.b16 %v2638, %v2634
  %v2795 = vpack.c.b16 %v2639, %v2635
  %v2796 = vpack.c.b16 %v2644, %v2640
  %v2797 = vpack.c.b16 %v2645, %v2641
  %v2798 = vpack.c.b16 %v2646, %v2642
  %v2799 = vpack.c.b16 %v2647, %v2643
  %v2800 = vpack.c.b16 %v2652, %v2648
  %v2801 = vpack.c.b16 %v2653, %v2649
  %v2802 = vpack.c.b16 %v2654, %v2650
  %v2803 = vpack.c.b16 %v2655, %v2651
  %v2804 = vpack.c.b16 %v2660, %v2656
  %v2805 = vpack.c.b16 %v2661, %v2657
  %v2806 = vpack.c.b16 %v2662, %v2658
  %v2807 = vpack.c.b16 %v2663, %v2659
  %v2808 = vpack.c.b16 %v2668, %v2664
  %v2809 = vpack.c.b16 %v2669, %v2665
  %v2810 = vpack.c.b16 %v2670, %v2666
  %v2811 = vpack.c.b16 %v2671, %v2667
  %v2812 = vpack.c.b16 %v2676, %v2672
  %v2813 = vpack.c.b16 %v2677, %v2673
  %v2814 = vpack.c.b16 %v2678, %v2674
  %v2815 = vpack.c.b16 %v2679, %v2675
  %v2816 = vpack.c.b16 %v2684, %v2680
  %v2817 = vpack.c.b16 %v2685, %v2681
  %v2818 = vpack.c.b16 %v2686, %v2682
  %v2819 = vpack.c.b16 %v2687, %v2683
  %v2820 = vpack.c.b16 %v2692, %v2688
  %v2821 = vpack.c.b16 %v2693, %v2689
  %v2822 = vpack.c.b16 %v2694, %v2690
  %v2823 = vpack.c.b16 %v2695, %v2691
  %v2824 = vpack.c.b16 %v2700, %v2696
  %v2825 = vpack.c.b16 %v2701, %v2697
  %v2826 = vpack.c.b16 %v2702, %v2698
  %v2827 = vpack.c.b16 %v2703, %v2699
  %v2828 = vpack.c.b16 %v2708, %v2704
  %v2829 = vpack.c.b16 %v2709, %v2705
  %v2830 = vpack.c.b16 %v2710, %v2706
  %v2831 = vpack.c.b16 %v2711, %v2707
  %v2832 = vpack.c.b16 %v2716, %v2712
  %v2833 = vpack.c.b16 %v2717, %v2713
  %v2834 = vpack.c.b16 %v2718, %v2714
  %v2835 = vpack.c.b16 %v2719, %v2715
  %v2836 = vpack.c.b16 %v2724, %v2720
  %v2837 = vpack.c.b16 %v2725, %v2721
  %v2838 = vpack.c.b16 %v2726, %v2722
  %v2839 = vpack.c.b16 %v2727, %v2723
  %v2840 = vpack.c.b16 %v2732, %v2728
  %v2841 = vpack.c.b16 %v2733, %v2729
  %v2842 = vpack.c.b16 %v2734, %v2730
  %v2843 = vpack.c.b16 %v2735, %v2731
  %v2844 = vpack.c.b16 %v2740, %v2736
  %v2845 = vpack.c.b16 %v2741, %v2737
  %v2846 = vpack.c.b16 %v2742, %v2738
  %v2847 = vpack.c.b16 %v2743, %v2739
  %v2848 = vpack.c.b16 %v2748, %v2744
  %v2849 = vpack.c.b16 %v2749, %v2745
  %v2850 = vpack.c.b16 %v2750, %v2746
  %v2851 = vpack.c.b16 %v2751, %v2747
  %v2953 = vsel %vm1424, %v2330, 0
  %v2956 = vsel %vm1424, %v2334, 0
  %v2959 = vsel %vm1424, %v2338, 0
  %v2962 = vsel %vm1424, %v2342, 0
  %2964 = vmatpush.bf16.msra.mxu0 %v2780
  %2965 = vmatpush.bf16.msra.mxu0 %v2776
  %2966 = vmatpush.bf16.msra.mxu0 %v2772
  %2967 = vmatpush.bf16.msra.mxu0 %v2768
  %2968 = vmatpush.bf16.msra.mxu0 %v2764
  %2969 = vmatpush.bf16.msra.mxu0 %v2760
  %2970 = vmatpush.bf16.msra.mxu0 %v2756
  %2971 = vmatpush.bf16.msra.mxu0 %v2752
  %2972 = vmatmul.bf16.gmra.mxu0 %v2327
  %v2973 = vpop.f32.mrf.mxu0
  %v2974 = vadd.f32 %v2444, %v2973
  %v2975 = vpop.f32.mrf.mxu0
  %v2976 = vadd.f32 %v2444, %v2975
  %2977 = vmatmul.bf16.gmra.mxu0 %v2331
  %v2978 = vpop.f32.mrf.mxu0
  %v2979 = vadd.f32 %v2444, %v2978
  %v2980 = vpop.f32.mrf.mxu0
  %v2981 = vadd.f32 %v2444, %v2980
  %2982 = vmatmul.bf16.gmra.mxu0 %v2335
  %v2983 = vpop.f32.mrf.mxu0
  %v2984 = vadd.f32 %v2444, %v2983
  %v2985 = vpop.f32.mrf.mxu0
  %v2986 = vadd.f32 %v2444, %v2985
  %2987 = vmatmul.bf16.gmra.mxu0 %v2339
  %v2988 = vpop.f32.mrf.mxu0
  %v2989 = vadd.f32 %v2444, %v2988
  %v2990 = vpop.f32.mrf.mxu0
  %v2991 = vadd.f32 %v2444, %v2990
  %2992 = vdwg.mxu0
  %2993 = vmatpush.bf16.msra.mxu0 %v2812
  %2994 = vmatpush.bf16.msra.mxu0 %v2808
  %2995 = vmatpush.bf16.msra.mxu0 %v2804
  %2996 = vmatpush.bf16.msra.mxu0 %v2800
  %2997 = vmatpush.bf16.msra.mxu0 %v2796
  %2998 = vmatpush.bf16.msra.mxu0 %v2792
  %2999 = vmatpush.bf16.msra.mxu0 %v2788
  %3000 = vmatpush.bf16.msra.mxu0 %v2784
  %3001 = vmatmul.bf16.gmra.mxu0 %v2328
  %v3002 = vpop.f32.mrf.mxu0
  %v3003 = vadd.f32 %v2974, %v3002
  %v3004 = vpop.f32.mrf.mxu0
  %v3005 = vadd.f32 %v2976, %v3004
  %3006 = vmatmul.bf16.gmra.mxu0 %v2332
  %v3007 = vpop.f32.mrf.mxu0
  %v3008 = vadd.f32 %v2979, %v3007
  %v3009 = vpop.f32.mrf.mxu0
  %v3010 = vadd.f32 %v2981, %v3009
  %3011 = vmatmul.bf16.gmra.mxu0 %v2336
  %v3012 = vpop.f32.mrf.mxu0
  %v3013 = vadd.f32 %v2984, %v3012
  %v3014 = vpop.f32.mrf.mxu0
  %v3015 = vadd.f32 %v2986, %v3014
  %3016 = vmatmul.bf16.gmra.mxu0 %v2340
  %v3017 = vpop.f32.mrf.mxu0
  %v3018 = vadd.f32 %v2989, %v3017
  %v3019 = vpop.f32.mrf.mxu0
  %v3020 = vadd.f32 %v2991, %v3019
  %3021 = vdwg.mxu0
  %3022 = vmatpush.bf16.msra.mxu0 %v2844
  %3023 = vmatpush.bf16.msra.mxu0 %v2840
  %3024 = vmatpush.bf16.msra.mxu0 %v2836
  %3025 = vmatpush.bf16.msra.mxu0 %v2832
  %3026 = vmatpush.bf16.msra.mxu0 %v2828
  %3027 = vmatpush.bf16.msra.mxu0 %v2824
  %3028 = vmatpush.bf16.msra.mxu0 %v2820
  %3029 = vmatpush.bf16.msra.mxu0 %v2816
  %3030 = vmatmul.bf16.gmra.mxu0 %v2329
  %v3031 = vpop.f32.mrf.mxu0
  %v3032 = vadd.f32 %v3003, %v3031
  %v3033 = vpop.f32.mrf.mxu0
  %v3034 = vadd.f32 %v3005, %v3033
  %3035 = vmatmul.bf16.gmra.mxu0 %v2333
  %v3036 = vpop.f32.mrf.mxu0
  %v3037 = vadd.f32 %v3008, %v3036
  %v3038 = vpop.f32.mrf.mxu0
  %v3039 = vadd.f32 %v3010, %v3038
  %3040 = vmatmul.bf16.gmra.mxu0 %v2337
  %v3041 = vpop.f32.mrf.mxu0
  %v3042 = vadd.f32 %v3013, %v3041
  %v3043 = vpop.f32.mrf.mxu0
  %v3044 = vadd.f32 %v3015, %v3043
  %3045 = vmatmul.bf16.gmra.mxu0 %v2341
  %v3046 = vpop.f32.mrf.mxu0
  %v3047 = vadd.f32 %v3018, %v3046
  %v3048 = vpop.f32.mrf.mxu0
  %v3049 = vadd.f32 %v3020, %v3048
  %3050 = vdwg.mxu0
  %3051 = vmatpush.bf16.msra.mxu0 0
  %3052 = vmatpush.bf16.msra.mxu0 0
  %3053 = vmatpush.bf16.msra.mxu0 0
  %3054 = vmatpush.bf16.msra.mxu0 0
  %3055 = vmatpush.bf16.msra.mxu0 0
  %3056 = vmatpush.bf16.msra.mxu0 0
  %3057 = vmatpush.bf16.msra.mxu0 0
  %3058 = vmatpush.bf16.msra.mxu0 %v2848
  %3059 = vmatmul.bf16.gmra.mxu0 %v2953
  %v3060 = vpop.f32.mrf.mxu0
  %v3061 = vadd.f32 %v3032, %v3060
  %v3062 = vpop.f32.mrf.mxu0
  %v3063 = vadd.f32 %v3034, %v3062
  %3064 = vmatmul.bf16.gmra.mxu0 %v2956
  %v3065 = vpop.f32.mrf.mxu0
  %v3066 = vadd.f32 %v3037, %v3065
  %v3067 = vpop.f32.mrf.mxu0
  %v3068 = vadd.f32 %v3039, %v3067
  %3069 = vmatmul.bf16.gmra.mxu0 %v2959
  %v3070 = vpop.f32.mrf.mxu0
  %v3071 = vadd.f32 %v3042, %v3070
  %v3072 = vpop.f32.mrf.mxu0
  %v3073 = vadd.f32 %v3044, %v3072
  %3074 = vmatmul.bf16.gmra.mxu0 %v2962
  %v3075 = vpop.f32.mrf.mxu0
  %v3076 = vadd.f32 %v3047, %v3075
  %v3077 = vpop.f32.mrf.mxu0
  %v3078 = vadd.f32 %v3049, %v3077
  %3079 = vdwg.mxu0
  %3080 = vmatpush.bf16.msra.mxu0 %v2781
  %3081 = vmatpush.bf16.msra.mxu0 %v2777
  %3082 = vmatpush.bf16.msra.mxu0 %v2773
  %3083 = vmatpush.bf16.msra.mxu0 %v2769
  %3084 = vmatpush.bf16.msra.mxu0 %v2765
  %3085 = vmatpush.bf16.msra.mxu0 %v2761
  %3086 = vmatpush.bf16.msra.mxu0 %v2757
  %3087 = vmatpush.bf16.msra.mxu0 %v2753
  %3088 = vmatmul.bf16.gmra.mxu0 %v2327
  %v3089 = vpop.f32.mrf.mxu0
  %v3090 = vadd.f32 %v2445, %v3089
  %v3091 = vpop.f32.mrf.mxu0
  %v3092 = vadd.f32 %v2445, %v3091
  %3093 = vmatmul.bf16.gmra.mxu0 %v2331
  %v3094 = vpop.f32.mrf.mxu0
  %v3095 = vadd.f32 %v2445, %v3094
  %v3096 = vpop.f32.mrf.mxu0
  %v3097 = vadd.f32 %v2445, %v3096
  %3098 = vmatmul.bf16.gmra.mxu0 %v2335
  %v3099 = vpop.f32.mrf.mxu0
  %v3100 = vadd.f32 %v2445, %v3099
  %v3101 = vpop.f32.mrf.mxu0
  %v3102 = vadd.f32 %v2445, %v3101
  %3103 = vmatmul.bf16.gmra.mxu0 %v2339
  %v3104 = vpop.f32.mrf.mxu0
  %v3105 = vadd.f32 %v2445, %v3104
  %v3106 = vpop.f32.mrf.mxu0
  %v3107 = vadd.f32 %v2445, %v3106
  %3108 = vdwg.mxu0
  %3109 = vmatpush.bf16.msra.mxu0 %v2813
  %3110 = vmatpush.bf16.msra.mxu0 %v2809
  %3111 = vmatpush.bf16.msra.mxu0 %v2805
  %3112 = vmatpush.bf16.msra.mxu0 %v2801
  %3113 = vmatpush.bf16.msra.mxu0 %v2797
  %3114 = vmatpush.bf16.msra.mxu0 %v2793
  %3115 = vmatpush.bf16.msra.mxu0 %v2789
  %3116 = vmatpush.bf16.msra.mxu0 %v2785
  %3117 = vmatmul.bf16.gmra.mxu0 %v2328
  %v3118 = vpop.f32.mrf.mxu0
  %v3119 = vadd.f32 %v3090, %v3118
  %v3120 = vpop.f32.mrf.mxu0
  %v3121 = vadd.f32 %v3092, %v3120
  %3122 = vmatmul.bf16.gmra.mxu0 %v2332
  %v3123 = vpop.f32.mrf.mxu0
  %v3124 = vadd.f32 %v3095, %v3123
  %v3125 = vpop.f32.mrf.mxu0
  %v3126 = vadd.f32 %v3097, %v3125
  %3127 = vmatmul.bf16.gmra.mxu0 %v2336
  %v3128 = vpop.f32.mrf.mxu0
  %v3129 = vadd.f32 %v3100, %v3128
  %v3130 = vpop.f32.mrf.mxu0
  %v3131 = vadd.f32 %v3102, %v3130
  %3132 = vmatmul.bf16.gmra.mxu0 %v2340
  %v3133 = vpop.f32.mrf.mxu0
  %v3134 = vadd.f32 %v3105, %v3133
  %v3135 = vpop.f32.mrf.mxu0
  %v3136 = vadd.f32 %v3107, %v3135
  %3137 = vdwg.mxu0
  %3138 = vmatpush.bf16.msra.mxu0 %v2845
  %3139 = vmatpush.bf16.msra.mxu0 %v2841
  %3140 = vmatpush.bf16.msra.mxu0 %v2837
  %3141 = vmatpush.bf16.msra.mxu0 %v2833
  %3142 = vmatpush.bf16.msra.mxu0 %v2829
  %3143 = vmatpush.bf16.msra.mxu0 %v2825
  %3144 = vmatpush.bf16.msra.mxu0 %v2821
  %3145 = vmatpush.bf16.msra.mxu0 %v2817
  %3146 = vmatmul.bf16.gmra.mxu0 %v2329
  %v3147 = vpop.f32.mrf.mxu0
  %v3148 = vadd.f32 %v3119, %v3147
  %v3149 = vpop.f32.mrf.mxu0
  %v3150 = vadd.f32 %v3121, %v3149
  %3151 = vmatmul.bf16.gmra.mxu0 %v2333
  %v3152 = vpop.f32.mrf.mxu0
  %v3153 = vadd.f32 %v3124, %v3152
  %v3154 = vpop.f32.mrf.mxu0
  %v3155 = vadd.f32 %v3126, %v3154
  %3156 = vmatmul.bf16.gmra.mxu0 %v2337
  %v3157 = vpop.f32.mrf.mxu0
  %v3158 = vadd.f32 %v3129, %v3157
  %v3159 = vpop.f32.mrf.mxu0
  %v3160 = vadd.f32 %v3131, %v3159
  %3161 = vmatmul.bf16.gmra.mxu0 %v2341
  %v3162 = vpop.f32.mrf.mxu0
  %v3163 = vadd.f32 %v3134, %v3162
  %v3164 = vpop.f32.mrf.mxu0
  %v3165 = vadd.f32 %v3136, %v3164
  %3166 = vdwg.mxu0
  %3167 = vmatpush.bf16.msra.mxu0 0
  %3168 = vmatpush.bf16.msra.mxu0 0
  %3169 = vmatpush.bf16.msra.mxu0 0
  %3170 = vmatpush.bf16.msra.mxu0 0
  %3171 = vmatpush.bf16.msra.mxu0 0
  %3172 = vmatpush.bf16.msra.mxu0 0
  %3173 = vmatpush.bf16.msra.mxu0 0
  %3174 = vmatpush.bf16.msra.mxu0 %v2849
  %3175 = vmatmul.bf16.gmra.mxu0 %v2953
  %v3176 = vpop.f32.mrf.mxu0
  %v3177 = vadd.f32 %v3148, %v3176
  %v3178 = vpop.f32.mrf.mxu0
  %v3179 = vadd.f32 %v3150, %v3178
  %3180 = vmatmul.bf16.gmra.mxu0 %v2956
  %v3181 = vpop.f32.mrf.mxu0
  %v3182 = vadd.f32 %v3153, %v3181
  %v3183 = vpop.f32.mrf.mxu0
  %v3184 = vadd.f32 %v3155, %v3183
  %3185 = vmatmul.bf16.gmra.mxu0 %v2959
  %v3186 = vpop.f32.mrf.mxu0
  %v3187 = vadd.f32 %v3158, %v3186
  %v3188 = vpop.f32.mrf.mxu0
  %v3189 = vadd.f32 %v3160, %v3188
  %3190 = vmatmul.bf16.gmra.mxu0 %v2962
  %v3191 = vpop.f32.mrf.mxu0
  %v3192 = vadd.f32 %v3163, %v3191
  %v3193 = vpop.f32.mrf.mxu0
  %v3194 = vadd.f32 %v3165, %v3193
  %3195 = vdwg.mxu0
  %3196 = vmatpush.bf16.msra.mxu0 %v2782
  %3197 = vmatpush.bf16.msra.mxu0 %v2778
  %3198 = vmatpush.bf16.msra.mxu0 %v2774
  %3199 = vmatpush.bf16.msra.mxu0 %v2770
  %3200 = vmatpush.bf16.msra.mxu0 %v2766
  %3201 = vmatpush.bf16.msra.mxu0 %v2762
  %3202 = vmatpush.bf16.msra.mxu0 %v2758
  %3203 = vmatpush.bf16.msra.mxu0 %v2754
  %3204 = vmatmul.bf16.gmra.mxu0 %v2327
  %v3205 = vpop.f32.mrf.mxu0
  %v3206 = vadd.f32 %v2446, %v3205
  %v3207 = vpop.f32.mrf.mxu0
  %v3208 = vadd.f32 %v2446, %v3207
  %3209 = vmatmul.bf16.gmra.mxu0 %v2331
  %v3210 = vpop.f32.mrf.mxu0
  %v3211 = vadd.f32 %v2446, %v3210
  %v3212 = vpop.f32.mrf.mxu0
  %v3213 = vadd.f32 %v2446, %v3212
  %3214 = vmatmul.bf16.gmra.mxu0 %v2335
  %v3215 = vpop.f32.mrf.mxu0
  %v3216 = vadd.f32 %v2446, %v3215
  %v3217 = vpop.f32.mrf.mxu0
  %v3218 = vadd.f32 %v2446, %v3217
  %3219 = vmatmul.bf16.gmra.mxu0 %v2339
  %v3220 = vpop.f32.mrf.mxu0
  %v3221 = vadd.f32 %v2446, %v3220
  %v3222 = vpop.f32.mrf.mxu0
  %v3223 = vadd.f32 %v2446, %v3222
  %3224 = vdwg.mxu0
  %3225 = vmatpush.bf16.msra.mxu0 %v2814
  %3226 = vmatpush.bf16.msra.mxu0 %v2810
  %3227 = vmatpush.bf16.msra.mxu0 %v2806
  %3228 = vmatpush.bf16.msra.mxu0 %v2802
  %3229 = vmatpush.bf16.msra.mxu0 %v2798
  %3230 = vmatpush.bf16.msra.mxu0 %v2794
  %3231 = vmatpush.bf16.msra.mxu0 %v2790
  %3232 = vmatpush.bf16.msra.mxu0 %v2786
  %3233 = vmatmul.bf16.gmra.mxu0 %v2328
  %v3234 = vpop.f32.mrf.mxu0
  %v3235 = vadd.f32 %v3206, %v3234
  %v3236 = vpop.f32.mrf.mxu0
  %v3237 = vadd.f32 %v3208, %v3236
  %3238 = vmatmul.bf16.gmra.mxu0 %v2332
  %v3239 = vpop.f32.mrf.mxu0
  %v3240 = vadd.f32 %v3211, %v3239
  %v3241 = vpop.f32.mrf.mxu0
  %v3242 = vadd.f32 %v3213, %v3241
  %3243 = vmatmul.bf16.gmra.mxu0 %v2336
  %v3244 = vpop.f32.mrf.mxu0
  %v3245 = vadd.f32 %v3216, %v3244
  %v3246 = vpop.f32.mrf.mxu0
  %v3247 = vadd.f32 %v3218, %v3246
  %3248 = vmatmul.bf16.gmra.mxu0 %v2340
  %v3249 = vpop.f32.mrf.mxu0
  %v3250 = vadd.f32 %v3221, %v3249
  %v3251 = vpop.f32.mrf.mxu0
  %v3252 = vadd.f32 %v3223, %v3251
  %3253 = vdwg.mxu0
  %3254 = vmatpush.bf16.msra.mxu0 %v2846
  %3255 = vmatpush.bf16.msra.mxu0 %v2842
  %3256 = vmatpush.bf16.msra.mxu0 %v2838
  %3257 = vmatpush.bf16.msra.mxu0 %v2834
  %3258 = vmatpush.bf16.msra.mxu0 %v2830
  %3259 = vmatpush.bf16.msra.mxu0 %v2826
  %3260 = vmatpush.bf16.msra.mxu0 %v2822
  %3261 = vmatpush.bf16.msra.mxu0 %v2818
  %3262 = vmatmul.bf16.gmra.mxu0 %v2329
  %v3263 = vpop.f32.mrf.mxu0
  %v3264 = vadd.f32 %v3235, %v3263
  %v3265 = vpop.f32.mrf.mxu0
  %v3266 = vadd.f32 %v3237, %v3265
  %3267 = vmatmul.bf16.gmra.mxu0 %v2333
  %v3268 = vpop.f32.mrf.mxu0
  %v3269 = vadd.f32 %v3240, %v3268
  %v3270 = vpop.f32.mrf.mxu0
  %v3271 = vadd.f32 %v3242, %v3270
  %3272 = vmatmul.bf16.gmra.mxu0 %v2337
  %v3273 = vpop.f32.mrf.mxu0
  %v3274 = vadd.f32 %v3245, %v3273
  %v3275 = vpop.f32.mrf.mxu0
  %v3276 = vadd.f32 %v3247, %v3275
  %3277 = vmatmul.bf16.gmra.mxu0 %v2341
  %v3278 = vpop.f32.mrf.mxu0
  %v3279 = vadd.f32 %v3250, %v3278
  %v3280 = vpop.f32.mrf.mxu0
  %v3281 = vadd.f32 %v3252, %v3280
  %3282 = vdwg.mxu0
  %3283 = vmatpush.bf16.msra.mxu0 0
  %3284 = vmatpush.bf16.msra.mxu0 0
  %3285 = vmatpush.bf16.msra.mxu0 0
  %3286 = vmatpush.bf16.msra.mxu0 0
  %3287 = vmatpush.bf16.msra.mxu0 0
  %3288 = vmatpush.bf16.msra.mxu0 0
  %3289 = vmatpush.bf16.msra.mxu0 0
  %3290 = vmatpush.bf16.msra.mxu0 %v2850
  %3291 = vmatmul.bf16.gmra.mxu0 %v2953
  %v3292 = vpop.f32.mrf.mxu0
  %v3293 = vadd.f32 %v3264, %v3292
  %v3294 = vpop.f32.mrf.mxu0
  %v3295 = vadd.f32 %v3266, %v3294
  %3296 = vmatmul.bf16.gmra.mxu0 %v2956
  %v3297 = vpop.f32.mrf.mxu0
  %v3298 = vadd.f32 %v3269, %v3297
  %v3299 = vpop.f32.mrf.mxu0
  %v3300 = vadd.f32 %v3271, %v3299
  %3301 = vmatmul.bf16.gmra.mxu0 %v2959
  %v3302 = vpop.f32.mrf.mxu0
  %v3303 = vadd.f32 %v3274, %v3302
  %v3304 = vpop.f32.mrf.mxu0
  %v3305 = vadd.f32 %v3276, %v3304
  %3306 = vmatmul.bf16.gmra.mxu0 %v2962
  %v3307 = vpop.f32.mrf.mxu0
  %v3308 = vadd.f32 %v3279, %v3307
  %v3309 = vpop.f32.mrf.mxu0
  %v3310 = vadd.f32 %v3281, %v3309
  %3311 = vdwg.mxu0
  %3312 = vmatpush.bf16.msra.mxu0 %v2783
  %3313 = vmatpush.bf16.msra.mxu0 %v2779
  %3314 = vmatpush.bf16.msra.mxu0 %v2775
  %3315 = vmatpush.bf16.msra.mxu0 %v2771
  %3316 = vmatpush.bf16.msra.mxu0 %v2767
  %3317 = vmatpush.bf16.msra.mxu0 %v2763
  %3318 = vmatpush.bf16.msra.mxu0 %v2759
  %3319 = vmatpush.bf16.msra.mxu0 %v2755
  %3320 = vmatmul.bf16.gmra.mxu0 %v2327
  %v3321 = vpop.f32.mrf.mxu0
  %v3322 = vadd.f32 %v2447, %v3321
  %v3323 = vpop.f32.mrf.mxu0
  %v3324 = vadd.f32 %v2447, %v3323
  %3325 = vmatmul.bf16.gmra.mxu0 %v2331
  %v3326 = vpop.f32.mrf.mxu0
  %v3327 = vadd.f32 %v2447, %v3326
  %v3328 = vpop.f32.mrf.mxu0
  %v3329 = vadd.f32 %v2447, %v3328
  %3330 = vmatmul.bf16.gmra.mxu0 %v2335
  %v3331 = vpop.f32.mrf.mxu0
  %v3332 = vadd.f32 %v2447, %v3331
  %v3333 = vpop.f32.mrf.mxu0
  %v3334 = vadd.f32 %v2447, %v3333
  %3335 = vmatmul.bf16.gmra.mxu0 %v2339
  %v3336 = vpop.f32.mrf.mxu0
  %v3337 = vadd.f32 %v2447, %v3336
  %v3338 = vpop.f32.mrf.mxu0
  %v3339 = vadd.f32 %v2447, %v3338
  %3340 = vdwg.mxu0
  %3341 = vmatpush.bf16.msra.mxu0 %v2815
  %3342 = vmatpush.bf16.msra.mxu0 %v2811
  %3343 = vmatpush.bf16.msra.mxu0 %v2807
  %3344 = vmatpush.bf16.msra.mxu0 %v2803
  %3345 = vmatpush.bf16.msra.mxu0 %v2799
  %3346 = vmatpush.bf16.msra.mxu0 %v2795
  %3347 = vmatpush.bf16.msra.mxu0 %v2791
  %3348 = vmatpush.bf16.msra.mxu0 %v2787
  %3349 = vmatmul.bf16.gmra.mxu0 %v2328
  %v3350 = vpop.f32.mrf.mxu0
  %v3351 = vadd.f32 %v3322, %v3350
  %v3352 = vpop.f32.mrf.mxu0
  %v3353 = vadd.f32 %v3324, %v3352
  %3354 = vmatmul.bf16.gmra.mxu0 %v2332
  %v3355 = vpop.f32.mrf.mxu0
  %v3356 = vadd.f32 %v3327, %v3355
  %v3357 = vpop.f32.mrf.mxu0
  %v3358 = vadd.f32 %v3329, %v3357
  %3359 = vmatmul.bf16.gmra.mxu0 %v2336
  %v3360 = vpop.f32.mrf.mxu0
  %v3361 = vadd.f32 %v3332, %v3360
  %v3362 = vpop.f32.mrf.mxu0
  %v3363 = vadd.f32 %v3334, %v3362
  %3364 = vmatmul.bf16.gmra.mxu0 %v2340
  %v3365 = vpop.f32.mrf.mxu0
  %v3366 = vadd.f32 %v3337, %v3365
  %v3367 = vpop.f32.mrf.mxu0
  %v3368 = vadd.f32 %v3339, %v3367
  %3369 = vdwg.mxu0
  %3370 = vmatpush.bf16.msra.mxu0 %v2847
  %3371 = vmatpush.bf16.msra.mxu0 %v2843
  %3372 = vmatpush.bf16.msra.mxu0 %v2839
  %3373 = vmatpush.bf16.msra.mxu0 %v2835
  %3374 = vmatpush.bf16.msra.mxu0 %v2831
  %3375 = vmatpush.bf16.msra.mxu0 %v2827
  %3376 = vmatpush.bf16.msra.mxu0 %v2823
  %3377 = vmatpush.bf16.msra.mxu0 %v2819
  %3378 = vmatmul.bf16.gmra.mxu0 %v2329
  %v3379 = vpop.f32.mrf.mxu0
  %v3380 = vadd.f32 %v3351, %v3379
  %v3381 = vpop.f32.mrf.mxu0
  %v3382 = vadd.f32 %v3353, %v3381
  %3383 = vmatmul.bf16.gmra.mxu0 %v2333
  %v3384 = vpop.f32.mrf.mxu0
  %v3385 = vadd.f32 %v3356, %v3384
  %v3386 = vpop.f32.mrf.mxu0
  %v3387 = vadd.f32 %v3358, %v3386
  %3388 = vmatmul.bf16.gmra.mxu0 %v2337
  %v3389 = vpop.f32.mrf.mxu0
  %v3390 = vadd.f32 %v3361, %v3389
  %v3391 = vpop.f32.mrf.mxu0
  %v3392 = vadd.f32 %v3363, %v3391
  %3393 = vmatmul.bf16.gmra.mxu0 %v2341
  %v3394 = vpop.f32.mrf.mxu0
  %v3395 = vadd.f32 %v3366, %v3394
  %v3396 = vpop.f32.mrf.mxu0
  %v3397 = vadd.f32 %v3368, %v3396
  %3398 = vdwg.mxu0
  %3399 = vmatpush.bf16.msra.mxu0 0
  %3400 = vmatpush.bf16.msra.mxu0 0
  %3401 = vmatpush.bf16.msra.mxu0 0
  %3402 = vmatpush.bf16.msra.mxu0 0
  %3403 = vmatpush.bf16.msra.mxu0 0
  %3404 = vmatpush.bf16.msra.mxu0 0
  %3405 = vmatpush.bf16.msra.mxu0 0
  %3406 = vmatpush.bf16.msra.mxu0 %v2851
  %3407 = vmatmul.bf16.gmra.mxu0 %v2953
  %v3408 = vpop.f32.mrf.mxu0
  %v3409 = vadd.f32 %v3380, %v3408
  %v3410 = vpop.f32.mrf.mxu0
  %v3411 = vadd.f32 %v3382, %v3410
  %3412 = vmatmul.bf16.gmra.mxu0 %v2956
  %v3413 = vpop.f32.mrf.mxu0
  %v3414 = vadd.f32 %v3385, %v3413
  %v3415 = vpop.f32.mrf.mxu0
  %v3416 = vadd.f32 %v3387, %v3415
  %3417 = vmatmul.bf16.gmra.mxu0 %v2959
  %v3418 = vpop.f32.mrf.mxu0
  %v3419 = vadd.f32 %v3390, %v3418
  %v3420 = vpop.f32.mrf.mxu0
  %v3421 = vadd.f32 %v3392, %v3420
  %3422 = vmatmul.bf16.gmra.mxu0 %v2962
  %v3423 = vpop.f32.mrf.mxu0
  %v3424 = vadd.f32 %v3395, %v3423
  %v3425 = vpop.f32.mrf.mxu0
  %v3426 = vadd.f32 %v3397, %v3425
  %3427 = vdwg.mxu0
  %v3428 = vmax.f32 %v3061, 0.0
  %v3429 = vmax.f32 %v3177, 0.0
  %v3430 = vmax.f32 %v3293, 0.0
  %v3431 = vmax.f32 %v3409, 0.0
  %v3432 = vmax.f32 %v3063, 0.0
  %v3433 = vmax.f32 %v3179, 0.0
  %v3434 = vmax.f32 %v3295, 0.0
  %v3435 = vmax.f32 %v3411, 0.0
  %v3436 = vmax.f32 %v3066, 0.0
  %v3437 = vmax.f32 %v3182, 0.0
  %v3438 = vmax.f32 %v3298, 0.0
  %v3439 = vmax.f32 %v3414, 0.0
  %v3440 = vmax.f32 %v3068, 0.0
  %v3441 = vmax.f32 %v3184, 0.0
  %v3442 = vmax.f32 %v3300, 0.0
  %v3443 = vmax.f32 %v3416, 0.0
  %v3444 = vmax.f32 %v3071, 0.0
  %v3445 = vmax.f32 %v3187, 0.0
  %v3446 = vmax.f32 %v3303, 0.0
  %v3447 = vmax.f32 %v3419, 0.0
  %v3448 = vmax.f32 %v3073, 0.0
  %v3449 = vmax.f32 %v3189, 0.0
  %v3450 = vmax.f32 %v3305, 0.0
  %v3451 = vmax.f32 %v3421, 0.0
  %v3452 = vmax.f32 %v3076, 0.0
  %v3453 = vmax.f32 %v3192, 0.0
  %v3454 = vmax.f32 %v3308, 0.0
  %v3455 = vmax.f32 %v3424, 0.0
  %v3456 = vmax.f32 %v3078, 0.0
  %v3457 = vmax.f32 %v3194, 0.0
  %v3458 = vmax.f32 %v3310, 0.0
  %v3459 = vmax.f32 %v3426, 0.0
  %v3460 = vunpack.c.l.bf16 %v58
  %v3462 = vperm.slane %v3460, 0
  %v3463 = vperm.slane %v3460, 2
  %v3464 = vperm.slane %v3460, 4
  %v3465 = vperm.slane %v3460, 6
  %v3470 = vperm.slane %v3462, 0
  %v3471 = vperm.slane %v3463, 0
  %v3472 = vperm.slane %v3464, 0
  %v3473 = vperm.slane %v3465, 0
  %v3474 = vmul.f32 %v3428, %v3470
  %v3475 = vmul.f32 %v3429, %v3471
  %v3476 = vmul.f32 %v3430, %v3472
  %v3477 = vmul.f32 %v3431, %v3473
  %v3478 = vmul.f32 %v3432, %v3470
  %v3479 = vmul.f32 %v3433, %v3471
  %v3480 = vmul.f32 %v3434, %v3472
  %v3481 = vmul.f32 %v3435, %v3473
  %v3482 = vmul.f32 %v3436, %v3470
  %v3483 = vmul.f32 %v3437, %v3471
  %v3484 = vmul.f32 %v3438, %v3472
  %v3485 = vmul.f32 %v3439, %v3473
  %v3486 = vmul.f32 %v3440, %v3470
  %v3487 = vmul.f32 %v3441, %v3471
  %v3488 = vmul.f32 %v3442, %v3472
  %v3489 = vmul.f32 %v3443, %v3473
  %v3490 = vmul.f32 %v3444, %v3470
  %v3491 = vmul.f32 %v3445, %v3471
  %v3492 = vmul.f32 %v3446, %v3472
  %v3493 = vmul.f32 %v3447, %v3473
  %v3494 = vmul.f32 %v3448, %v3470
  %v3495 = vmul.f32 %v3449, %v3471
  %v3496 = vmul.f32 %v3450, %v3472
  %v3497 = vmul.f32 %v3451, %v3473
  %v3498 = vmul.f32 %v3452, %v3470
  %v3499 = vmul.f32 %v3453, %v3471
  %v3500 = vmul.f32 %v3454, %v3472
  %v3501 = vmul.f32 %v3455, %v3473
  %v3502 = vmul.f32 %v3456, %v3470
  %v3503 = vmul.f32 %v3457, %v3471
  %v3504 = vmul.f32 %v3458, %v3472
  %v3505 = vmul.f32 %v3459, %v3473
  %v3506 = vpack.c.bf16 %v3478, %v3474
  %v3507 = vpack.c.bf16 %v3479, %v3475
  %v3508 = vpack.c.bf16 %v3480, %v3476
  %v3509 = vpack.c.bf16 %v3481, %v3477
  %v3510 = vpack.c.bf16 %v3486, %v3482
  %v3511 = vpack.c.bf16 %v3487, %v3483
  %v3512 = vpack.c.bf16 %v3488, %v3484
  %v3513 = vpack.c.bf16 %v3489, %v3485
  %v3514 = vpack.c.bf16 %v3494, %v3490
  %v3515 = vpack.c.bf16 %v3495, %v3491
  %v3516 = vpack.c.bf16 %v3496, %v3492
  %v3517 = vpack.c.bf16 %v3497, %v3493
  %v3518 = vpack.c.bf16 %v3502, %v3498
  %v3519 = vpack.c.bf16 %v3503, %v3499
  %v3520 = vpack.c.bf16 %v3504, %v3500
  %v3521 = vpack.c.bf16 %v3505, %v3501
  %v3522 = vld [vmem:[%s5] sm:$0xf]
  %v3523 = vld [vmem:[%s5 + $0x4] sm:$0xf]
  %v3524 = vld [vmem:[%s5 + $0x8] sm:$0xf]
  %v3525 = vld [vmem:[%s5 + $0xc] sm:$0xf]
  %v3526 = vld [vmem:[%s5 + $0x10] sm:$0xf]
  %v3527 = vld [vmem:[%s5 + $0x14] sm:$0xf]
  %v3528 = vld [vmem:[%s5 + $0x18] sm:$0xf]
  %v3529 = vld [vmem:[%s5 + $0x1c] sm:$0xf]
  %v3530 = vld [vmem:[%s5 + $0x20] sm:$0xf]
  %v3531 = vld [vmem:[%s5 + $0x24] sm:$0xf]
  %v3532 = vld [vmem:[%s5 + $0x28] sm:$0xf]
  %v3533 = vld [vmem:[%s5 + $0x2c] sm:$0xf]
  %v3534 = vld [vmem:[%s5 + $0x30] sm:$0xf]
  %v3535 = vld [vmem:[%s5 + $0x34] sm:$0xf]
  %v3536 = vld [vmem:[%s5 + $0x38] sm:$0xf]
  %v3537 = vld [vmem:[%s5 + $0x3c] sm:$0xf]
  %v3538 = vld [vmem:[%s5 + $0x40] sm:$0xf]
  %v3539 = vld [vmem:[%s5 + $0x44] sm:$0xf]
  %v3540 = vld [vmem:[%s5 + $0x48] sm:$0xf]
  %v3541 = vld [vmem:[%s5 + $0x4c] sm:$0xf]
  %v3542 = vld [vmem:[%s5 + $0x50] sm:$0xf]
  %v3543 = vld [vmem:[%s5 + $0x54] sm:$0xf]
  %v3544 = vld [vmem:[%s5 + $0x58] sm:$0xf]
  %v3545 = vld [vmem:[%s5 + $0x5c] sm:$0xf]
  %v3546 = vld [vmem:[%s5 + $0x60] sm:$0xf]
  %v3547 = vld [vmem:[%s5 + $0x64] sm:$0xf]
  %v3548 = vld [vmem:[%s5 + $0x68] sm:$0xf]
  %v3549 = vld [vmem:[%s5 + $0x6c] sm:$0xf]
  %v3550 = vld [vmem:[%s5 + $0x70] sm:$0xf]
  %v3551 = vld [vmem:[%s5 + $0x74] sm:$0xf]
  %v3552 = vld [vmem:[%s5 + $0x78] sm:$0xf]
  %v3553 = vld [vmem:[%s5 + $0x7c] sm:$0xf]
  %v3554 = vld [vmem:[%s5 + $0x80] sm:$0xf]
  %v3555 = vld [vmem:[%s5 + $0x84] sm:$0xf]
  %v3556 = vld [vmem:[%s5 + $0x88] sm:$0xf]
  %v3557 = vld [vmem:[%s5 + $0x8c] sm:$0xf]
  %v3558 = vld [vmem:[%s5 + $0x90] sm:$0xf]
  %v3559 = vld [vmem:[%s5 + $0x94] sm:$0xf]
  %v3560 = vld [vmem:[%s5 + $0x98] sm:$0xf]
  %v3561 = vld [vmem:[%s5 + $0x9c] sm:$0xf]
  %v3562 = vld [vmem:[%s5 + $0xa0] sm:$0xf]
  %v3563 = vld [vmem:[%s5 + $0xa4] sm:$0xf]
  %v3564 = vld [vmem:[%s5 + $0xa8] sm:$0xf]
  %v3565 = vld [vmem:[%s5 + $0xac] sm:$0xf]
  %v3566 = vld [vmem:[%s5 + $0xb0] sm:$0xf]
  %v3567 = vld [vmem:[%s5 + $0xb4] sm:$0xf]
  %v3568 = vld [vmem:[%s5 + $0xb8] sm:$0xf]
  %v3569 = vld [vmem:[%s5 + $0xbc] sm:$0xf]
  %v3570 = vld [vmem:[%s5 + $0xc0] sm:$0xf]
  %v3571 = vld [vmem:[%s5 + $0xc4] sm:$0xf]
  %v3573 = vperm.slane %v61, 0
  %v3625 = vunpack.c.l.b16 %v3522
  %v3626 = vunpack.c.l.b16 %v3523
  %v3627 = vunpack.c.l.b16 %v3524
  %v3628 = vunpack.c.l.b16 %v3525
  %v3629 = vunpack.c.l.b16 %v3526
  %v3630 = vunpack.c.l.b16 %v3527
  %v3631 = vunpack.c.l.b16 %v3528
  %v3632 = vunpack.c.l.b16 %v3529
  %v3633 = vunpack.c.l.b16 %v3530
  %v3634 = vunpack.c.l.b16 %v3531
  %v3635 = vunpack.c.l.b16 %v3532
  %v3636 = vunpack.c.l.b16 %v3533
  %v3637 = vunpack.c.l.b16 %v3534
  %v3638 = vunpack.c.l.b16 %v3535
  %v3639 = vunpack.c.l.b16 %v3536
  %v3640 = vunpack.c.l.b16 %v3537
  %v3641 = vunpack.c.l.b16 %v3538
  %v3642 = vunpack.c.l.b16 %v3539
  %v3643 = vunpack.c.l.b16 %v3540
  %v3644 = vunpack.c.l.b16 %v3541
  %v3645 = vunpack.c.l.b16 %v3542
  %v3646 = vunpack.c.l.b16 %v3543
  %v3647 = vunpack.c.l.b16 %v3544
  %v3648 = vunpack.c.l.b16 %v3545
  %v3649 = vunpack.c.l.b16 %v3546
  %v3650 = vunpack.c.l.b16 %v3547
  %v3651 = vunpack.c.l.b16 %v3548
  %v3652 = vunpack.c.l.b16 %v3549
  %v3653 = vunpack.c.l.b16 %v3550
  %v3654 = vunpack.c.l.b16 %v3551
  %v3655 = vunpack.c.l.b16 %v3552
  %v3656 = vunpack.c.l.b16 %v3553
  %v3657 = vunpack.c.l.b16 %v3554
  %v3658 = vunpack.c.l.b16 %v3555
  %v3659 = vunpack.c.l.b16 %v3556
  %v3660 = vunpack.c.l.b16 %v3557
  %v3661 = vunpack.c.l.b16 %v3558
  %v3662 = vunpack.c.l.b16 %v3559
  %v3663 = vunpack.c.l.b16 %v3560
  %v3664 = vunpack.c.l.b16 %v3561
  %v3665 = vunpack.c.l.b16 %v3562
  %v3666 = vunpack.c.l.b16 %v3563
  %v3667 = vunpack.c.l.b16 %v3564
  %v3668 = vunpack.c.l.b16 %v3565
  %v3669 = vunpack.c.l.b16 %v3566
  %v3670 = vunpack.c.l.b16 %v3567
  %v3671 = vunpack.c.l.b16 %v3568
  %v3672 = vunpack.c.l.b16 %v3569
  %v3673 = vunpack.c.l.b16 %v3570
  %v3674 = vunpack.c.l.b16 %v3571
  %v3675 = vpack.c.b16 %v3626, %v3625
  %v3676 = vpack.c.b16 %v3628, %v3627
  %v3677 = vpack.c.b16 %v3630, %v3629
  %v3678 = vpack.c.b16 %v3632, %v3631
  %v3679 = vpack.c.b16 %v3634, %v3633
  %v3680 = vpack.c.b16 %v3636, %v3635
  %v3681 = vpack.c.b16 %v3638, %v3637
  %v3682 = vpack.c.b16 %v3640, %v3639
  %v3683 = vpack.c.b16 %v3642, %v3641
  %v3684 = vpack.c.b16 %v3644, %v3643
  %v3685 = vpack.c.b16 %v3646, %v3645
  %v3686 = vpack.c.b16 %v3648, %v3647
  %v3687 = vpack.c.b16 %v3650, %v3649
  %v3688 = vpack.c.b16 %v3652, %v3651
  %v3689 = vpack.c.b16 %v3654, %v3653
  %v3690 = vpack.c.b16 %v3656, %v3655
  %v3691 = vpack.c.b16 %v3658, %v3657
  %v3692 = vpack.c.b16 %v3660, %v3659
  %v3693 = vpack.c.b16 %v3662, %v3661
  %v3694 = vpack.c.b16 %v3664, %v3663
  %v3695 = vpack.c.b16 %v3666, %v3665
  %v3696 = vpack.c.b16 %v3668, %v3667
  %v3697 = vpack.c.b16 %v3670, %v3669
  %v3698 = vpack.c.b16 %v3672, %v3671
  %v3699 = vpack.c.b16 %v3674, %v3673
  %v3726 = vsel %vm1424, %v3509, 0
  %v3729 = vsel %vm1424, %v3513, 0
  %v3732 = vsel %vm1424, %v3517, 0
  %v3735 = vsel %vm1424, %v3521, 0
  %3737 = vmatpush.bf16.msra.mxu0 %v3682
  %3738 = vmatpush.bf16.msra.mxu0 %v3681
  %3739 = vmatpush.bf16.msra.mxu0 %v3680
  %3740 = vmatpush.bf16.msra.mxu0 %v3679
  %3741 = vmatpush.bf16.msra.mxu0 %v3678
  %3742 = vmatpush.bf16.msra.mxu0 %v3677
  %3743 = vmatpush.bf16.msra.mxu0 %v3676
  %3744 = vmatpush.bf16.msra.mxu0 %v3675
  %3745 = vmatmul.bf16.gmra.mxu0 %v3506
  %v3746 = vpop.f32.mrf.mxu0
  %v3747 = vadd.f32 %v3573, %v3746
  %v3748 = vpop.f32.mrf.mxu0
  %v3749 = vadd.f32 %v3573, %v3748
  %3750 = vmatmul.bf16.gmra.mxu0 %v3510
  %v3751 = vpop.f32.mrf.mxu0
  %v3752 = vadd.f32 %v3573, %v3751
  %v3753 = vpop.f32.mrf.mxu0
  %v3754 = vadd.f32 %v3573, %v3753
  %3755 = vmatmul.bf16.gmra.mxu0 %v3514
  %v3756 = vpop.f32.mrf.mxu0
  %v3757 = vadd.f32 %v3573, %v3756
  %v3758 = vpop.f32.mrf.mxu0
  %v3759 = vadd.f32 %v3573, %v3758
  %3760 = vmatmul.bf16.gmra.mxu0 %v3518
  %v3761 = vpop.f32.mrf.mxu0
  %v3762 = vadd.f32 %v3573, %v3761
  %v3763 = vpop.f32.mrf.mxu0
  %v3764 = vadd.f32 %v3573, %v3763
  %3765 = vdwg.mxu0
  %3766 = vmatpush.bf16.msra.mxu0 %v3690
  %3767 = vmatpush.bf16.msra.mxu0 %v3689
  %3768 = vmatpush.bf16.msra.mxu0 %v3688
  %3769 = vmatpush.bf16.msra.mxu0 %v3687
  %3770 = vmatpush.bf16.msra.mxu0 %v3686
  %3771 = vmatpush.bf16.msra.mxu0 %v3685
  %3772 = vmatpush.bf16.msra.mxu0 %v3684
  %3773 = vmatpush.bf16.msra.mxu0 %v3683
  %3774 = vmatmul.bf16.gmra.mxu0 %v3507
  %v3775 = vpop.f32.mrf.mxu0
  %v3776 = vadd.f32 %v3747, %v3775
  %v3777 = vpop.f32.mrf.mxu0
  %v3778 = vadd.f32 %v3749, %v3777
  %3779 = vmatmul.bf16.gmra.mxu0 %v3511
  %v3780 = vpop.f32.mrf.mxu0
  %v3781 = vadd.f32 %v3752, %v3780
  %v3782 = vpop.f32.mrf.mxu0
  %v3783 = vadd.f32 %v3754, %v3782
  %3784 = vmatmul.bf16.gmra.mxu0 %v3515
  %v3785 = vpop.f32.mrf.mxu0
  %v3786 = vadd.f32 %v3757, %v3785
  %v3787 = vpop.f32.mrf.mxu0
  %v3788 = vadd.f32 %v3759, %v3787
  %3789 = vmatmul.bf16.gmra.mxu0 %v3519
  %v3790 = vpop.f32.mrf.mxu0
  %v3791 = vadd.f32 %v3762, %v3790
  %v3792 = vpop.f32.mrf.mxu0
  %v3793 = vadd.f32 %v3764, %v3792
  %3794 = vdwg.mxu0
  %3795 = vmatpush.bf16.msra.mxu0 %v3698
  %3796 = vmatpush.bf16.msra.mxu0 %v3697
  %3797 = vmatpush.bf16.msra.mxu0 %v3696
  %3798 = vmatpush.bf16.msra.mxu0 %v3695
  %3799 = vmatpush.bf16.msra.mxu0 %v3694
  %3800 = vmatpush.bf16.msra.mxu0 %v3693
  %3801 = vmatpush.bf16.msra.mxu0 %v3692
  %3802 = vmatpush.bf16.msra.mxu0 %v3691
  %3803 = vmatmul.bf16.gmra.mxu0 %v3508
  %v3804 = vpop.f32.mrf.mxu0
  %v3805 = vadd.f32 %v3776, %v3804
  %v3806 = vpop.f32.mrf.mxu0
  %v3807 = vadd.f32 %v3778, %v3806
  %3808 = vmatmul.bf16.gmra.mxu0 %v3512
  %v3809 = vpop.f32.mrf.mxu0
  %v3810 = vadd.f32 %v3781, %v3809
  %v3811 = vpop.f32.mrf.mxu0
  %v3812 = vadd.f32 %v3783, %v3811
  %3813 = vmatmul.bf16.gmra.mxu0 %v3516
  %v3814 = vpop.f32.mrf.mxu0
  %v3815 = vadd.f32 %v3786, %v3814
  %v3816 = vpop.f32.mrf.mxu0
  %v3817 = vadd.f32 %v3788, %v3816
  %3818 = vmatmul.bf16.gmra.mxu0 %v3520
  %v3819 = vpop.f32.mrf.mxu0
  %v3820 = vadd.f32 %v3791, %v3819
  %v3821 = vpop.f32.mrf.mxu0
  %v3822 = vadd.f32 %v3793, %v3821
  %3823 = vdwg.mxu0
  %3824 = vmatpush.bf16.msra.mxu0 0
  %3825 = vmatpush.bf16.msra.mxu0 0
  %3826 = vmatpush.bf16.msra.mxu0 0
  %3827 = vmatpush.bf16.msra.mxu0 0
  %3828 = vmatpush.bf16.msra.mxu0 0
  %3829 = vmatpush.bf16.msra.mxu0 0
  %3830 = vmatpush.bf16.msra.mxu0 0
  %3831 = vmatpush.bf16.msra.mxu0 %v3699
  %3832 = vmatmul.bf16.gmra.mxu0 %v3726
  %v3833 = vpop.f32.mrf.mxu0
  %v3834 = vadd.f32 %v3805, %v3833
  %v3835 = vpop.f32.mrf.mxu0
  %v3836 = vadd.f32 %v3807, %v3835
  %3837 = vmatmul.bf16.gmra.mxu0 %v3729
  %v3838 = vpop.f32.mrf.mxu0
  %v3839 = vadd.f32 %v3810, %v3838
  %v3840 = vpop.f32.mrf.mxu0
  %v3841 = vadd.f32 %v3812, %v3840
  %3842 = vmatmul.bf16.gmra.mxu0 %v3732
  %v3843 = vpop.f32.mrf.mxu0
  %v3844 = vadd.f32 %v3815, %v3843
  %v3845 = vpop.f32.mrf.mxu0
  %v3846 = vadd.f32 %v3817, %v3845
  %3847 = vmatmul.bf16.gmra.mxu0 %v3735
  %v3848 = vpop.f32.mrf.mxu0
  %v3849 = vadd.f32 %v3820, %v3848
  %v3850 = vpop.f32.mrf.mxu0
  %v3851 = vadd.f32 %v3822, %v3850
  %3852 = vdwg.mxu0
  %3853 = vmax.xlane.f32.xlu0 %v3834
  %v3854 = vpop.xlane.xlu0 %3853
  %3855 = vmax.xlane.f32.xlu0 %v3836
  %v3856 = vpop.xlane.xlu0 %3855
  %3857 = vmax.xlane.f32.xlu0 %v3839
  %v3858 = vpop.xlane.xlu0 %3857
  %3859 = vmax.xlane.f32.xlu0 %v3841
  %v3860 = vpop.xlane.xlu0 %3859
  %3861 = vmax.xlane.f32.xlu0 %v3844
  %v3862 = vpop.xlane.xlu0 %3861
  %3863 = vmax.xlane.f32.xlu0 %v3846
  %v3864 = vpop.xlane.xlu0 %3863
  %3865 = vmax.xlane.f32.xlu0 %v3849
  %v3866 = vpop.xlane.xlu0 %3865
  %3867 = vmax.xlane.f32.xlu0 %v3851
  %v3868 = vpop.xlane.xlu0 %3867
  %v3869 = vsub.f32 %v3834, %v3854
  %v3870 = vsub.f32 %v3836, %v3856
  %v3871 = vsub.f32 %v3839, %v3858
  %v3872 = vsub.f32 %v3841, %v3860
  %v3873 = vsub.f32 %v3844, %v3862
  %v3874 = vsub.f32 %v3846, %v3864
  %v3875 = vsub.f32 %v3849, %v3866
  %v3876 = vsub.f32 %v3851, %v3868
  %v3877 = vmul.f32 %v3869, 1.442695
  %v3878 = vpow.pop %v3877
  %v3879 = vmul.f32 %v3870, 1.442695
  %v3880 = vpow.pop %v3879
  %v3881 = vmul.f32 %v3871, 1.442695
  %v3882 = vpow.pop %v3881
  %v3883 = vmul.f32 %v3872, 1.442695
  %v3884 = vpow.pop %v3883
  %v3885 = vmul.f32 %v3873, 1.442695
  %v3886 = vpow.pop %v3885
  %v3887 = vmul.f32 %v3874, 1.442695
  %v3888 = vpow.pop %v3887
  %v3889 = vmul.f32 %v3875, 1.442695
  %v3890 = vpow.pop %v3889
  %v3891 = vmul.f32 %v3876, 1.442695
  %v3892 = vpow.pop %v3891
  %3893 = vadd.xlane.f32.xlu0 %v3878
  %v3894 = vpop.xlane.xlu0 %3893
  %3895 = vadd.xlane.f32.xlu0 %v3880
  %v3896 = vpop.xlane.xlu0 %3895
  %3897 = vadd.xlane.f32.xlu0 %v3882
  %v3898 = vpop.xlane.xlu0 %3897
  %3899 = vadd.xlane.f32.xlu0 %v3884
  %v3900 = vpop.xlane.xlu0 %3899
  %3901 = vadd.xlane.f32.xlu0 %v3886
  %v3902 = vpop.xlane.xlu0 %3901
  %3903 = vadd.xlane.f32.xlu0 %v3888
  %v3904 = vpop.xlane.xlu0 %3903
  %3905 = vadd.xlane.f32.xlu0 %v3890
  %v3906 = vpop.xlane.xlu0 %3905
  %3907 = vadd.xlane.f32.xlu0 %v3892
  %v3908 = vpop.xlane.xlu0 %3907
  %v3909 = vlog2.pop %v3894
  %v3910 = vmul.f32 %v3909, 0.6931472
  %v3911 = vlog2.pop %v3896
  %v3912 = vmul.f32 %v3911, 0.6931472
  %v3913 = vlog2.pop %v3898
  %v3914 = vmul.f32 %v3913, 0.6931472
  %v3915 = vlog2.pop %v3900
  %v3916 = vmul.f32 %v3915, 0.6931472
  %v3917 = vlog2.pop %v3902
  %v3918 = vmul.f32 %v3917, 0.6931472
  %v3919 = vlog2.pop %v3904
  %v3920 = vmul.f32 %v3919, 0.6931472
  %v3921 = vlog2.pop %v3906
  %v3922 = vmul.f32 %v3921, 0.6931472
  %v3923 = vlog2.pop %v3908
  %v3924 = vmul.f32 %v3923, 0.6931472
  %v3925 = vsub.f32 %v3869, %v3910
  %v3926 = vsub.f32 %v3870, %v3912
  %v3927 = vsub.f32 %v3871, %v3914
  %v3928 = vsub.f32 %v3872, %v3916
  %v3929 = vsub.f32 %v3873, %v3918
  %v3930 = vsub.f32 %v3874, %v3920
  %v3931 = vsub.f32 %v3875, %v3922
  %v3932 = vsub.f32 %v3876, %v3924
  %3933 = vst [vmem:[%s6] sm:$0xff] %v3925
  %3934 = vst [vmem:[%s6 + $0x8] sm:$0xff] %v3926
  %3935 = vst [vmem:[%s6 + $0x10] sm:$0xff] %v3927
  %3936 = vst [vmem:[%s6 + $0x18] sm:$0xff] %v3928
  %3937 = vst [vmem:[%s6 + $0x20] sm:$0xff] %v3929
  %3938 = vst [vmem:[%s6 + $0x28] sm:$0xff] %v3930
  %3939 = vst [vmem:[%s6 + $0x30] sm:$0xff] %v3931
  %3940 = vst [vmem:[%s6 + $0x38] sm:$0xff] %v3932
  // Predicated region
  $region26: #{mlp_bnn_vd_forward.1} parent=0 // pred_check
    _
  $region27: #{mlp_bnn_vd_forward.1} parent=0 // pred_check_branch
    %3942 = sbr.rel (0) target = $region29
  $region28: #{mlp_bnn_vd_forward.1} parent=0 // pred_region
    _
  $region29: #{mlp_bnn_vd_forward.1} parent=0 // pred_fallthru
    _
  // Predicated region
  $region30: #{mlp_bnn_vd_forward.1} parent=0 // pred_check
    _
  $region31: #{mlp_bnn_vd_forward.1} parent=0 // pred_check_branch
    %3944 = sbr.rel (0) target = $region33
  $region32: #{mlp_bnn_vd_forward.1} parent=0 // pred_region
    _
  $region33: #{mlp_bnn_vd_forward.1} parent=0 // pred_fallthru
    _

</llo_original>
